<compile_context>
chip_gen: v5e
topology: v5e:2x2
jax: 0.10.0
libtpu: 0.0.40
codegen_flags: <defaults>
</compile_context>

<pallas_src>
import functools

import jax
import jax.numpy as jnp
from jax.experimental import pallas as pl
from jax.experimental.pallas import tpu as pltpu


# ----------------------------------------------------------------------------
# Helpers
# ----------------------------------------------------------------------------
def _take_even(v, axis):
    """v[..., ::2, ...] along a NON-minor axis.

    Implemented as a minor-dim-preserving reshape + unit slice so it lowers to
    cheap sublane / vreg-row regrouping instead of a strided gather.
    """
    shp = v.shape
    v = v.reshape(shp[:axis] + (shp[axis] // 2, 2) + shp[axis + 1:])
    idx = [slice(None)] * v.ndim
    idx[axis + 1] = 0
    return v[tuple(idx)]


# ----------------------------------------------------------------------------
# Fused encoder kernel (one image per grid step; everything stays in VMEM)
# ----------------------------------------------------------------------------
def _encoder_kernel(x_ref, w1_ref, b1_ref, w2_ref, b2_ref, w3_ref, b3_ref,
                    wfc_ref, bfc_ref, out_ref, *, in_h, in_w):
    f32 = jnp.float32
    oh1, ow1 = in_h // 2, in_w // 2          # after conv1 (stride 2)
    oh2, ow2 = oh1 // 2, ow1 // 2            # after conv2 (stride 2)
    npos = oh2 * ow2                         # conv3 spatial positions

    # ---------------- conv1: 1 -> 32, 3x3, stride 2, pad 1 (VPU stencil) ----
    x = x_ref[...].reshape(in_h, in_w)                      # (H, W), W on lanes
    # One hoisted relayout to channel-last (c on lanes); afterwards every tap
    # is a plain unit slice and the stencil is whole-vreg VPU FMAs.
    xc = jnp.broadcast_to(x.reshape(in_h, in_w, 1), (in_h, in_w, 32))
    zr = jnp.zeros((1, in_w, 32), f32)
    zc = jnp.zeros((in_h + 2, 1, 32), f32)
    xpc = jnp.concatenate([zr, xc, zr], axis=0)
    xpc = jnp.concatenate([zc, xpc, zc], axis=1)            # (H+2, W+2, 32)

    w1 = w1_ref[...]                                        # (9, 32)
    acc1 = jnp.zeros((in_h, in_w, 32), f32)
    for ki in range(3):
        for kj in range(3):
            t = 3 * ki + kj
            tap = xpc[ki:ki + in_h, kj:kj + in_w, :]        # (H, W, 32)
            acc1 = acc1 + tap * w1[t:t + 1, :].reshape(1, 1, 32)
    # stride-2 output == even rows / even cols of the stride-1 result
    acc1 = _take_even(_take_even(acc1, 0), 1)               # (oh1, ow1, 32)
    a1 = jnp.maximum(acc1 + b1_ref[...].reshape(1, 1, 32), 0.0)

    # ---------------- conv2: 32 -> 64, 3x3, stride 2, pad 1 -----------------
    zr = jnp.zeros((1, ow1, 32), f32)
    zc = jnp.zeros((oh1 + 2, 1, 32), f32)
    a1p = jnp.concatenate([zr, a1, zr], axis=0)
    a1p = jnp.concatenate([zc, a1p, zc], axis=1)            # (oh1+2, ow1+2, 32)

    acc2 = jnp.zeros((npos, 64), f32)
    for ki in range(3):
        for kj in range(3):
            t = 3 * ki + kj
            blk = a1p[ki:ki + 2 * oh2, kj:kj + 2 * ow2, :]  # (2*oh2, 2*ow2, 32)
            tap = _take_even(_take_even(blk, 0), 1)         # (oh2, ow2, 32)
            acc2 = acc2 + jnp.dot(tap.reshape(npos, 32), w2_ref[t],
                                  preferred_element_type=f32)
    a2 = jnp.maximum(acc2 + b2_ref[...], 0.0)               # (npos, 64)

    # ---------------- conv3: 64 -> 128, 3x3, stride 1, pad 1 ----------------
    a2 = a2.reshape(oh2, ow2, 64)
    zr = jnp.zeros((1, ow2, 64), f32)
    zc = jnp.zeros((oh2 + 2, 1, 64), f32)
    a2p = jnp.concatenate([zr, a2, zr], axis=0)
    a2p = jnp.concatenate([zc, a2p, zc], axis=1)            # (oh2+2, ow2+2, 64)

    acc3 = jnp.zeros((npos, 128), f32)
    for ki in range(3):
        for kj in range(3):
            t = 3 * ki + kj
            tap = a2p[ki:ki + oh2, kj:kj + ow2, :]          # (oh2, ow2, 64)
            acc3 = acc3 + jnp.dot(tap.reshape(npos, 64), w3_ref[t],
                                  preferred_element_type=f32)
    a3 = jnp.maximum(acc3 + b3_ref[...], 0.0)               # (npos, 128)

    # ---------------- fused fc_mu / fc_logvar (lane-padded columns) ---------
    # wfc is packed per spatial position: out = sum_p a3[p, :] @ wfc[p].
    # This matches PyTorch's NCHW h.view(N, -1) with no runtime transpose.
    lp = out_ref.shape[-1]
    accf = jnp.zeros((1, lp), f32)
    for p in range(npos):
        accf = accf + jnp.dot(a3[p:p + 1, :], wfc_ref[p],
                              preferred_element_type=f32)
    out = accf + bfc_ref[...]
    out_ref[...] = out.reshape(1, 1, lp).astype(out_ref.dtype)


# ----------------------------------------------------------------------------
# Parameter init (PyTorch layout) and one-time packing into kernel layout
# ----------------------------------------------------------------------------
def init_params(key, input_dim, latent_dim):
    ks = jax.random.split(key, 10)
    conv_out = (input_dim[0] // 4) * (input_dim[1] // 4) * 128

    def u(k, shape, fan_in):
        bound = 1.0 / (fan_in ** 0.5)
        return jax.random.uniform(k, shape, jnp.float32, -bound, bound)

    return {
        "conv1_w": u(ks[0], (32, 1, 3, 3), 1 * 9),
        "conv1_b": u(ks[1], (32,), 1 * 9),
        "conv2_w": u(ks[2], (64, 32, 3, 3), 32 * 9),
        "conv2_b": u(ks[3], (64,), 32 * 9),
        "conv3_w": u(ks[4], (128, 64, 3, 3), 64 * 9),
        "conv3_b": u(ks[5], (128,), 64 * 9),
        # stored as (in, out); rows in PyTorch flatten order (c, h, w)
        "fc_mu_w": u(ks[6], (conv_out, latent_dim), conv_out),
        "fc_mu_b": u(ks[7], (latent_dim,), conv_out),
        "fc_logvar_w": u(ks[8], (conv_out, latent_dim), conv_out),
        "fc_logvar_b": u(ks[9], (latent_dim,), conv_out),
    }


def pack_params(params, input_dim, latent_dim):
    """One-time repack into the kernel's layouts:
       conv weights -> per-tap (9, Cin, Cout) matrices,
       FC weights   -> per-position (npos, 128, Lp) fused mu||logvar matrix
                       (columns zero-padded to a multiple of 128 lanes)."""
    oh, ow = input_dim[0] // 4, input_dim[1] // 4
    npos = oh * ow
    lat2 = 2 * latent_dim
    lat2p = ((lat2 + 127) // 128) * 128

    def conv_taps(w_oihw):
        oc, ic, kh, kw = w_oihw.shape
        return jnp.transpose(w_oihw, (2, 3, 1, 0)).reshape(kh * kw, ic, oc)

    def fc_taps(w_in_out):  # rows in (c, p) PyTorch order -> (p, c, latent)
        return jnp.transpose(w_in_out.reshape(128, npos, latent_dim), (1, 0, 2))

    wfc = jnp.concatenate([fc_taps(params["fc_mu_w"]),
                           fc_taps(params["fc_logvar_w"])], axis=2)
    wfc = jnp.pad(wfc, ((0, 0), (0, 0), (0, lat2p - lat2)))
    bfc = jnp.concatenate([params["fc_mu_b"], params["fc_logvar_b"]])
    bfc = jnp.pad(bfc, (0, lat2p - lat2))

    return {
        "w1": jnp.transpose(params["conv1_w"], (2, 3, 1, 0)).reshape(9, 32),
        "b1": params["conv1_b"].reshape(1, -1),
        "w2": conv_taps(params["conv2_w"]),              # (9, 32, 64)
        "b2": params["conv2_b"].reshape(1, -1),
        "w3": conv_taps(params["conv3_w"]),              # (9, 64, 128)
        "b3": params["conv3_b"].reshape(1, -1),
        "wfc": wfc,                                      # (npos, 128, lat2p)
        "bfc": bfc.reshape(1, -1),
    }


# ----------------------------------------------------------------------------
# Forward pass (mirrors CNNEncoder.forward) — one fused pallas_call
# ----------------------------------------------------------------------------
def cnn_encoder_forward(packed, x_nchw, *, latent_dim):
    n, c, in_h, in_w = x_nchw.shape
    assert c == 1 and in_h % 4 == 0 and in_w % 4 == 0
    lp = packed["wfc"].shape[-1]

    x = x_nchw.astype(jnp.float32).reshape(n, in_h, in_w)   # lane-dense (W on lanes)

    def const_spec(a):
        nd = a.ndim
        return pl.BlockSpec(a.shape, lambda i, _n=nd: (0,) * _n)

    weights = (packed["w1"], packed["b1"], packed["w2"], packed["b2"],
               packed["w3"], packed["b3"], packed["wfc"], packed["bfc"])

    kernel = functools.partial(_encoder_kernel, in_h=in_h, in_w=in_w)
    out = pl.pallas_call(
        kernel,
        out_shape=jax.ShapeDtypeStruct((n, 1, lp), jnp.float32),
        grid_spec=pltpu.PrefetchScalarGridSpec(
            num_scalar_prefetch=0,
            grid=(n,),                                      # one image per step
            in_specs=[pl.BlockSpec((1, in_h, in_w), lambda i: (i, 0, 0))]
                     + [const_spec(w) for w in weights],    # weights stay resident
            out_specs=pl.BlockSpec((1, 1, lp), lambda i: (i, 0, 0)),
        ),
        compiler_params=pltpu.CompilerParams(
            dimension_semantics=("parallel",),              # megacore on v7x
            vmem_limit_bytes=64 * 1024 * 1024),
    )(x, *weights)

    out = out.reshape(n, lp)
    return out[:, :latent_dim], out[:, latent_dim:2 * latent_dim]


# ----------------------------------------------------------------------------
# Plain-JAX reference of the PyTorch module (numeric sanity check)
# ----------------------------------------------------------------------------
def _reference_forward(params, x):
    dn = ("NCHW", "OIHW", "NCHW")
    hp = jax.lax.Precision.HIGHEST

    def conv(h, w, b, stride):
        y = jax.lax.conv_general_dilated(
            h, w, (stride, stride), ((1, 1), (1, 1)),
            dimension_numbers=dn, precision=hp)
        return jnp.maximum(y + b.reshape(1, -1, 1, 1), 0.0)

    h = conv(x, params["conv1_w"], params["conv1_b"], 2)
    h = conv(h, params["conv2_w"], params["conv2_b"], 2)
    h = conv(h, params["conv3_w"], params["conv3_b"], 1)
    hf = h.reshape(x.shape[0], -1)                      # PyTorch h.view(N, -1)
    mu = jnp.dot(hf, params["fc_mu_w"], precision=hp) + params["fc_mu_b"]
    logvar = jnp.dot(hf, params["fc_logvar_w"], precision=hp) + params["fc_logvar_b"]
    return mu, logvar


if __name__ == "__main__":
    input_dim = (16, 16)
    latent_dim = 8
    batch = 2

    key = jax.random.PRNGKey(0)
    k_params, k_x = jax.random.split(key)
    params = init_params(k_params, input_dim, latent_dim)
    packed = pack_params(params, input_dim, latent_dim)
    x = jax.random.normal(k_x, (batch, 1, input_dim[0], input_dim[1]), jnp.float32)

    fwd = jax.jit(cnn_encoder_forward, static_argnames=("latent_dim",))
    mu, logvar = fwd(packed, x, latent_dim=latent_dim)
    jax.block_until_ready((mu, logvar))

    assert mu.shape == (batch, latent_dim)
    assert logvar.shape == (batch, latent_dim)

    mu_ref, logvar_ref = _reference_forward(params, x)
    assert jnp.allclose(mu, mu_ref, atol=2e-2, rtol=2e-2)
    assert jnp.allclose(logvar, logvar_ref, atol=2e-2, rtol=2e-2)

    print("KERNEL_OK")
</pallas_src>

<mosaic_0001>
module attributes {stable_mosaic.version = 11 : i64} {
  func.func @_encoder_kernel(%arg0: i32, %arg1: memref<1x16x16xf32, #tpu.memory_space<vmem>>, %arg2: memref<9x32xf32, #tpu.memory_space<vmem>>, %arg3: memref<1x32xf32, #tpu.memory_space<vmem>>, %arg4: memref<9x32x64xf32, #tpu.memory_space<vmem>>, %arg5: memref<1x64xf32, #tpu.memory_space<vmem>>, %arg6: memref<9x64x128xf32, #tpu.memory_space<vmem>>, %arg7: memref<1x128xf32, #tpu.memory_space<vmem>>, %arg8: memref<16x128x128xf32, #tpu.memory_space<vmem>>, %arg9: memref<1x128xf32, #tpu.memory_space<vmem>>, %arg10: memref<1x1x128xf32, #tpu.memory_space<vmem>>) attributes {dimension_semantics = [#tpu.dimension_semantics<parallel>], iteration_bounds = array<i64: 2>, scalar_prefetch = 0 : i64, scratch_operands = 0 : i64, tpu.core_type = #tpu.core_type<tc>, window_params = [{transform_indices = @transform_0, window_bounds = array<i64: 1, 16, 16>}, {pipeline_mode = #tpu.pipeline_mode<synchronous>, transform_indices = @transform_1, window_bounds = array<i64: 9, 32>}, {pipeline_mode = #tpu.pipeline_mode<synchronous>, transform_indices = @transform_2, window_bounds = array<i64: 1, 32>}, {pipeline_mode = #tpu.pipeline_mode<synchronous>, transform_indices = @transform_3, window_bounds = array<i64: 9, 32, 64>}, {pipeline_mode = #tpu.pipeline_mode<synchronous>, transform_indices = @transform_4, window_bounds = array<i64: 1, 64>}, {pipeline_mode = #tpu.pipeline_mode<synchronous>, transform_indices = @transform_5, window_bounds = array<i64: 9, 64, 128>}, {pipeline_mode = #tpu.pipeline_mode<synchronous>, transform_indices = @transform_6, window_bounds = array<i64: 1, 128>}, {pipeline_mode = #tpu.pipeline_mode<synchronous>, transform_indices = @transform_7, window_bounds = array<i64: 16, 128, 128>}, {pipeline_mode = #tpu.pipeline_mode<synchronous>, transform_indices = @transform_8, window_bounds = array<i64: 1, 128>}, {transform_indices = @transform_9, window_bounds = array<i64: 1, 1, 128>}]} {
    %c0 = arith.constant 0 : index
    %c0_0 = arith.constant 0 : index
    %c0_1 = arith.constant 0 : index
    %0 = vector.load %arg1[%c0, %c0_0, %c0_1] : memref<1x16x16xf32, #tpu.memory_space<vmem>>, vector<1x16x16xf32>
    %1 = vector.shape_cast %0 : vector<1x16x16xf32> to vector<16x16xf32>
    %2 = vector.shape_cast %1 : vector<16x16xf32> to vector<16x16x1xf32>
    %3 = vector.shape_cast %2 : vector<16x16x1xf32> to vector<16x16x1xf32>
    %4 = vector.broadcast %3 : vector<16x16x1xf32> to vector<16x16x32xf32>
    %cst = arith.constant 0.000000e+00 : f32
    %5 = vector.broadcast %cst : f32 to vector<1x16x32xf32>
    %cst_2 = arith.constant 0.000000e+00 : f32
    %6 = vector.broadcast %cst_2 : f32 to vector<18x1x32xf32>
    %7 = tpu.concatenate %5, %4, %5 in 0 : vector<1x16x32xf32>, vector<16x16x32xf32>, vector<1x16x32xf32> -> vector<18x16x32xf32>
    %8 = tpu.concatenate %6, %7, %6 in 1 : vector<18x1x32xf32>, vector<18x16x32xf32>, vector<18x1x32xf32> -> vector<18x18x32xf32>
    %c0_3 = arith.constant 0 : index
    %c0_4 = arith.constant 0 : index
    %9 = vector.load %arg2[%c0_3, %c0_4] : memref<9x32xf32, #tpu.memory_space<vmem>>, vector<9x32xf32>
    %cst_5 = arith.constant 0.000000e+00 : f32
    %10 = vector.broadcast %cst_5 : f32 to vector<16x16x32xf32>
    %11 = vector.extract_strided_slice %8 {offsets = [0, 0, 0], sizes = [16, 16, 32], strides = [1, 1, 1]} : vector<18x18x32xf32> to vector<16x16x32xf32>
    %12 = vector.extract_strided_slice %9 {offsets = [0, 0], sizes = [1, 32], strides = [1, 1]} : vector<9x32xf32> to vector<1x32xf32>
    %13 = vector.shape_cast %12 : vector<1x32xf32> to vector<1x1x32xf32>
    %14 = vector.broadcast %13 : vector<1x1x32xf32> to vector<16x16x32xf32>
    %15 = arith.mulf %11, %14 : vector<16x16x32xf32>
    %16 = arith.addf %10, %15 : vector<16x16x32xf32>
    %17 = vector.extract_strided_slice %8 {offsets = [0, 1, 0], sizes = [16, 16, 32], strides = [1, 1, 1]} : vector<18x18x32xf32> to vector<16x16x32xf32>
    %18 = vector.extract_strided_slice %9 {offsets = [1, 0], sizes = [1, 32], strides = [1, 1]} : vector<9x32xf32> to vector<1x32xf32>
    %19 = vector.shape_cast %18 : vector<1x32xf32> to vector<1x1x32xf32>
    %20 = vector.broadcast %19 : vector<1x1x32xf32> to vector<16x16x32xf32>
    %21 = arith.mulf %17, %20 : vector<16x16x32xf32>
    %22 = arith.addf %16, %21 : vector<16x16x32xf32>
    %23 = vector.extract_strided_slice %8 {offsets = [0, 2, 0], sizes = [16, 16, 32], strides = [1, 1, 1]} : vector<18x18x32xf32> to vector<16x16x32xf32>
    %24 = vector.extract_strided_slice %9 {offsets = [2, 0], sizes = [1, 32], strides = [1, 1]} : vector<9x32xf32> to vector<1x32xf32>
    %25 = vector.shape_cast %24 : vector<1x32xf32> to vector<1x1x32xf32>
    %26 = vector.broadcast %25 : vector<1x1x32xf32> to vector<16x16x32xf32>
    %27 = arith.mulf %23, %26 : vector<16x16x32xf32>
    %28 = arith.addf %22, %27 : vector<16x16x32xf32>
    %29 = vector.extract_strided_slice %8 {offsets = [1, 0, 0], sizes = [16, 16, 32], strides = [1, 1, 1]} : vector<18x18x32xf32> to vector<16x16x32xf32>
    %30 = vector.extract_strided_slice %9 {offsets = [3, 0], sizes = [1, 32], strides = [1, 1]} : vector<9x32xf32> to vector<1x32xf32>
    %31 = vector.shape_cast %30 : vector<1x32xf32> to vector<1x1x32xf32>
    %32 = vector.broadcast %31 : vector<1x1x32xf32> to vector<16x16x32xf32>
    %33 = arith.mulf %29, %32 : vector<16x16x32xf32>
    %34 = arith.addf %28, %33 : vector<16x16x32xf32>
    %35 = vector.extract_strided_slice %8 {offsets = [1, 1, 0], sizes = [16, 16, 32], strides = [1, 1, 1]} : vector<18x18x32xf32> to vector<16x16x32xf32>
    %36 = vector.extract_strided_slice %9 {offsets = [4, 0], sizes = [1, 32], strides = [1, 1]} : vector<9x32xf32> to vector<1x32xf32>
    %37 = vector.shape_cast %36 : vector<1x32xf32> to vector<1x1x32xf32>
    %38 = vector.broadcast %37 : vector<1x1x32xf32> to vector<16x16x32xf32>
    %39 = arith.mulf %35, %38 : vector<16x16x32xf32>
    %40 = arith.addf %34, %39 : vector<16x16x32xf32>
    %41 = vector.extract_strided_slice %8 {offsets = [1, 2, 0], sizes = [16, 16, 32], strides = [1, 1, 1]} : vector<18x18x32xf32> to vector<16x16x32xf32>
    %42 = vector.extract_strided_slice %9 {offsets = [5, 0], sizes = [1, 32], strides = [1, 1]} : vector<9x32xf32> to vector<1x32xf32>
    %43 = vector.shape_cast %42 : vector<1x32xf32> to vector<1x1x32xf32>
    %44 = vector.broadcast %43 : vector<1x1x32xf32> to vector<16x16x32xf32>
    %45 = arith.mulf %41, %44 : vector<16x16x32xf32>
    %46 = arith.addf %40, %45 : vector<16x16x32xf32>
    %47 = vector.extract_strided_slice %8 {offsets = [2, 0, 0], sizes = [16, 16, 32], strides = [1, 1, 1]} : vector<18x18x32xf32> to vector<16x16x32xf32>
    %48 = vector.extract_strided_slice %9 {offsets = [6, 0], sizes = [1, 32], strides = [1, 1]} : vector<9x32xf32> to vector<1x32xf32>
    %49 = vector.shape_cast %48 : vector<1x32xf32> to vector<1x1x32xf32>
    %50 = vector.broadcast %49 : vector<1x1x32xf32> to vector<16x16x32xf32>
    %51 = arith.mulf %47, %50 : vector<16x16x32xf32>
    %52 = arith.addf %46, %51 : vector<16x16x32xf32>
    %53 = vector.extract_strided_slice %8 {offsets = [2, 1, 0], sizes = [16, 16, 32], strides = [1, 1, 1]} : vector<18x18x32xf32> to vector<16x16x32xf32>
    %54 = vector.extract_strided_slice %9 {offsets = [7, 0], sizes = [1, 32], strides = [1, 1]} : vector<9x32xf32> to vector<1x32xf32>
    %55 = vector.shape_cast %54 : vector<1x32xf32> to vector<1x1x32xf32>
    %56 = vector.broadcast %55 : vector<1x1x32xf32> to vector<16x16x32xf32>
    %57 = arith.mulf %53, %56 : vector<16x16x32xf32>
    %58 = arith.addf %52, %57 : vector<16x16x32xf32>
    %59 = vector.extract_strided_slice %8 {offsets = [2, 2, 0], sizes = [16, 16, 32], strides = [1, 1, 1]} : vector<18x18x32xf32> to vector<16x16x32xf32>
    %60 = vector.extract_strided_slice %9 {offsets = [8, 0], sizes = [1, 32], strides = [1, 1]} : vector<9x32xf32> to vector<1x32xf32>
    %61 = vector.shape_cast %60 : vector<1x32xf32> to vector<1x1x32xf32>
    %62 = vector.broadcast %61 : vector<1x1x32xf32> to vector<16x16x32xf32>
    %63 = arith.mulf %59, %62 : vector<16x16x32xf32>
    %64 = arith.addf %58, %63 : vector<16x16x32xf32>
    %65 = vector.shape_cast %64 : vector<16x16x32xf32> to vector<8x2x16x32xf32>
    %66 = vector.extract_strided_slice %65 {offsets = [0, 0, 0, 0], sizes = [8, 1, 16, 32], strides = [1, 1, 1, 1]} : vector<8x2x16x32xf32> to vector<8x1x16x32xf32>
    %67 = vector.shape_cast %66 : vector<8x1x16x32xf32> to vector<8x16x32xf32>
    %68 = vector.shape_cast %67 : vector<8x16x32xf32> to vector<8x8x2x32xf32>
    %69 = vector.extract_strided_slice %68 {offsets = [0, 0, 0, 0], sizes = [8, 8, 1, 32], strides = [1, 1, 1, 1]} : vector<8x8x2x32xf32> to vector<8x8x1x32xf32>
    %70 = vector.shape_cast %69 : vector<8x8x1x32xf32> to vector<8x8x32xf32>
    %c0_6 = arith.constant 0 : index
    %c0_7 = arith.constant 0 : index
    %71 = vector.load %arg3[%c0_6, %c0_7] : memref<1x32xf32, #tpu.memory_space<vmem>>, vector<1x32xf32>
    %72 = vector.shape_cast %71 : vector<1x32xf32> to vector<1x1x32xf32>
    %73 = vector.broadcast %72 : vector<1x1x32xf32> to vector<8x8x32xf32>
    %74 = arith.addf %70, %73 : vector<8x8x32xf32>
    %cst_8 = arith.constant 0.000000e+00 : f32
    %75 = vector.broadcast %cst_8 : f32 to vector<8x8x32xf32>
    %76 = arith.maximumf %74, %75 : vector<8x8x32xf32>
    %cst_9 = arith.constant 0.000000e+00 : f32
    %77 = vector.broadcast %cst_9 : f32 to vector<1x8x32xf32>
    %cst_10 = arith.constant 0.000000e+00 : f32
    %78 = vector.broadcast %cst_10 : f32 to vector<10x1x32xf32>
    %79 = tpu.concatenate %77, %76, %77 in 0 : vector<1x8x32xf32>, vector<8x8x32xf32>, vector<1x8x32xf32> -> vector<10x8x32xf32>
    %80 = tpu.concatenate %78, %79, %78 in 1 : vector<10x1x32xf32>, vector<10x8x32xf32>, vector<10x1x32xf32> -> vector<10x10x32xf32>
    %cst_11 = arith.constant 0.000000e+00 : f32
    %81 = vector.broadcast %cst_11 : f32 to vector<16x64xf32>
    %82 = vector.extract_strided_slice %80 {offsets = [0, 0, 0], sizes = [8, 8, 32], strides = [1, 1, 1]} : vector<10x10x32xf32> to vector<8x8x32xf32>
    %83 = vector.shape_cast %82 : vector<8x8x32xf32> to vector<4x2x8x32xf32>
    %84 = vector.extract_strided_slice %83 {offsets = [0, 0, 0, 0], sizes = [4, 1, 8, 32], strides = [1, 1, 1, 1]} : vector<4x2x8x32xf32> to vector<4x1x8x32xf32>
    %85 = vector.shape_cast %84 : vector<4x1x8x32xf32> to vector<4x8x32xf32>
    %86 = vector.shape_cast %85 : vector<4x8x32xf32> to vector<4x4x2x32xf32>
    %87 = vector.extract_strided_slice %86 {offsets = [0, 0, 0, 0], sizes = [4, 4, 1, 32], strides = [1, 1, 1, 1]} : vector<4x4x2x32xf32> to vector<4x4x1x32xf32>
    %88 = vector.shape_cast %87 : vector<4x4x1x32xf32> to vector<4x4x32xf32>
    %89 = vector.shape_cast %88 : vector<4x4x32xf32> to vector<16x32xf32>
    %c0_12 = arith.constant 0 : index
    %c0_13 = arith.constant 0 : index
    %c0_14 = arith.constant 0 : index
    %90 = vector.load %arg4[%c0_12, %c0_13, %c0_14] : memref<9x32x64xf32, #tpu.memory_space<vmem>>, vector<1x32x64xf32>
    %91 = vector.shape_cast %90 : vector<1x32x64xf32> to vector<32x64xf32>
    %cst_15 = arith.constant dense<0.000000e+00> : vector<16x64xf32>
    %92 = tpu.matmul %89, %91, %cst_15 {dimension_numbers = #tpu.dot_dimension_numbers<[1], [0], [0], [1], [0, 0, 1, 1], [], []>} : vector<16x32xf32>, vector<32x64xf32>, vector<16x64xf32> -> vector<16x64xf32>
    %93 = arith.addf %81, %92 : vector<16x64xf32>
    %94 = vector.extract_strided_slice %80 {offsets = [0, 1, 0], sizes = [8, 8, 32], strides = [1, 1, 1]} : vector<10x10x32xf32> to vector<8x8x32xf32>
    %95 = vector.shape_cast %94 : vector<8x8x32xf32> to vector<4x2x8x32xf32>
    %96 = vector.extract_strided_slice %95 {offsets = [0, 0, 0, 0], sizes = [4, 1, 8, 32], strides = [1, 1, 1, 1]} : vector<4x2x8x32xf32> to vector<4x1x8x32xf32>
    %97 = vector.shape_cast %96 : vector<4x1x8x32xf32> to vector<4x8x32xf32>
    %98 = vector.shape_cast %97 : vector<4x8x32xf32> to vector<4x4x2x32xf32>
    %99 = vector.extract_strided_slice %98 {offsets = [0, 0, 0, 0], sizes = [4, 4, 1, 32], strides = [1, 1, 1, 1]} : vector<4x4x2x32xf32> to vector<4x4x1x32xf32>
    %100 = vector.shape_cast %99 : vector<4x4x1x32xf32> to vector<4x4x32xf32>
    %101 = vector.shape_cast %100 : vector<4x4x32xf32> to vector<16x32xf32>
    %c1 = arith.constant 1 : index
    %c0_16 = arith.constant 0 : index
    %c0_17 = arith.constant 0 : index
    %102 = vector.load %arg4[%c1, %c0_16, %c0_17] : memref<9x32x64xf32, #tpu.memory_space<vmem>>, vector<1x32x64xf32>
    %103 = vector.shape_cast %102 : vector<1x32x64xf32> to vector<32x64xf32>
    %cst_18 = arith.constant dense<0.000000e+00> : vector<16x64xf32>
    %104 = tpu.matmul %101, %103, %cst_18 {dimension_numbers = #tpu.dot_dimension_numbers<[1], [0], [0], [1], [0, 0, 1, 1], [], []>} : vector<16x32xf32>, vector<32x64xf32>, vector<16x64xf32> -> vector<16x64xf32>
    %105 = arith.addf %93, %104 : vector<16x64xf32>
    %106 = vector.extract_strided_slice %80 {offsets = [0, 2, 0], sizes = [8, 8, 32], strides = [1, 1, 1]} : vector<10x10x32xf32> to vector<8x8x32xf32>
    %107 = vector.shape_cast %106 : vector<8x8x32xf32> to vector<4x2x8x32xf32>
    %108 = vector.extract_strided_slice %107 {offsets = [0, 0, 0, 0], sizes = [4, 1, 8, 32], strides = [1, 1, 1, 1]} : vector<4x2x8x32xf32> to vector<4x1x8x32xf32>
    %109 = vector.shape_cast %108 : vector<4x1x8x32xf32> to vector<4x8x32xf32>
    %110 = vector.shape_cast %109 : vector<4x8x32xf32> to vector<4x4x2x32xf32>
    %111 = vector.extract_strided_slice %110 {offsets = [0, 0, 0, 0], sizes = [4, 4, 1, 32], strides = [1, 1, 1, 1]} : vector<4x4x2x32xf32> to vector<4x4x1x32xf32>
    %112 = vector.shape_cast %111 : vector<4x4x1x32xf32> to vector<4x4x32xf32>
    %113 = vector.shape_cast %112 : vector<4x4x32xf32> to vector<16x32xf32>
    %c2 = arith.constant 2 : index
    %c0_19 = arith.constant 0 : index
    %c0_20 = arith.constant 0 : index
    %114 = vector.load %arg4[%c2, %c0_19, %c0_20] : memref<9x32x64xf32, #tpu.memory_space<vmem>>, vector<1x32x64xf32>
    %115 = vector.shape_cast %114 : vector<1x32x64xf32> to vector<32x64xf32>
    %cst_21 = arith.constant dense<0.000000e+00> : vector<16x64xf32>
    %116 = tpu.matmul %113, %115, %cst_21 {dimension_numbers = #tpu.dot_dimension_numbers<[1], [0], [0], [1], [0, 0, 1, 1], [], []>} : vector<16x32xf32>, vector<32x64xf32>, vector<16x64xf32> -> vector<16x64xf32>
    %117 = arith.addf %105, %116 : vector<16x64xf32>
    %118 = vector.extract_strided_slice %80 {offsets = [1, 0, 0], sizes = [8, 8, 32], strides = [1, 1, 1]} : vector<10x10x32xf32> to vector<8x8x32xf32>
    %119 = vector.shape_cast %118 : vector<8x8x32xf32> to vector<4x2x8x32xf32>
    %120 = vector.extract_strided_slice %119 {offsets = [0, 0, 0, 0], sizes = [4, 1, 8, 32], strides = [1, 1, 1, 1]} : vector<4x2x8x32xf32> to vector<4x1x8x32xf32>
    %121 = vector.shape_cast %120 : vector<4x1x8x32xf32> to vector<4x8x32xf32>
    %122 = vector.shape_cast %121 : vector<4x8x32xf32> to vector<4x4x2x32xf32>
    %123 = vector.extract_strided_slice %122 {offsets = [0, 0, 0, 0], sizes = [4, 4, 1, 32], strides = [1, 1, 1, 1]} : vector<4x4x2x32xf32> to vector<4x4x1x32xf32>
    %124 = vector.shape_cast %123 : vector<4x4x1x32xf32> to vector<4x4x32xf32>
    %125 = vector.shape_cast %124 : vector<4x4x32xf32> to vector<16x32xf32>
    %c3 = arith.constant 3 : index
    %c0_22 = arith.constant 0 : index
    %c0_23 = arith.constant 0 : index
    %126 = vector.load %arg4[%c3, %c0_22, %c0_23] : memref<9x32x64xf32, #tpu.memory_space<vmem>>, vector<1x32x64xf32>
    %127 = vector.shape_cast %126 : vector<1x32x64xf32> to vector<32x64xf32>
    %cst_24 = arith.constant dense<0.000000e+00> : vector<16x64xf32>
    %128 = tpu.matmul %125, %127, %cst_24 {dimension_numbers = #tpu.dot_dimension_numbers<[1], [0], [0], [1], [0, 0, 1, 1], [], []>} : vector<16x32xf32>, vector<32x64xf32>, vector<16x64xf32> -> vector<16x64xf32>
    %129 = arith.addf %117, %128 : vector<16x64xf32>
    %130 = vector.extract_strided_slice %80 {offsets = [1, 1, 0], sizes = [8, 8, 32], strides = [1, 1, 1]} : vector<10x10x32xf32> to vector<8x8x32xf32>
    %131 = vector.shape_cast %130 : vector<8x8x32xf32> to vector<4x2x8x32xf32>
    %132 = vector.extract_strided_slice %131 {offsets = [0, 0, 0, 0], sizes = [4, 1, 8, 32], strides = [1, 1, 1, 1]} : vector<4x2x8x32xf32> to vector<4x1x8x32xf32>
    %133 = vector.shape_cast %132 : vector<4x1x8x32xf32> to vector<4x8x32xf32>
    %134 = vector.shape_cast %133 : vector<4x8x32xf32> to vector<4x4x2x32xf32>
    %135 = vector.extract_strided_slice %134 {offsets = [0, 0, 0, 0], sizes = [4, 4, 1, 32], strides = [1, 1, 1, 1]} : vector<4x4x2x32xf32> to vector<4x4x1x32xf32>
    %136 = vector.shape_cast %135 : vector<4x4x1x32xf32> to vector<4x4x32xf32>
    %137 = vector.shape_cast %136 : vector<4x4x32xf32> to vector<16x32xf32>
    %c4 = arith.constant 4 : index
    %c0_25 = arith.constant 0 : index
    %c0_26 = arith.constant 0 : index
    %138 = vector.load %arg4[%c4, %c0_25, %c0_26] : memref<9x32x64xf32, #tpu.memory_space<vmem>>, vector<1x32x64xf32>
    %139 = vector.shape_cast %138 : vector<1x32x64xf32> to vector<32x64xf32>
    %cst_27 = arith.constant dense<0.000000e+00> : vector<16x64xf32>
    %140 = tpu.matmul %137, %139, %cst_27 {dimension_numbers = #tpu.dot_dimension_numbers<[1], [0], [0], [1], [0, 0, 1, 1], [], []>} : vector<16x32xf32>, vector<32x64xf32>, vector<16x64xf32> -> vector<16x64xf32>
    %141 = arith.addf %129, %140 : vector<16x64xf32>
    %142 = vector.extract_strided_slice %80 {offsets = [1, 2, 0], sizes = [8, 8, 32], strides = [1, 1, 1]} : vector<10x10x32xf32> to vector<8x8x32xf32>
    %143 = vector.shape_cast %142 : vector<8x8x32xf32> to vector<4x2x8x32xf32>
    %144 = vector.extract_strided_slice %143 {offsets = [0, 0, 0, 0], sizes = [4, 1, 8, 32], strides = [1, 1, 1, 1]} : vector<4x2x8x32xf32> to vector<4x1x8x32xf32>
    %145 = vector.shape_cast %144 : vector<4x1x8x32xf32> to vector<4x8x32xf32>
    %146 = vector.shape_cast %145 : vector<4x8x32xf32> to vector<4x4x2x32xf32>
    %147 = vector.extract_strided_slice %146 {offsets = [0, 0, 0, 0], sizes = [4, 4, 1, 32], strides = [1, 1, 1, 1]} : vector<4x4x2x32xf32> to vector<4x4x1x32xf32>
    %148 = vector.shape_cast %147 : vector<4x4x1x32xf32> to vector<4x4x32xf32>
    %149 = vector.shape_cast %148 : vector<4x4x32xf32> to vector<16x32xf32>
    %c5 = arith.constant 5 : index
    %c0_28 = arith.constant 0 : index
    %c0_29 = arith.constant 0 : index
    %150 = vector.load %arg4[%c5, %c0_28, %c0_29] : memref<9x32x64xf32, #tpu.memory_space<vmem>>, vector<1x32x64xf32>
    %151 = vector.shape_cast %150 : vector<1x32x64xf32> to vector<32x64xf32>
    %cst_30 = arith.constant dense<0.000000e+00> : vector<16x64xf32>
    %152 = tpu.matmul %149, %151, %cst_30 {dimension_numbers = #tpu.dot_dimension_numbers<[1], [0], [0], [1], [0, 0, 1, 1], [], []>} : vector<16x32xf32>, vector<32x64xf32>, vector<16x64xf32> -> vector<16x64xf32>
    %153 = arith.addf %141, %152 : vector<16x64xf32>
    %154 = vector.extract_strided_slice %80 {offsets = [2, 0, 0], sizes = [8, 8, 32], strides = [1, 1, 1]} : vector<10x10x32xf32> to vector<8x8x32xf32>
    %155 = vector.shape_cast %154 : vector<8x8x32xf32> to vector<4x2x8x32xf32>
    %156 = vector.extract_strided_slice %155 {offsets = [0, 0, 0, 0], sizes = [4, 1, 8, 32], strides = [1, 1, 1, 1]} : vector<4x2x8x32xf32> to vector<4x1x8x32xf32>
    %157 = vector.shape_cast %156 : vector<4x1x8x32xf32> to vector<4x8x32xf32>
    %158 = vector.shape_cast %157 : vector<4x8x32xf32> to vector<4x4x2x32xf32>
    %159 = vector.extract_strided_slice %158 {offsets = [0, 0, 0, 0], sizes = [4, 4, 1, 32], strides = [1, 1, 1, 1]} : vector<4x4x2x32xf32> to vector<4x4x1x32xf32>
    %160 = vector.shape_cast %159 : vector<4x4x1x32xf32> to vector<4x4x32xf32>
    %161 = vector.shape_cast %160 : vector<4x4x32xf32> to vector<16x32xf32>
    %c6 = arith.constant 6 : index
    %c0_31 = arith.constant 0 : index
    %c0_32 = arith.constant 0 : index
    %162 = vector.load %arg4[%c6, %c0_31, %c0_32] : memref<9x32x64xf32, #tpu.memory_space<vmem>>, vector<1x32x64xf32>
    %163 = vector.shape_cast %162 : vector<1x32x64xf32> to vector<32x64xf32>
    %cst_33 = arith.constant dense<0.000000e+00> : vector<16x64xf32>
    %164 = tpu.matmul %161, %163, %cst_33 {dimension_numbers = #tpu.dot_dimension_numbers<[1], [0], [0], [1], [0, 0, 1, 1], [], []>} : vector<16x32xf32>, vector<32x64xf32>, vector<16x64xf32> -> vector<16x64xf32>
    %165 = arith.addf %153, %164 : vector<16x64xf32>
    %166 = vector.extract_strided_slice %80 {offsets = [2, 1, 0], sizes = [8, 8, 32], strides = [1, 1, 1]} : vector<10x10x32xf32> to vector<8x8x32xf32>
    %167 = vector.shape_cast %166 : vector<8x8x32xf32> to vector<4x2x8x32xf32>
    %168 = vector.extract_strided_slice %167 {offsets = [0, 0, 0, 0], sizes = [4, 1, 8, 32], strides = [1, 1, 1, 1]} : vector<4x2x8x32xf32> to vector<4x1x8x32xf32>
    %169 = vector.shape_cast %168 : vector<4x1x8x32xf32> to vector<4x8x32xf32>
    %170 = vector.shape_cast %169 : vector<4x8x32xf32> to vector<4x4x2x32xf32>
    %171 = vector.extract_strided_slice %170 {offsets = [0, 0, 0, 0], sizes = [4, 4, 1, 32], strides = [1, 1, 1, 1]} : vector<4x4x2x32xf32> to vector<4x4x1x32xf32>
    %172 = vector.shape_cast %171 : vector<4x4x1x32xf32> to vector<4x4x32xf32>
    %173 = vector.shape_cast %172 : vector<4x4x32xf32> to vector<16x32xf32>
    %c7 = arith.constant 7 : index
    %c0_34 = arith.constant 0 : index
    %c0_35 = arith.constant 0 : index
    %174 = vector.load %arg4[%c7, %c0_34, %c0_35] : memref<9x32x64xf32, #tpu.memory_space<vmem>>, vector<1x32x64xf32>
    %175 = vector.shape_cast %174 : vector<1x32x64xf32> to vector<32x64xf32>
    %cst_36 = arith.constant dense<0.000000e+00> : vector<16x64xf32>
    %176 = tpu.matmul %173, %175, %cst_36 {dimension_numbers = #tpu.dot_dimension_numbers<[1], [0], [0], [1], [0, 0, 1, 1], [], []>} : vector<16x32xf32>, vector<32x64xf32>, vector<16x64xf32> -> vector<16x64xf32>
    %177 = arith.addf %165, %176 : vector<16x64xf32>
    %178 = vector.extract_strided_slice %80 {offsets = [2, 2, 0], sizes = [8, 8, 32], strides = [1, 1, 1]} : vector<10x10x32xf32> to vector<8x8x32xf32>
    %179 = vector.shape_cast %178 : vector<8x8x32xf32> to vector<4x2x8x32xf32>
    %180 = vector.extract_strided_slice %179 {offsets = [0, 0, 0, 0], sizes = [4, 1, 8, 32], strides = [1, 1, 1, 1]} : vector<4x2x8x32xf32> to vector<4x1x8x32xf32>
    %181 = vector.shape_cast %180 : vector<4x1x8x32xf32> to vector<4x8x32xf32>
    %182 = vector.shape_cast %181 : vector<4x8x32xf32> to vector<4x4x2x32xf32>
    %183 = vector.extract_strided_slice %182 {offsets = [0, 0, 0, 0], sizes = [4, 4, 1, 32], strides = [1, 1, 1, 1]} : vector<4x4x2x32xf32> to vector<4x4x1x32xf32>
    %184 = vector.shape_cast %183 : vector<4x4x1x32xf32> to vector<4x4x32xf32>
    %185 = vector.shape_cast %184 : vector<4x4x32xf32> to vector<16x32xf32>
    %c8 = arith.constant 8 : index
    %c0_37 = arith.constant 0 : index
    %c0_38 = arith.constant 0 : index
    %186 = vector.load %arg4[%c8, %c0_37, %c0_38] : memref<9x32x64xf32, #tpu.memory_space<vmem>>, vector<1x32x64xf32>
    %187 = vector.shape_cast %186 : vector<1x32x64xf32> to vector<32x64xf32>
    %cst_39 = arith.constant dense<0.000000e+00> : vector<16x64xf32>
    %188 = tpu.matmul %185, %187, %cst_39 {dimension_numbers = #tpu.dot_dimension_numbers<[1], [0], [0], [1], [0, 0, 1, 1], [], []>} : vector<16x32xf32>, vector<32x64xf32>, vector<16x64xf32> -> vector<16x64xf32>
    %189 = arith.addf %177, %188 : vector<16x64xf32>
    %c0_40 = arith.constant 0 : index
    %c0_41 = arith.constant 0 : index
    %190 = vector.load %arg5[%c0_40, %c0_41] : memref<1x64xf32, #tpu.memory_space<vmem>>, vector<1x64xf32>
    %191 = vector.broadcast %190 : vector<1x64xf32> to vector<16x64xf32>
    %192 = arith.addf %189, %191 : vector<16x64xf32>
    %cst_42 = arith.constant 0.000000e+00 : f32
    %193 = vector.broadcast %cst_42 : f32 to vector<16x64xf32>
    %194 = arith.maximumf %192, %193 : vector<16x64xf32>
    %195 = vector.shape_cast %194 : vector<16x64xf32> to vector<4x4x64xf32>
    %cst_43 = arith.constant 0.000000e+00 : f32
    %196 = vector.broadcast %cst_43 : f32 to vector<1x4x64xf32>
    %cst_44 = arith.constant 0.000000e+00 : f32
    %197 = vector.broadcast %cst_44 : f32 to vector<6x1x64xf32>
    %198 = tpu.concatenate %196, %195, %196 in 0 : vector<1x4x64xf32>, vector<4x4x64xf32>, vector<1x4x64xf32> -> vector<6x4x64xf32>
    %199 = tpu.concatenate %197, %198, %197 in 1 : vector<6x1x64xf32>, vector<6x4x64xf32>, vector<6x1x64xf32> -> vector<6x6x64xf32>
    %cst_45 = arith.constant 0.000000e+00 : f32
    %200 = vector.broadcast %cst_45 : f32 to vector<16x128xf32>
    %201 = vector.extract_strided_slice %199 {offsets = [0, 0, 0], sizes = [4, 4, 64], strides = [1, 1, 1]} : vector<6x6x64xf32> to vector<4x4x64xf32>
    %202 = vector.shape_cast %201 : vector<4x4x64xf32> to vector<16x64xf32>
    %c0_46 = arith.constant 0 : index
    %c0_47 = arith.constant 0 : index
    %c0_48 = arith.constant 0 : index
    %203 = vector.load %arg6[%c0_46, %c0_47, %c0_48] : memref<9x64x128xf32, #tpu.memory_space<vmem>>, vector<1x64x128xf32>
    %204 = vector.shape_cast %203 : vector<1x64x128xf32> to vector<64x128xf32>
    %cst_49 = arith.constant dense<0.000000e+00> : vector<16x128xf32>
    %205 = tpu.matmul %202, %204, %cst_49 {dimension_numbers = #tpu.dot_dimension_numbers<[1], [0], [0], [1], [0, 0, 1, 1], [], []>} : vector<16x64xf32>, vector<64x128xf32>, vector<16x128xf32> -> vector<16x128xf32>
    %206 = arith.addf %200, %205 : vector<16x128xf32>
    %207 = vector.extract_strided_slice %199 {offsets = [0, 1, 0], sizes = [4, 4, 64], strides = [1, 1, 1]} : vector<6x6x64xf32> to vector<4x4x64xf32>
    %208 = vector.shape_cast %207 : vector<4x4x64xf32> to vector<16x64xf32>
    %c1_50 = arith.constant 1 : index
    %c0_51 = arith.constant 0 : index
    %c0_52 = arith.constant 0 : index
    %209 = vector.load %arg6[%c1_50, %c0_51, %c0_52] : memref<9x64x128xf32, #tpu.memory_space<vmem>>, vector<1x64x128xf32>
    %210 = vector.shape_cast %209 : vector<1x64x128xf32> to vector<64x128xf32>
    %cst_53 = arith.constant dense<0.000000e+00> : vector<16x128xf32>
    %211 = tpu.matmul %208, %210, %cst_53 {dimension_numbers = #tpu.dot_dimension_numbers<[1], [0], [0], [1], [0, 0, 1, 1], [], []>} : vector<16x64xf32>, vector<64x128xf32>, vector<16x128xf32> -> vector<16x128xf32>
    %212 = arith.addf %206, %211 : vector<16x128xf32>
    %213 = vector.extract_strided_slice %199 {offsets = [0, 2, 0], sizes = [4, 4, 64], strides = [1, 1, 1]} : vector<6x6x64xf32> to vector<4x4x64xf32>
    %214 = vector.shape_cast %213 : vector<4x4x64xf32> to vector<16x64xf32>
    %c2_54 = arith.constant 2 : index
    %c0_55 = arith.constant 0 : index
    %c0_56 = arith.constant 0 : index
    %215 = vector.load %arg6[%c2_54, %c0_55, %c0_56] : memref<9x64x128xf32, #tpu.memory_space<vmem>>, vector<1x64x128xf32>
    %216 = vector.shape_cast %215 : vector<1x64x128xf32> to vector<64x128xf32>
    %cst_57 = arith.constant dense<0.000000e+00> : vector<16x128xf32>
    %217 = tpu.matmul %214, %216, %cst_57 {dimension_numbers = #tpu.dot_dimension_numbers<[1], [0], [0], [1], [0, 0, 1, 1], [], []>} : vector<16x64xf32>, vector<64x128xf32>, vector<16x128xf32> -> vector<16x128xf32>
    %218 = arith.addf %212, %217 : vector<16x128xf32>
    %219 = vector.extract_strided_slice %199 {offsets = [1, 0, 0], sizes = [4, 4, 64], strides = [1, 1, 1]} : vector<6x6x64xf32> to vector<4x4x64xf32>
    %220 = vector.shape_cast %219 : vector<4x4x64xf32> to vector<16x64xf32>
    %c3_58 = arith.constant 3 : index
    %c0_59 = arith.constant 0 : index
    %c0_60 = arith.constant 0 : index
    %221 = vector.load %arg6[%c3_58, %c0_59, %c0_60] : memref<9x64x128xf32, #tpu.memory_space<vmem>>, vector<1x64x128xf32>
    %222 = vector.shape_cast %221 : vector<1x64x128xf32> to vector<64x128xf32>
    %cst_61 = arith.constant dense<0.000000e+00> : vector<16x128xf32>
    %223 = tpu.matmul %220, %222, %cst_61 {dimension_numbers = #tpu.dot_dimension_numbers<[1], [0], [0], [1], [0, 0, 1, 1], [], []>} : vector<16x64xf32>, vector<64x128xf32>, vector<16x128xf32> -> vector<16x128xf32>
    %224 = arith.addf %218, %223 : vector<16x128xf32>
    %225 = vector.extract_strided_slice %199 {offsets = [1, 1, 0], sizes = [4, 4, 64], strides = [1, 1, 1]} : vector<6x6x64xf32> to vector<4x4x64xf32>
    %226 = vector.shape_cast %225 : vector<4x4x64xf32> to vector<16x64xf32>
    %c4_62 = arith.constant 4 : index
    %c0_63 = arith.constant 0 : index
    %c0_64 = arith.constant 0 : index
    %227 = vector.load %arg6[%c4_62, %c0_63, %c0_64] : memref<9x64x128xf32, #tpu.memory_space<vmem>>, vector<1x64x128xf32>
    %228 = vector.shape_cast %227 : vector<1x64x128xf32> to vector<64x128xf32>
    %cst_65 = arith.constant dense<0.000000e+00> : vector<16x128xf32>
    %229 = tpu.matmul %226, %228, %cst_65 {dimension_numbers = #tpu.dot_dimension_numbers<[1], [0], [0], [1], [0, 0, 1, 1], [], []>} : vector<16x64xf32>, vector<64x128xf32>, vector<16x128xf32> -> vector<16x128xf32>
    %230 = arith.addf %224, %229 : vector<16x128xf32>
    %231 = vector.extract_strided_slice %199 {offsets = [1, 2, 0], sizes = [4, 4, 64], strides = [1, 1, 1]} : vector<6x6x64xf32> to vector<4x4x64xf32>
    %232 = vector.shape_cast %231 : vector<4x4x64xf32> to vector<16x64xf32>
    %c5_66 = arith.constant 5 : index
    %c0_67 = arith.constant 0 : index
    %c0_68 = arith.constant 0 : index
    %233 = vector.load %arg6[%c5_66, %c0_67, %c0_68] : memref<9x64x128xf32, #tpu.memory_space<vmem>>, vector<1x64x128xf32>
    %234 = vector.shape_cast %233 : vector<1x64x128xf32> to vector<64x128xf32>
    %cst_69 = arith.constant dense<0.000000e+00> : vector<16x128xf32>
    %235 = tpu.matmul %232, %234, %cst_69 {dimension_numbers = #tpu.dot_dimension_numbers<[1], [0], [0], [1], [0, 0, 1, 1], [], []>} : vector<16x64xf32>, vector<64x128xf32>, vector<16x128xf32> -> vector<16x128xf32>
    %236 = arith.addf %230, %235 : vector<16x128xf32>
    %237 = vector.extract_strided_slice %199 {offsets = [2, 0, 0], sizes = [4, 4, 64], strides = [1, 1, 1]} : vector<6x6x64xf32> to vector<4x4x64xf32>
    %238 = vector.shape_cast %237 : vector<4x4x64xf32> to vector<16x64xf32>
    %c6_70 = arith.constant 6 : index
    %c0_71 = arith.constant 0 : index
    %c0_72 = arith.constant 0 : index
    %239 = vector.load %arg6[%c6_70, %c0_71, %c0_72] : memref<9x64x128xf32, #tpu.memory_space<vmem>>, vector<1x64x128xf32>
    %240 = vector.shape_cast %239 : vector<1x64x128xf32> to vector<64x128xf32>
    %cst_73 = arith.constant dense<0.000000e+00> : vector<16x128xf32>
    %241 = tpu.matmul %238, %240, %cst_73 {dimension_numbers = #tpu.dot_dimension_numbers<[1], [0], [0], [1], [0, 0, 1, 1], [], []>} : vector<16x64xf32>, vector<64x128xf32>, vector<16x128xf32> -> vector<16x128xf32>
    %242 = arith.addf %236, %241 : vector<16x128xf32>
    %243 = vector.extract_strided_slice %199 {offsets = [2, 1, 0], sizes = [4, 4, 64], strides = [1, 1, 1]} : vector<6x6x64xf32> to vector<4x4x64xf32>
    %244 = vector.shape_cast %243 : vector<4x4x64xf32> to vector<16x64xf32>
    %c7_74 = arith.constant 7 : index
    %c0_75 = arith.constant 0 : index
    %c0_76 = arith.constant 0 : index
    %245 = vector.load %arg6[%c7_74, %c0_75, %c0_76] : memref<9x64x128xf32, #tpu.memory_space<vmem>>, vector<1x64x128xf32>
    %246 = vector.shape_cast %245 : vector<1x64x128xf32> to vector<64x128xf32>
    %cst_77 = arith.constant dense<0.000000e+00> : vector<16x128xf32>
    %247 = tpu.matmul %244, %246, %cst_77 {dimension_numbers = #tpu.dot_dimension_numbers<[1], [0], [0], [1], [0, 0, 1, 1], [], []>} : vector<16x64xf32>, vector<64x128xf32>, vector<16x128xf32> -> vector<16x128xf32>
    %248 = arith.addf %242, %247 : vector<16x128xf32>
    %249 = vector.extract_strided_slice %199 {offsets = [2, 2, 0], sizes = [4, 4, 64], strides = [1, 1, 1]} : vector<6x6x64xf32> to vector<4x4x64xf32>
    %250 = vector.shape_cast %249 : vector<4x4x64xf32> to vector<16x64xf32>
    %c8_78 = arith.constant 8 : index
    %c0_79 = arith.constant 0 : index
    %c0_80 = arith.constant 0 : index
    %251 = vector.load %arg6[%c8_78, %c0_79, %c0_80] : memref<9x64x128xf32, #tpu.memory_space<vmem>>, vector<1x64x128xf32>
    %252 = vector.shape_cast %251 : vector<1x64x128xf32> to vector<64x128xf32>
    %cst_81 = arith.constant dense<0.000000e+00> : vector<16x128xf32>
    %253 = tpu.matmul %250, %252, %cst_81 {dimension_numbers = #tpu.dot_dimension_numbers<[1], [0], [0], [1], [0, 0, 1, 1], [], []>} : vector<16x64xf32>, vector<64x128xf32>, vector<16x128xf32> -> vector<16x128xf32>
    %254 = arith.addf %248, %253 : vector<16x128xf32>
    %c0_82 = arith.constant 0 : index
    %c0_83 = arith.constant 0 : index
    %255 = vector.load %arg7[%c0_82, %c0_83] : memref<1x128xf32, #tpu.memory_space<vmem>>, vector<1x128xf32>
    %256 = vector.broadcast %255 : vector<1x128xf32> to vector<16x128xf32>
    %257 = arith.addf %254, %256 : vector<16x128xf32>
    %cst_84 = arith.constant 0.000000e+00 : f32
    %258 = vector.broadcast %cst_84 : f32 to vector<16x128xf32>
    %259 = arith.maximumf %257, %258 : vector<16x128xf32>
    %cst_85 = arith.constant 0.000000e+00 : f32
    %260 = vector.broadcast %cst_85 : f32 to vector<1x128xf32>
    %261 = vector.extract_strided_slice %259 {offsets = [0, 0], sizes = [1, 128], strides = [1, 1]} : vector<16x128xf32> to vector<1x128xf32>
    %c0_86 = arith.constant 0 : index
    %c0_87 = arith.constant 0 : index
    %c0_88 = arith.constant 0 : index
    %262 = vector.load %arg8[%c0_86, %c0_87, %c0_88] : memref<16x128x128xf32, #tpu.memory_space<vmem>>, vector<1x128x128xf32>
    %263 = vector.shape_cast %262 : vector<1x128x128xf32> to vector<128x128xf32>
    %cst_89 = arith.constant dense<0.000000e+00> : vector<1x128xf32>
    %264 = tpu.matmul %261, %263, %cst_89 {dimension_numbers = #tpu.dot_dimension_numbers<[1], [0], [0], [1], [0, 0, 1, 1], [], []>} : vector<1x128xf32>, vector<128x128xf32>, vector<1x128xf32> -> vector<1x128xf32>
    %265 = arith.addf %260, %264 : vector<1x128xf32>
    %266 = vector.extract_strided_slice %259 {offsets = [1, 0], sizes = [1, 128], strides = [1, 1]} : vector<16x128xf32> to vector<1x128xf32>
    %c1_90 = arith.constant 1 : index
    %c0_91 = arith.constant 0 : index
    %c0_92 = arith.constant 0 : index
    %267 = vector.load %arg8[%c1_90, %c0_91, %c0_92] : memref<16x128x128xf32, #tpu.memory_space<vmem>>, vector<1x128x128xf32>
    %268 = vector.shape_cast %267 : vector<1x128x128xf32> to vector<128x128xf32>
    %cst_93 = arith.constant dense<0.000000e+00> : vector<1x128xf32>
    %269 = tpu.matmul %266, %268, %cst_93 {dimension_numbers = #tpu.dot_dimension_numbers<[1], [0], [0], [1], [0, 0, 1, 1], [], []>} : vector<1x128xf32>, vector<128x128xf32>, vector<1x128xf32> -> vector<1x128xf32>
    %270 = arith.addf %265, %269 : vector<1x128xf32>
    %271 = vector.extract_strided_slice %259 {offsets = [2, 0], sizes = [1, 128], strides = [1, 1]} : vector<16x128xf32> to vector<1x128xf32>
    %c2_94 = arith.constant 2 : index
    %c0_95 = arith.constant 0 : index
    %c0_96 = arith.constant 0 : index
    %272 = vector.load %arg8[%c2_94, %c0_95, %c0_96] : memref<16x128x128xf32, #tpu.memory_space<vmem>>, vector<1x128x128xf32>
    %273 = vector.shape_cast %272 : vector<1x128x128xf32> to vector<128x128xf32>
    %cst_97 = arith.constant dense<0.000000e+00> : vector<1x128xf32>
    %274 = tpu.matmul %271, %273, %cst_97 {dimension_numbers = #tpu.dot_dimension_numbers<[1], [0], [0], [1], [0, 0, 1, 1], [], []>} : vector<1x128xf32>, vector<128x128xf32>, vector<1x128xf32> -> vector<1x128xf32>
    %275 = arith.addf %270, %274 : vector<1x128xf32>
    %276 = vector.extract_strided_slice %259 {offsets = [3, 0], sizes = [1, 128], strides = [1, 1]} : vector<16x128xf32> to vector<1x128xf32>
    %c3_98 = arith.constant 3 : index
    %c0_99 = arith.constant 0 : index
    %c0_100 = arith.constant 0 : index
    %277 = vector.load %arg8[%c3_98, %c0_99, %c0_100] : memref<16x128x128xf32, #tpu.memory_space<vmem>>, vector<1x128x128xf32>
    %278 = vector.shape_cast %277 : vector<1x128x128xf32> to vector<128x128xf32>
    %cst_101 = arith.constant dense<0.000000e+00> : vector<1x128xf32>
    %279 = tpu.matmul %276, %278, %cst_101 {dimension_numbers = #tpu.dot_dimension_numbers<[1], [0], [0], [1], [0, 0, 1, 1], [], []>} : vector<1x128xf32>, vector<128x128xf32>, vector<1x128xf32> -> vector<1x128xf32>
    %280 = arith.addf %275, %279 : vector<1x128xf32>
    %281 = vector.extract_strided_slice %259 {offsets = [4, 0], sizes = [1, 128], strides = [1, 1]} : vector<16x128xf32> to vector<1x128xf32>
    %c4_102 = arith.constant 4 : index
    %c0_103 = arith.constant 0 : index
    %c0_104 = arith.constant 0 : index
    %282 = vector.load %arg8[%c4_102, %c0_103, %c0_104] : memref<16x128x128xf32, #tpu.memory_space<vmem>>, vector<1x128x128xf32>
    %283 = vector.shape_cast %282 : vector<1x128x128xf32> to vector<128x128xf32>
    %cst_105 = arith.constant dense<0.000000e+00> : vector<1x128xf32>
    %284 = tpu.matmul %281, %283, %cst_105 {dimension_numbers = #tpu.dot_dimension_numbers<[1], [0], [0], [1], [0, 0, 1, 1], [], []>} : vector<1x128xf32>, vector<128x128xf32>, vector<1x128xf32> -> vector<1x128xf32>
    %285 = arith.addf %280, %284 : vector<1x128xf32>
    %286 = vector.extract_strided_slice %259 {offsets = [5, 0], sizes = [1, 128], strides = [1, 1]} : vector<16x128xf32> to vector<1x128xf32>
    %c5_106 = arith.constant 5 : index
    %c0_107 = arith.constant 0 : index
    %c0_108 = arith.constant 0 : index
    %287 = vector.load %arg8[%c5_106, %c0_107, %c0_108] : memref<16x128x128xf32, #tpu.memory_space<vmem>>, vector<1x128x128xf32>
    %288 = vector.shape_cast %287 : vector<1x128x128xf32> to vector<128x128xf32>
    %cst_109 = arith.constant dense<0.000000e+00> : vector<1x128xf32>
    %289 = tpu.matmul %286, %288, %cst_109 {dimension_numbers = #tpu.dot_dimension_numbers<[1], [0], [0], [1], [0, 0, 1, 1], [], []>} : vector<1x128xf32>, vector<128x128xf32>, vector<1x128xf32> -> vector<1x128xf32>
    %290 = arith.addf %285, %289 : vector<1x128xf32>
    %291 = vector.extract_strided_slice %259 {offsets = [6, 0], sizes = [1, 128], strides = [1, 1]} : vector<16x128xf32> to vector<1x128xf32>
    %c6_110 = arith.constant 6 : index
    %c0_111 = arith.constant 0 : index
    %c0_112 = arith.constant 0 : index
    %292 = vector.load %arg8[%c6_110, %c0_111, %c0_112] : memref<16x128x128xf32, #tpu.memory_space<vmem>>, vector<1x128x128xf32>
    %293 = vector.shape_cast %292 : vector<1x128x128xf32> to vector<128x128xf32>
    %cst_113 = arith.constant dense<0.000000e+00> : vector<1x128xf32>
    %294 = tpu.matmul %291, %293, %cst_113 {dimension_numbers = #tpu.dot_dimension_numbers<[1], [0], [0], [1], [0, 0, 1, 1], [], []>} : vector<1x128xf32>, vector<128x128xf32>, vector<1x128xf32> -> vector<1x128xf32>
    %295 = arith.addf %290, %294 : vector<1x128xf32>
    %296 = vector.extract_strided_slice %259 {offsets = [7, 0], sizes = [1, 128], strides = [1, 1]} : vector<16x128xf32> to vector<1x128xf32>
    %c7_114 = arith.constant 7 : index
    %c0_115 = arith.constant 0 : index
    %c0_116 = arith.constant 0 : index
    %297 = vector.load %arg8[%c7_114, %c0_115, %c0_116] : memref<16x128x128xf32, #tpu.memory_space<vmem>>, vector<1x128x128xf32>
    %298 = vector.shape_cast %297 : vector<1x128x128xf32> to vector<128x128xf32>
    %cst_117 = arith.constant dense<0.000000e+00> : vector<1x128xf32>
    %299 = tpu.matmul %296, %298, %cst_117 {dimension_numbers = #tpu.dot_dimension_numbers<[1], [0], [0], [1], [0, 0, 1, 1], [], []>} : vector<1x128xf32>, vector<128x128xf32>, vector<1x128xf32> -> vector<1x128xf32>
    %300 = arith.addf %295, %299 : vector<1x128xf32>
    %301 = vector.extract_strided_slice %259 {offsets = [8, 0], sizes = [1, 128], strides = [1, 1]} : vector<16x128xf32> to vector<1x128xf32>
    %c8_118 = arith.constant 8 : index
    %c0_119 = arith.constant 0 : index
    %c0_120 = arith.constant 0 : index
    %302 = vector.load %arg8[%c8_118, %c0_119, %c0_120] : memref<16x128x128xf32, #tpu.memory_space<vmem>>, vector<1x128x128xf32>
    %303 = vector.shape_cast %302 : vector<1x128x128xf32> to vector<128x128xf32>
    %cst_121 = arith.constant dense<0.000000e+00> : vector<1x128xf32>
    %304 = tpu.matmul %301, %303, %cst_121 {dimension_numbers = #tpu.dot_dimension_numbers<[1], [0], [0], [1], [0, 0, 1, 1], [], []>} : vector<1x128xf32>, vector<128x128xf32>, vector<1x128xf32> -> vector<1x128xf32>
    %305 = arith.addf %300, %304 : vector<1x128xf32>
    %306 = vector.extract_strided_slice %259 {offsets = [9, 0], sizes = [1, 128], strides = [1, 1]} : vector<16x128xf32> to vector<1x128xf32>
    %c9 = arith.constant 9 : index
    %c0_122 = arith.constant 0 : index
    %c0_123 = arith.constant 0 : index
    %307 = vector.load %arg8[%c9, %c0_122, %c0_123] : memref<16x128x128xf32, #tpu.memory_space<vmem>>, vector<1x128x128xf32>
    %308 = vector.shape_cast %307 : vector<1x128x128xf32> to vector<128x128xf32>
    %cst_124 = arith.constant dense<0.000000e+00> : vector<1x128xf32>
    %309 = tpu.matmul %306, %308, %cst_124 {dimension_numbers = #tpu.dot_dimension_numbers<[1], [0], [0], [1], [0, 0, 1, 1], [], []>} : vector<1x128xf32>, vector<128x128xf32>, vector<1x128xf32> -> vector<1x128xf32>
    %310 = arith.addf %305, %309 : vector<1x128xf32>
    %311 = vector.extract_strided_slice %259 {offsets = [10, 0], sizes = [1, 128], strides = [1, 1]} : vector<16x128xf32> to vector<1x128xf32>
    %c10 = arith.constant 10 : index
    %c0_125 = arith.constant 0 : index
    %c0_126 = arith.constant 0 : index
    %312 = vector.load %arg8[%c10, %c0_125, %c0_126] : memref<16x128x128xf32, #tpu.memory_space<vmem>>, vector<1x128x128xf32>
    %313 = vector.shape_cast %312 : vector<1x128x128xf32> to vector<128x128xf32>
    %cst_127 = arith.constant dense<0.000000e+00> : vector<1x128xf32>
    %314 = tpu.matmul %311, %313, %cst_127 {dimension_numbers = #tpu.dot_dimension_numbers<[1], [0], [0], [1], [0, 0, 1, 1], [], []>} : vector<1x128xf32>, vector<128x128xf32>, vector<1x128xf32> -> vector<1x128xf32>
    %315 = arith.addf %310, %314 : vector<1x128xf32>
    %316 = vector.extract_strided_slice %259 {offsets = [11, 0], sizes = [1, 128], strides = [1, 1]} : vector<16x128xf32> to vector<1x128xf32>
    %c11 = arith.constant 11 : index
    %c0_128 = arith.constant 0 : index
    %c0_129 = arith.constant 0 : index
    %317 = vector.load %arg8[%c11, %c0_128, %c0_129] : memref<16x128x128xf32, #tpu.memory_space<vmem>>, vector<1x128x128xf32>
    %318 = vector.shape_cast %317 : vector<1x128x128xf32> to vector<128x128xf32>
    %cst_130 = arith.constant dense<0.000000e+00> : vector<1x128xf32>
    %319 = tpu.matmul %316, %318, %cst_130 {dimension_numbers = #tpu.dot_dimension_numbers<[1], [0], [0], [1], [0, 0, 1, 1], [], []>} : vector<1x128xf32>, vector<128x128xf32>, vector<1x128xf32> -> vector<1x128xf32>
    %320 = arith.addf %315, %319 : vector<1x128xf32>
    %321 = vector.extract_strided_slice %259 {offsets = [12, 0], sizes = [1, 128], strides = [1, 1]} : vector<16x128xf32> to vector<1x128xf32>
    %c12 = arith.constant 12 : index
    %c0_131 = arith.constant 0 : index
    %c0_132 = arith.constant 0 : index
    %322 = vector.load %arg8[%c12, %c0_131, %c0_132] : memref<16x128x128xf32, #tpu.memory_space<vmem>>, vector<1x128x128xf32>
    %323 = vector.shape_cast %322 : vector<1x128x128xf32> to vector<128x128xf32>
    %cst_133 = arith.constant dense<0.000000e+00> : vector<1x128xf32>
    %324 = tpu.matmul %321, %323, %cst_133 {dimension_numbers = #tpu.dot_dimension_numbers<[1], [0], [0], [1], [0, 0, 1, 1], [], []>} : vector<1x128xf32>, vector<128x128xf32>, vector<1x128xf32> -> vector<1x128xf32>
    %325 = arith.addf %320, %324 : vector<1x128xf32>
    %326 = vector.extract_strided_slice %259 {offsets = [13, 0], sizes = [1, 128], strides = [1, 1]} : vector<16x128xf32> to vector<1x128xf32>
    %c13 = arith.constant 13 : index
    %c0_134 = arith.constant 0 : index
    %c0_135 = arith.constant 0 : index
    %327 = vector.load %arg8[%c13, %c0_134, %c0_135] : memref<16x128x128xf32, #tpu.memory_space<vmem>>, vector<1x128x128xf32>
    %328 = vector.shape_cast %327 : vector<1x128x128xf32> to vector<128x128xf32>
    %cst_136 = arith.constant dense<0.000000e+00> : vector<1x128xf32>
    %329 = tpu.matmul %326, %328, %cst_136 {dimension_numbers = #tpu.dot_dimension_numbers<[1], [0], [0], [1], [0, 0, 1, 1], [], []>} : vector<1x128xf32>, vector<128x128xf32>, vector<1x128xf32> -> vector<1x128xf32>
    %330 = arith.addf %325, %329 : vector<1x128xf32>
    %331 = vector.extract_strided_slice %259 {offsets = [14, 0], sizes = [1, 128], strides = [1, 1]} : vector<16x128xf32> to vector<1x128xf32>
    %c14 = arith.constant 14 : index
    %c0_137 = arith.constant 0 : index
    %c0_138 = arith.constant 0 : index
    %332 = vector.load %arg8[%c14, %c0_137, %c0_138] : memref<16x128x128xf32, #tpu.memory_space<vmem>>, vector<1x128x128xf32>
    %333 = vector.shape_cast %332 : vector<1x128x128xf32> to vector<128x128xf32>
    %cst_139 = arith.constant dense<0.000000e+00> : vector<1x128xf32>
    %334 = tpu.matmul %331, %333, %cst_139 {dimension_numbers = #tpu.dot_dimension_numbers<[1], [0], [0], [1], [0, 0, 1, 1], [], []>} : vector<1x128xf32>, vector<128x128xf32>, vector<1x128xf32> -> vector<1x128xf32>
    %335 = arith.addf %330, %334 : vector<1x128xf32>
    %336 = vector.extract_strided_slice %259 {offsets = [15, 0], sizes = [1, 128], strides = [1, 1]} : vector<16x128xf32> to vector<1x128xf32>
    %c15 = arith.constant 15 : index
    %c0_140 = arith.constant 0 : index
    %c0_141 = arith.constant 0 : index
    %337 = vector.load %arg8[%c15, %c0_140, %c0_141] : memref<16x128x128xf32, #tpu.memory_space<vmem>>, vector<1x128x128xf32>
    %338 = vector.shape_cast %337 : vector<1x128x128xf32> to vector<128x128xf32>
    %cst_142 = arith.constant dense<0.000000e+00> : vector<1x128xf32>
    %339 = tpu.matmul %336, %338, %cst_142 {dimension_numbers = #tpu.dot_dimension_numbers<[1], [0], [0], [1], [0, 0, 1, 1], [], []>} : vector<1x128xf32>, vector<128x128xf32>, vector<1x128xf32> -> vector<1x128xf32>
    %340 = arith.addf %335, %339 : vector<1x128xf32>
    %c0_143 = arith.constant 0 : index
    %c0_144 = arith.constant 0 : index
    %341 = vector.load %arg9[%c0_143, %c0_144] : memref<1x128xf32, #tpu.memory_space<vmem>>, vector<1x128xf32>
    %342 = arith.addf %340, %341 : vector<1x128xf32>
    %343 = vector.shape_cast %342 : vector<1x128xf32> to vector<1x1x128xf32>
    %c0_145 = arith.constant 0 : index
    %c0_146 = arith.constant 0 : index
    %c0_147 = arith.constant 0 : index
    %344 = vector.load %arg10[%c0_145, %c0_146, %c0_147] : memref<1x1x128xf32, #tpu.memory_space<vmem>>, vector<1x1x128xf32>
    tpu.vector_store %arg10[%c0_145, %c0_146, %c0_147], %343 {strides = array<i32>} : memref<1x1x128xf32, #tpu.memory_space<vmem>>, vector<1x1x128xf32>,
    return
  }
  func.func @transform_0(%arg0: i32) -> (i32, i32, i32) {
    %c0_i32 = arith.constant 0 : i32
    %c0_i32_0 = arith.constant 0 : i32
    %c0_i32_1 = arith.constant 0 : i32
    return %arg0, %c0_i32, %c0_i32_0 : i32, i32, i32
  }
  func.func @transform_1(%arg0: i32) -> (i32, i32) {
    %c0_i32 = arith.constant 0 : i32
    %c0_i32_0 = arith.constant 0 : i32
    %c0_i32_1 = arith.constant 0 : i32
    return %c0_i32, %c0_i32_0 : i32, i32
  }
  func.func @transform_2(%arg0: i32) -> (i32, i32) {
    %c0_i32 = arith.constant 0 : i32
    %c0_i32_0 = arith.constant 0 : i32
    %c0_i32_1 = arith.constant 0 : i32
    return %c0_i32, %c0_i32_0 : i32, i32
  }
  func.func @transform_3(%arg0: i32) -> (i32, i32, i32) {
    %c0_i32 = arith.constant 0 : i32
    %c0_i32_0 = arith.constant 0 : i32
    %c0_i32_1 = arith.constant 0 : i32
    %c0_i32_2 = arith.constant 0 : i32
    return %c0_i32, %c0_i32_0, %c0_i32_1 : i32, i32, i32
  }
  func.func @transform_4(%arg0: i32) -> (i32, i32) {
    %c0_i32 = arith.constant 0 : i32
    %c0_i32_0 = arith.constant 0 : i32
    %c0_i32_1 = arith.constant 0 : i32
    return %c0_i32, %c0_i32_0 : i32, i32
  }
  func.func @transform_5(%arg0: i32) -> (i32, i32, i32) {
    %c0_i32 = arith.constant 0 : i32
    %c0_i32_0 = arith.constant 0 : i32
    %c0_i32_1 = arith.constant 0 : i32
    %c0_i32_2 = arith.constant 0 : i32
    return %c0_i32, %c0_i32_0, %c0_i32_1 : i32, i32, i32
  }
  func.func @transform_6(%arg0: i32) -> (i32, i32) {
    %c0_i32 = arith.constant 0 : i32
    %c0_i32_0 = arith.constant 0 : i32
    %c0_i32_1 = arith.constant 0 : i32
    return %c0_i32, %c0_i32_0 : i32, i32
  }
  func.func @transform_7(%arg0: i32) -> (i32, i32, i32) {
    %c0_i32 = arith.constant 0 : i32
    %c0_i32_0 = arith.constant 0 : i32
    %c0_i32_1 = arith.constant 0 : i32
    %c0_i32_2 = arith.constant 0 : i32
    return %c0_i32, %c0_i32_0, %c0_i32_1 : i32, i32, i32
  }
  func.func @transform_8(%arg0: i32) -> (i32, i32) {
    %c0_i32 = arith.constant 0 : i32
    %c0_i32_0 = arith.constant 0 : i32
    %c0_i32_1 = arith.constant 0 : i32
    return %c0_i32, %c0_i32_0 : i32, i32
  }
  func.func @transform_9(%arg0: i32) -> (i32, i32, i32) {
    %c0_i32 = arith.constant 0 : i32
    %c0_i32_0 = arith.constant 0 : i32
    %c0_i32_1 = arith.constant 0 : i32
    return %arg0, %c0_i32, %c0_i32_0 : i32, i32, i32
  }
}

</mosaic_0001>

<llo_original>
// kernel: cnn_encoder_forward.1
$region0: #{cnn_encoder_forward.1}
  #allocation0 [shape = 'u32[]', space=smem, size = 0x4, offset = 0x4, fixed_abs, tag = 'smem constant byte address 0x4 - core index']
  #allocation1 [shape = 'u32[72,128]{1,0:T(1,128)}', space=vmem, size = 0x9000, scoped, tag = 'internal scratch']
  %s0 = inlined_call_operand.hbm [shape: f32[2,16,16], index: 0, kind: input, shape index: {}]
  %s1 = inlined_call_operand.hbm [shape: f32[9,32], index: 1, kind: input, shape index: {}]
  %s2 = inlined_call_operand.hbm [shape: f32[1,32], index: 2, kind: input, shape index: {}]
  %s3 = inlined_call_operand.hbm [shape: f32[9,32,64], index: 3, kind: input, shape index: {}]
  %s4 = inlined_call_operand.vmem [shape: f32[1,64], index: 4, kind: input, shape index: {}]
  %s5 = inlined_call_operand.hbm [shape: f32[9,64,128], index: 5, kind: input, shape index: {}]
  %s6 = inlined_call_operand.vmem [shape: f32[1,128], index: 6, kind: input, shape index: {}]
  %s7 = inlined_call_operand.hbm [shape: f32[16,128,128], index: 7, kind: input, shape index: {}]
  %s8 = inlined_call_operand.vmem [shape: f32[1,128], index: 8, kind: input, shape index: {}]
  %s9 = inlined_call_operand.vmem [shape: f32[2,1,128], index: 9, kind: output, shape index: {}]
  %s10 = sld [smem:[#allocation0]]
  $region93: #{cnn_encoder_forward.1} parent=0
    _
  %s12 = ssub.s32 1, %s10
  %s13 = scalar_select 0, %s12, %s10
  $region1: #{cnn_encoder_forward.1} parent=0
    #allocation2 [shape = 'u8[16384]{0}', space=vmem, size = 0x4000, scoped, tag = 'input window, operand 0']
    #allocation3 [shape = 's32[2]{0}', space=sflag, size = 0x8, scoped, tag = 'scoped memory for cnn_encoder_forward.1']
    #allocation4 [shape = 'u8[8192]{0}', space=vmem, size = 0x2000, scoped, tag = 'input window, operand 1, single buffered']
    #allocation5 [shape = 's32[1]{0}', space=sflag, size = 0x4, scoped, tag = 'scoped memory for cnn_encoder_forward.1']
    #allocation6 [shape = 'u8[512]{0}', space=vmem, size = 0x400, scoped, tag = 'input window, operand 2, single buffered']
    #allocation7 [shape = 'u8[147456]{0}', space=vmem, size = 0x24000, scoped, tag = 'input window, operand 3, single buffered']
    #allocation8 [shape = 's32[1]{0}', space=sflag, size = 0x4, scoped, tag = 'scoped memory for cnn_encoder_forward.1']
    #allocation9 [shape = 'u8[294912]{0}', space=vmem, size = 0x48000, scoped, tag = 'input window, operand 5, single buffered']
    #allocation10 [shape = 'u8[1048576]{0}', space=vmem, size = 0x100000, scoped, tag = 'input window, operand 7, single buffered']
    #allocation11 [shape = 's32[1]{0}', space=sflag, size = 0x4, scoped, tag = 'scoped memory for cnn_encoder_forward.1']
    %14 = vsyncpa [#allocation3], 0
    %s15 = scalar_lea.sflag [#allocation3], 1
    %16 = vsyncpa %s15, 0
    %17 = vsyncpa [#allocation5], 0
    %18 = vsyncpa [#allocation8], 0
    %19 = vsyncpa [#allocation11], 0
    loop: start=0, step=1, limit=4
    $region2: #{cnn_encoder_forward.1} parent=1 // loop_pre_header
      _
    $region3: #{cnn_encoder_forward.1} parent=1 // loop_header
      %s21 = sphi 0, %s25
      %p22 = scmp.ge.s32.totalorder %s21, 4
      %s31 = sphi 0, %s33
      %s34 = sphi 0, %s31
      %s35 = sphi 0, %s34
      %s51 = sphi 0, %s35
      %s55 = sphi 0, %s55
      %s57 = sphi 0, %s55
      %s58 = sphi 0, %s57
      %s72 = sphi 0, %s58
      %s76 = sphi 0, %s76
      %s78 = sphi 0, %s76
      %s79 = sphi 0, %s78
      %s93 = sphi 0, %s79
      %s97 = sphi 0, %s97
      %s99 = sphi 0, %s97
      %s100 = sphi 0, %s99
      %s114 = sphi 0, %s100
      %s118 = sphi 0, %s118
      %s120 = sphi 0, %s118
      %s121 = sphi 0, %s120
      %s135 = sphi 0, %s121
      %s139 = sphi 0, %s139
      %s141 = sphi 0, %s139
      %s142 = sphi 0, %s141
      %s156 = sphi 0, %s142
      %s160 = sphi 0, %s160
      %s162 = sphi 0, %s160
      %s163 = sphi 0, %s162
      %s177 = sphi 0, %s163
      %s181 = sphi 0, %s181
      %s183 = sphi 0, %s181
      %s184 = sphi 0, %s183
      %s198 = sphi 0, %s184
      %s202 = sphi 0, %s202
      %s204 = sphi 0, %s202
      %s205 = sphi 0, %s204
      %s219 = sphi 0, %s205
      %s225 = sphi 0, %s227
      %s228 = sphi 0, %s225
      %s229 = sphi 0, %s228
      %s245 = sphi 0, %s229
    $region4: #{cnn_encoder_forward.1} parent=1 // loop_header_branch
      %24 = sbr.rel (%p22) target = $region8
    $region5: #{cnn_encoder_forward.1} parent=1 // loop_body
      %s26 = ssub.s32 %s21, 1
      %s27 = ssub.s32 %s21, 2
      %s28 = sadd.s32 %s21, 1
      %s29 = ssub.s32 %s21, %s28
      %p30 = scmp.eq.s32.totalorder %s29, 0
      %s32 = sadd.s32 %s31, 1
      %s33 = scalar_select %p30, %s31, %s32
      %p36 = pneg %p30
      %p37 = scmp.eq.s32.totalorder %s21, 1
      %p38 = por %p36, %p37
      %p39 = scmp.ne.s32.totalorder %s31, %s34
      %p40 = scmp.eq.s32.totalorder %s21, 0
      %p41 = por %p39, %p40
      %p42 = scmp.ne.s32.totalorder %s31, %s34
      %p43 = scmp.eq.s32.totalorder %s26, 1
      %p44 = por %p42, %p43
      %p45 = scmp.ne.s32.totalorder %s34, %s35
      %p46 = scmp.eq.s32.totalorder %s26, 0
      %p47 = por %p45, %p46
      %p48 = scmp.ne.s32.totalorder %s34, %s35
      %p49 = scmp.eq.s32.totalorder %s27, 1
      %p50 = por %p48, %p49
      %p52 = scmp.ne.s32.totalorder %s35, %s51
      %p53 = scmp.eq.s32.totalorder %s27, 0
      %p54 = por %p52, %p53
      %s56 = sadd.s32 %s55, 1
      %p59 = scmp.eq.s32.totalorder %s21, 1
      %p60 = scmp.ne.s32.totalorder %s55, %s57
      %p61 = scmp.eq.s32.totalorder %s21, 0
      %p62 = por %p60, %p61
      %p63 = scmp.ne.s32.totalorder %s55, %s57
      %p64 = scmp.eq.s32.totalorder %s26, 1
      %p65 = por %p63, %p64
      %p66 = scmp.ne.s32.totalorder %s57, %s58
      %p67 = scmp.eq.s32.totalorder %s26, 0
      %p68 = por %p66, %p67
      %p69 = scmp.ne.s32.totalorder %s57, %s58
      %p70 = scmp.eq.s32.totalorder %s27, 1
      %p71 = por %p69, %p70
      %p73 = scmp.ne.s32.totalorder %s58, %s72
      %p74 = scmp.eq.s32.totalorder %s27, 0
      %p75 = por %p73, %p74
      %s77 = sadd.s32 %s76, 1
      %p80 = scmp.eq.s32.totalorder %s21, 1
      %p81 = scmp.ne.s32.totalorder %s76, %s78
      %p82 = scmp.eq.s32.totalorder %s21, 0
      %p83 = por %p81, %p82
      %p84 = scmp.ne.s32.totalorder %s76, %s78
      %p85 = scmp.eq.s32.totalorder %s26, 1
      %p86 = por %p84, %p85
      %p87 = scmp.ne.s32.totalorder %s78, %s79
      %p88 = scmp.eq.s32.totalorder %s26, 0
      %p89 = por %p87, %p88
      %p90 = scmp.ne.s32.totalorder %s78, %s79
      %p91 = scmp.eq.s32.totalorder %s27, 1
      %p92 = por %p90, %p91
      %p94 = scmp.ne.s32.totalorder %s79, %s93
      %p95 = scmp.eq.s32.totalorder %s27, 0
      %p96 = por %p94, %p95
      %s98 = sadd.s32 %s97, 1
      %p101 = scmp.eq.s32.totalorder %s21, 1
      %p102 = scmp.ne.s32.totalorder %s97, %s99
      %p103 = scmp.eq.s32.totalorder %s21, 0
      %p104 = por %p102, %p103
      %p105 = scmp.ne.s32.totalorder %s97, %s99
      %p106 = scmp.eq.s32.totalorder %s26, 1
      %p107 = por %p105, %p106
      %p108 = scmp.ne.s32.totalorder %s99, %s100
      %p109 = scmp.eq.s32.totalorder %s26, 0
      %p110 = por %p108, %p109
      %p111 = scmp.ne.s32.totalorder %s99, %s100
      %p112 = scmp.eq.s32.totalorder %s27, 1
      %p113 = por %p111, %p112
      %p115 = scmp.ne.s32.totalorder %s100, %s114
      %p116 = scmp.eq.s32.totalorder %s27, 0
      %p117 = por %p115, %p116
      %s119 = sadd.s32 %s118, 1
      %p122 = scmp.eq.s32.totalorder %s21, 1
      %p123 = scmp.ne.s32.totalorder %s118, %s120
      %p124 = scmp.eq.s32.totalorder %s21, 0
      %p125 = por %p123, %p124
      %p126 = scmp.ne.s32.totalorder %s118, %s120
      %p127 = scmp.eq.s32.totalorder %s26, 1
      %p128 = por %p126, %p127
      %p129 = scmp.ne.s32.totalorder %s120, %s121
      %p130 = scmp.eq.s32.totalorder %s26, 0
      %p131 = por %p129, %p130
      %p132 = scmp.ne.s32.totalorder %s120, %s121
      %p133 = scmp.eq.s32.totalorder %s27, 1
      %p134 = por %p132, %p133
      %p136 = scmp.ne.s32.totalorder %s121, %s135
      %p137 = scmp.eq.s32.totalorder %s27, 0
      %p138 = por %p136, %p137
      %s140 = sadd.s32 %s139, 1
      %p143 = scmp.eq.s32.totalorder %s21, 1
      %p144 = scmp.ne.s32.totalorder %s139, %s141
      %p145 = scmp.eq.s32.totalorder %s21, 0
      %p146 = por %p144, %p145
      %p147 = scmp.ne.s32.totalorder %s139, %s141
      %p148 = scmp.eq.s32.totalorder %s26, 1
      %p149 = por %p147, %p148
      %p150 = scmp.ne.s32.totalorder %s141, %s142
      %p151 = scmp.eq.s32.totalorder %s26, 0
      %p152 = por %p150, %p151
      %p153 = scmp.ne.s32.totalorder %s141, %s142
      %p154 = scmp.eq.s32.totalorder %s27, 1
      %p155 = por %p153, %p154
      %p157 = scmp.ne.s32.totalorder %s142, %s156
      %p158 = scmp.eq.s32.totalorder %s27, 0
      %p159 = por %p157, %p158
      %s161 = sadd.s32 %s160, 1
      %p164 = scmp.eq.s32.totalorder %s21, 1
      %p165 = scmp.ne.s32.totalorder %s160, %s162
      %p166 = scmp.eq.s32.totalorder %s21, 0
      %p167 = por %p165, %p166
      %p168 = scmp.ne.s32.totalorder %s160, %s162
      %p169 = scmp.eq.s32.totalorder %s26, 1
      %p170 = por %p168, %p169
      %p171 = scmp.ne.s32.totalorder %s162, %s163
      %p172 = scmp.eq.s32.totalorder %s26, 0
      %p173 = por %p171, %p172
      %p174 = scmp.ne.s32.totalorder %s162, %s163
      %p175 = scmp.eq.s32.totalorder %s27, 1
      %p176 = por %p174, %p175
      %p178 = scmp.ne.s32.totalorder %s163, %s177
      %p179 = scmp.eq.s32.totalorder %s27, 0
      %p180 = por %p178, %p179
      %s182 = sadd.s32 %s181, 1
      %p185 = scmp.eq.s32.totalorder %s21, 1
      %p186 = scmp.ne.s32.totalorder %s181, %s183
      %p187 = scmp.eq.s32.totalorder %s21, 0
      %p188 = por %p186, %p187
      %p189 = scmp.ne.s32.totalorder %s181, %s183
      %p190 = scmp.eq.s32.totalorder %s26, 1
      %p191 = por %p189, %p190
      %p192 = scmp.ne.s32.totalorder %s183, %s184
      %p193 = scmp.eq.s32.totalorder %s26, 0
      %p194 = por %p192, %p193
      %p195 = scmp.ne.s32.totalorder %s183, %s184
      %p196 = scmp.eq.s32.totalorder %s27, 1
      %p197 = por %p195, %p196
      %p199 = scmp.ne.s32.totalorder %s184, %s198
      %p200 = scmp.eq.s32.totalorder %s27, 0
      %p201 = por %p199, %p200
      %s203 = sadd.s32 %s202, 1
      %p206 = scmp.eq.s32.totalorder %s21, 1
      %p207 = scmp.ne.s32.totalorder %s202, %s204
      %p208 = scmp.eq.s32.totalorder %s21, 0
      %p209 = por %p207, %p208
      %p210 = scmp.ne.s32.totalorder %s202, %s204
      %p211 = scmp.eq.s32.totalorder %s26, 1
      %p212 = por %p210, %p211
      %p213 = scmp.ne.s32.totalorder %s204, %s205
      %p214 = scmp.eq.s32.totalorder %s26, 0
      %p215 = por %p213, %p214
      %p216 = scmp.ne.s32.totalorder %s204, %s205
      %p217 = scmp.eq.s32.totalorder %s27, 1
      %p218 = por %p216, %p217
      %p220 = scmp.ne.s32.totalorder %s205, %s219
      %p221 = scmp.eq.s32.totalorder %s27, 0
      %p222 = por %p220, %p221
      %s223 = ssub.s32 %s21, %s28
      %p224 = scmp.eq.s32.totalorder %s223, 0
      %s226 = sadd.s32 %s225, 1
      %s227 = scalar_select %p224, %s225, %s226
      %p230 = pneg %p224
      %p231 = scmp.eq.s32.totalorder %s21, 1
      %p232 = por %p230, %p231
      %p233 = scmp.ne.s32.totalorder %s225, %s228
      %p234 = scmp.eq.s32.totalorder %s21, 0
      %p235 = por %p233, %p234
      %p236 = scmp.ne.s32.totalorder %s225, %s228
      %p237 = scmp.eq.s32.totalorder %s26, 1
      %p238 = por %p236, %p237
      %p239 = scmp.ne.s32.totalorder %s228, %s229
      %p240 = scmp.eq.s32.totalorder %s26, 0
      %p241 = por %p239, %p240
      %p242 = scmp.ne.s32.totalorder %s228, %s229
      %p243 = scmp.eq.s32.totalorder %s27, 1
      %p244 = por %p242, %p243
      %p246 = scmp.ne.s32.totalorder %s229, %s245
      %p247 = scmp.eq.s32.totalorder %s27, 0
      %p248 = por %p246, %p247
      %p249 = scmp.le.s32.totalorder 1, %s21
      %p250 = scmp.lt.s32.totalorder %s21, 3
      %p251 = pnand %p249, %p250
      %p252 = pneg %p251
      // Predicated region
      $region9: #{cnn_encoder_forward.1} parent=5 // pred_check
        _
      $region10: #{cnn_encoder_forward.1} parent=5 // pred_check_branch
        %254 = sbr.rel (%p251) target = $region12
      $region11: #{cnn_encoder_forward.1} parent=5 // pred_region
        %s255 = ssub.s32 %s21, 1
        // Predicated region
        $region13: #{cnn_encoder_forward.1} parent=11 // pred_check
          %p256 = pneg %p68
        $region14: #{cnn_encoder_forward.1} parent=11 // pred_check_branch
          %258 = sbr.rel (%p256) target = $region16
        $region15: #{cnn_encoder_forward.1} parent=11 // pred_region
          %260 = vsyncadd [#allocation5], 0
          %s261 = sshll.u32 %s1, 4
          %s262 = int_to_ptr.hbm [resolvable:$true] %s261
          %s263 = sshll.u32 [#allocation4], 4
          %s264 = int_to_ptr.vmem [resolvable:$true] %s263
          %269 = dma.hbm_to_vmem [thread:$0]  %s262, 256, %s264, [#allocation5], 128, 128, 8
        $region16: #{cnn_encoder_forward.1} parent=11 // pred_fallthru
          _
        // Predicated region
        $region17: #{cnn_encoder_forward.1} parent=11 // pred_check
          %p270 = pneg %p89
        $region18: #{cnn_encoder_forward.1} parent=11 // pred_check_branch
          %272 = sbr.rel (%p270) target = $region20
        $region19: #{cnn_encoder_forward.1} parent=11 // pred_region
          %274 = vsyncadd [#allocation5], 0
          %s276 = sshll.u32 %s2, 4
          %s277 = int_to_ptr.hbm [resolvable:$true] %s276
          %s278 = sshll.u32 [#allocation6], 4
          %s279 = int_to_ptr.vmem [resolvable:$true] %s278
          %281 = dma.hbm_to_vmem [thread:$0]  %s277, 16, %s279, [#allocation5]
        $region20: #{cnn_encoder_forward.1} parent=11 // pred_fallthru
          _
        // Predicated region
        $region21: #{cnn_encoder_forward.1} parent=11 // pred_check
          %p282 = pneg %p110
        $region22: #{cnn_encoder_forward.1} parent=11 // pred_check_branch
          %284 = sbr.rel (%p282) target = $region24
        $region23: #{cnn_encoder_forward.1} parent=11 // pred_region
          %286 = vsyncadd [#allocation8], 0
          %s287 = sshll.u32 %s3, 4
          %s288 = int_to_ptr.hbm [resolvable:$true] %s287
          %s289 = sshll.u32 [#allocation7], 4
          %s290 = int_to_ptr.vmem [resolvable:$true] %s289
          %295 = dma.hbm_to_vmem [thread:$0]  %s288, 4608, %s290, [#allocation8], 128, 128, 8
        $region24: #{cnn_encoder_forward.1} parent=11 // pred_fallthru
          _
        // Predicated region
        $region25: #{cnn_encoder_forward.1} parent=11 // pred_check
          %p296 = pneg %p131
        $region26: #{cnn_encoder_forward.1} parent=11 // pred_check_branch
          %298 = sbr.rel (%p296) target = $region28
        $region27: #{cnn_encoder_forward.1} parent=11 // pred_region
          _
        $region28: #{cnn_encoder_forward.1} parent=11 // pred_fallthru
          _
        // Predicated region
        $region29: #{cnn_encoder_forward.1} parent=11 // pred_check
          %p299 = pneg %p152
        $region30: #{cnn_encoder_forward.1} parent=11 // pred_check_branch
          %301 = sbr.rel (%p299) target = $region32
        $region31: #{cnn_encoder_forward.1} parent=11 // pred_region
          %303 = vsyncadd [#allocation8], 0
          %s304 = sshll.u32 %s5, 4
          %s305 = int_to_ptr.hbm [resolvable:$true] %s304
          %s306 = sshll.u32 [#allocation9], 4
          %s307 = int_to_ptr.vmem [resolvable:$true] %s306
          %312 = dma.hbm_to_vmem [thread:$0]  %s305, 9216, %s307, [#allocation8], 128, 128, 8
        $region32: #{cnn_encoder_forward.1} parent=11 // pred_fallthru
          _
        // Predicated region
        $region33: #{cnn_encoder_forward.1} parent=11 // pred_check
          %p313 = pneg %p173
        $region34: #{cnn_encoder_forward.1} parent=11 // pred_check_branch
          %315 = sbr.rel (%p313) target = $region36
        $region35: #{cnn_encoder_forward.1} parent=11 // pred_region
          _
        $region36: #{cnn_encoder_forward.1} parent=11 // pred_fallthru
          _
        // Predicated region
        $region37: #{cnn_encoder_forward.1} parent=11 // pred_check
          %p316 = pneg %p194
        $region38: #{cnn_encoder_forward.1} parent=11 // pred_check_branch
          %318 = sbr.rel (%p316) target = $region40
        $region39: #{cnn_encoder_forward.1} parent=11 // pred_region
          %320 = vsyncadd [#allocation11], 0
          %s321 = sshll.u32 %s7, 4
          %s322 = int_to_ptr.hbm [resolvable:$true] %s321
          %s323 = sshll.u32 [#allocation10], 4
          %s324 = int_to_ptr.vmem [resolvable:$true] %s323
          %329 = dma.hbm_to_vmem [thread:$0]  %s322, 32768, %s324, [#allocation11], 128, 128, 8
        $region40: #{cnn_encoder_forward.1} parent=11 // pred_fallthru
          _
        // Predicated region
        $region41: #{cnn_encoder_forward.1} parent=11 // pred_check
          %p330 = pneg %p215
        $region42: #{cnn_encoder_forward.1} parent=11 // pred_check_branch
          %332 = sbr.rel (%p330) target = $region44
        $region43: #{cnn_encoder_forward.1} parent=11 // pred_region
          _
        $region44: #{cnn_encoder_forward.1} parent=11 // pred_fallthru
          _
      $region12: #{cnn_encoder_forward.1} parent=5 // pred_fallthru
        _
      %p333 = scmp.lt.s32.totalorder %s21, 2
      // Predicated region
      $region45: #{cnn_encoder_forward.1} parent=5 // pred_check
        %p334 = pneg %p333
      $region46: #{cnn_encoder_forward.1} parent=5 // pred_check_branch
        %336 = sbr.rel (%p334) target = $region48
      $region47: #{cnn_encoder_forward.1} parent=5 // pred_region
        // Predicated region
        $region49: #{cnn_encoder_forward.1} parent=47 // pred_check
          %p337 = pneg %p41
        $region50: #{cnn_encoder_forward.1} parent=47 // pred_check_branch
          %339 = sbr.rel (%p337) target = $region52
        $region51: #{cnn_encoder_forward.1} parent=47 // pred_region
          %s340 = sand.u32 %s31, 1
          %s341 = scalar_lea.sflag [#allocation3], %s340
          %s342 = sand.u32 %s31, 1
          %s343 = smul.addr %s342, 16
          %s344 = scalar_lea.vmem [#allocation2], %s343
          %346 = vsyncadd %s341, 0
          %s347 = smul.addr %s21, 2
          %s348 = smul.addr %s347, 8
          %s349 = scalar_lea.hbm %s0, %s348
          %s350 = sshll.u32 %s349, 4
          %s351 = int_to_ptr.hbm [resolvable:$true] %s350
          %s352 = sshll.u32 %s344, 4
          %s353 = int_to_ptr.vmem [resolvable:$true] %s352
          %358 = dma.hbm_to_vmem [thread:$0]  %s351, 256, %s353, %s341, 128, 128, 8
        $region52: #{cnn_encoder_forward.1} parent=47 // pred_fallthru
          _
      $region48: #{cnn_encoder_forward.1} parent=5 // pred_fallthru
        _
      %p359 = scmp.le.s32.totalorder 1, %s21
      %p360 = scmp.lt.s32.totalorder %s21, 3
      %p361 = pnand %p359, %p360
      %p362 = pneg %p361
      // Predicated region
      $region53: #{cnn_encoder_forward.1} parent=5 // pred_check
        _
      $region54: #{cnn_encoder_forward.1} parent=5 // pred_check_branch
        %364 = sbr.rel (%p361) target = $region56
      $region55: #{cnn_encoder_forward.1} parent=5 // pred_region
        %s365 = ssub.s32 %s21, 1
        %s366 = sand.u32 %s34, 1
        %s367 = scalar_lea.sflag [#allocation3], %s366
        %s368 = sand.u32 %s34, 1
        %s369 = smul.addr %s368, 16
        %s370 = scalar_lea.vmem [#allocation2], %s369
        // Predicated region
        $region57: #{cnn_encoder_forward.1} parent=55 // pred_check
          %p371 = pneg %p47
        $region58: #{cnn_encoder_forward.1} parent=55 // pred_check_branch
          %373 = sbr.rel (%p371) target = $region60
        $region59: #{cnn_encoder_forward.1} parent=55 // pred_region
          %375 = dma.done %s367, 256
        $region60: #{cnn_encoder_forward.1} parent=55 // pred_fallthru
          _
        // Predicated region
        $region61: #{cnn_encoder_forward.1} parent=55 // pred_check
          %p376 = pneg %p68
        $region62: #{cnn_encoder_forward.1} parent=55 // pred_check_branch
          %378 = sbr.rel (%p376) target = $region64
        $region63: #{cnn_encoder_forward.1} parent=55 // pred_region
          %380 = dma.done [#allocation5], 256
        $region64: #{cnn_encoder_forward.1} parent=55 // pred_fallthru
          _
        // Predicated region
        $region65: #{cnn_encoder_forward.1} parent=55 // pred_check
          %p381 = pneg %p89
        $region66: #{cnn_encoder_forward.1} parent=55 // pred_check_branch
          %383 = sbr.rel (%p381) target = $region68
        $region67: #{cnn_encoder_forward.1} parent=55 // pred_region
          %385 = dma.done [#allocation5], 16
        $region68: #{cnn_encoder_forward.1} parent=55 // pred_fallthru
          _
        // Predicated region
        $region69: #{cnn_encoder_forward.1} parent=55 // pred_check
          %p386 = pneg %p110
        $region70: #{cnn_encoder_forward.1} parent=55 // pred_check_branch
          %388 = sbr.rel (%p386) target = $region72
        $region71: #{cnn_encoder_forward.1} parent=55 // pred_region
          %390 = dma.done [#allocation8], 4608
        $region72: #{cnn_encoder_forward.1} parent=55 // pred_fallthru
          _
        // Predicated region
        $region73: #{cnn_encoder_forward.1} parent=55 // pred_check
          %p391 = pneg %p152
        $region74: #{cnn_encoder_forward.1} parent=55 // pred_check_branch
          %393 = sbr.rel (%p391) target = $region76
        $region75: #{cnn_encoder_forward.1} parent=55 // pred_region
          %395 = dma.done [#allocation8], 9216
        $region76: #{cnn_encoder_forward.1} parent=55 // pred_fallthru
          _
        // Predicated region
        $region77: #{cnn_encoder_forward.1} parent=55 // pred_check
          %p396 = pneg %p194
        $region78: #{cnn_encoder_forward.1} parent=55 // pred_check_branch
          %398 = sbr.rel (%p396) target = $region80
        $region79: #{cnn_encoder_forward.1} parent=55 // pred_region
          %400 = dma.done [#allocation11], 32768
        $region80: #{cnn_encoder_forward.1} parent=55 // pred_fallthru
          _
        %s401 = sand.u32 %s34, 1
        %s402 = scalar_lea.sflag [#allocation3], %s401
        %s403 = sand.u32 %s34, 1
        %s404 = smul.addr %s403, 16
        %s405 = scalar_lea.vmem [#allocation2], %s404
        %p406 = pneg %p47
        %p407 = pneg %p44
        %p408 = pneg %p68
        %p409 = pneg %p65
        %p410 = pneg %p89
        %p411 = pneg %p86
        %p412 = pneg %p110
        %p413 = pneg %p107
        %p414 = pneg %p131
        %p415 = pneg %p128
        %p416 = pneg %p152
        %p417 = pneg %p149
        %p418 = pneg %p173
        %p419 = pneg %p170
        %p420 = pneg %p194
        %p421 = pneg %p191
        %p422 = pneg %p215
        %p423 = pneg %p212
        %p424 = pneg %p241
        %p425 = pneg %p238
        %p426 = scmp.lt.s32.totalorder %s26, 1
        %s427 = scalar_select %p426, %s26, 1
        %s428 = scalar_lea.vmem %s9, %s427
        %p429 = scmp.lt.s32.totalorder %s26, 1
        %s430 = scalar_select %p429, %s26, 1
        %s431 = scalar_lea.vmem %s9, %s430
        %v432 = vld [vmem:[%s370] sm:$0xff]
        %v433 = vld [vmem:[%s370 + $0x8] sm:$0xff]
        %v434 = vperm.slane %v432, 0
        %v435 = vlaneseq
        %v436 = vshrl.u32 %v435, 7
        %438 = vset.pattern.permute.xlu0 %v436
        %439 = vperm.xlu0 %438, %v434
        %v440 = vpop.permute.xlu0 %439
        %v441 = vlaneseq
        %v442 = vshrl.u32 %v441, 7
        %v443 = vadd.s32 %v442, 8
        %444 = vset.pattern.permute.xlu0 %v443
        %445 = vperm.xlu0 %444, %v434
        %v446 = vpop.permute.xlu0 %445
        %v447 = vperm.slane %v432, 1
        %v448 = vlaneseq
        %v449 = vshrl.u32 %v448, 7
        %451 = vset.pattern.permute.xlu0 %v449
        %452 = vperm.xlu0 %451, %v447
        %v453 = vpop.permute.xlu0 %452
        %v454 = vlaneseq
        %v455 = vshrl.u32 %v454, 7
        %v456 = vadd.s32 %v455, 8
        %457 = vset.pattern.permute.xlu0 %v456
        %458 = vperm.xlu0 %457, %v447
        %v459 = vpop.permute.xlu0 %458
        %v460 = vperm.slane %v432, 2
        %v461 = vlaneseq
        %v462 = vshrl.u32 %v461, 7
        %464 = vset.pattern.permute.xlu0 %v462
        %465 = vperm.xlu0 %464, %v460
        %v466 = vpop.permute.xlu0 %465
        %v467 = vlaneseq
        %v468 = vshrl.u32 %v467, 7
        %v469 = vadd.s32 %v468, 8
        %470 = vset.pattern.permute.xlu0 %v469
        %471 = vperm.xlu0 %470, %v460
        %v472 = vpop.permute.xlu0 %471
        %v473 = vperm.slane %v432, 3
        %v474 = vlaneseq
        %v475 = vshrl.u32 %v474, 7
        %477 = vset.pattern.permute.xlu0 %v475
        %478 = vperm.xlu0 %477, %v473
        %v479 = vpop.permute.xlu0 %478
        %v480 = vlaneseq
        %v481 = vshrl.u32 %v480, 7
        %v482 = vadd.s32 %v481, 8
        %483 = vset.pattern.permute.xlu0 %v482
        %484 = vperm.xlu0 %483, %v473
        %v485 = vpop.permute.xlu0 %484
        %v486 = vperm.slane %v432, 4
        %v487 = vlaneseq
        %v488 = vshrl.u32 %v487, 7
        %490 = vset.pattern.permute.xlu0 %v488
        %491 = vperm.xlu0 %490, %v486
        %v492 = vpop.permute.xlu0 %491
        %v493 = vlaneseq
        %v494 = vshrl.u32 %v493, 7
        %v495 = vadd.s32 %v494, 8
        %496 = vset.pattern.permute.xlu0 %v495
        %497 = vperm.xlu0 %496, %v486
        %v498 = vpop.permute.xlu0 %497
        %v499 = vperm.slane %v432, 5
        %v500 = vlaneseq
        %v501 = vshrl.u32 %v500, 7
        %503 = vset.pattern.permute.xlu0 %v501
        %504 = vperm.xlu0 %503, %v499
        %v505 = vpop.permute.xlu0 %504
        %v506 = vlaneseq
        %v507 = vshrl.u32 %v506, 7
        %v508 = vadd.s32 %v507, 8
        %509 = vset.pattern.permute.xlu0 %v508
        %510 = vperm.xlu0 %509, %v499
        %v511 = vpop.permute.xlu0 %510
        %v512 = vperm.slane %v432, 6
        %v513 = vlaneseq
        %v514 = vshrl.u32 %v513, 7
        %516 = vset.pattern.permute.xlu0 %v514
        %517 = vperm.xlu0 %516, %v512
        %v518 = vpop.permute.xlu0 %517
        %v519 = vlaneseq
        %v520 = vshrl.u32 %v519, 7
        %v521 = vadd.s32 %v520, 8
        %522 = vset.pattern.permute.xlu0 %v521
        %523 = vperm.xlu0 %522, %v512
        %v524 = vpop.permute.xlu0 %523
        %v525 = vperm.slane %v432, 7
        %v526 = vlaneseq
        %v527 = vshrl.u32 %v526, 7
        %529 = vset.pattern.permute.xlu0 %v527
        %530 = vperm.xlu0 %529, %v525
        %v531 = vpop.permute.xlu0 %530
        %v532 = vlaneseq
        %v533 = vshrl.u32 %v532, 7
        %v534 = vadd.s32 %v533, 8
        %535 = vset.pattern.permute.xlu0 %v534
        %536 = vperm.xlu0 %535, %v525
        %v537 = vpop.permute.xlu0 %536
        %v538 = vperm.slane %v433, 0
        %v539 = vlaneseq
        %v540 = vshrl.u32 %v539, 7
        %542 = vset.pattern.permute.xlu0 %v540
        %543 = vperm.xlu0 %542, %v538
        %v544 = vpop.permute.xlu0 %543
        %v545 = vlaneseq
        %v546 = vshrl.u32 %v545, 7
        %v547 = vadd.s32 %v546, 8
        %548 = vset.pattern.permute.xlu0 %v547
        %549 = vperm.xlu0 %548, %v538
        %v550 = vpop.permute.xlu0 %549
        %v551 = vperm.slane %v433, 1
        %v552 = vlaneseq
        %v553 = vshrl.u32 %v552, 7
        %555 = vset.pattern.permute.xlu0 %v553
        %556 = vperm.xlu0 %555, %v551
        %v557 = vpop.permute.xlu0 %556
        %v558 = vlaneseq
        %v559 = vshrl.u32 %v558, 7
        %v560 = vadd.s32 %v559, 8
        %561 = vset.pattern.permute.xlu0 %v560
        %562 = vperm.xlu0 %561, %v551
        %v563 = vpop.permute.xlu0 %562
        %v564 = vperm.slane %v433, 2
        %v565 = vlaneseq
        %v566 = vshrl.u32 %v565, 7
        %568 = vset.pattern.permute.xlu0 %v566
        %569 = vperm.xlu0 %568, %v564
        %v570 = vpop.permute.xlu0 %569
        %v571 = vlaneseq
        %v572 = vshrl.u32 %v571, 7
        %v573 = vadd.s32 %v572, 8
        %574 = vset.pattern.permute.xlu0 %v573
        %575 = vperm.xlu0 %574, %v564
        %v576 = vpop.permute.xlu0 %575
        %v577 = vperm.slane %v433, 3
        %v578 = vlaneseq
        %v579 = vshrl.u32 %v578, 7
        %581 = vset.pattern.permute.xlu0 %v579
        %582 = vperm.xlu0 %581, %v577
        %v583 = vpop.permute.xlu0 %582
        %v584 = vlaneseq
        %v585 = vshrl.u32 %v584, 7
        %v586 = vadd.s32 %v585, 8
        %587 = vset.pattern.permute.xlu0 %v586
        %588 = vperm.xlu0 %587, %v577
        %v589 = vpop.permute.xlu0 %588
        %v590 = vperm.slane %v433, 4
        %v591 = vlaneseq
        %v592 = vshrl.u32 %v591, 7
        %594 = vset.pattern.permute.xlu0 %v592
        %595 = vperm.xlu0 %594, %v590
        %v596 = vpop.permute.xlu0 %595
        %v597 = vlaneseq
        %v598 = vshrl.u32 %v597, 7
        %v599 = vadd.s32 %v598, 8
        %600 = vset.pattern.permute.xlu0 %v599
        %601 = vperm.xlu0 %600, %v590
        %v602 = vpop.permute.xlu0 %601
        %v603 = vperm.slane %v433, 5
        %v604 = vlaneseq
        %v605 = vshrl.u32 %v604, 7
        %607 = vset.pattern.permute.xlu0 %v605
        %608 = vperm.xlu0 %607, %v603
        %v609 = vpop.permute.xlu0 %608
        %v610 = vlaneseq
        %v611 = vshrl.u32 %v610, 7
        %v612 = vadd.s32 %v611, 8
        %613 = vset.pattern.permute.xlu0 %v612
        %614 = vperm.xlu0 %613, %v603
        %v615 = vpop.permute.xlu0 %614
        %v616 = vperm.slane %v433, 6
        %v617 = vlaneseq
        %v618 = vshrl.u32 %v617, 7
        %620 = vset.pattern.permute.xlu0 %v618
        %621 = vperm.xlu0 %620, %v616
        %v622 = vpop.permute.xlu0 %621
        %v623 = vlaneseq
        %v624 = vshrl.u32 %v623, 7
        %v625 = vadd.s32 %v624, 8
        %626 = vset.pattern.permute.xlu0 %v625
        %627 = vperm.xlu0 %626, %v616
        %v628 = vpop.permute.xlu0 %627
        %v629 = vperm.slane %v433, 7
        %v630 = vlaneseq
        %v631 = vshrl.u32 %v630, 7
        %633 = vset.pattern.permute.xlu0 %v631
        %634 = vperm.xlu0 %633, %v629
        %v635 = vpop.permute.xlu0 %634
        %v636 = vlaneseq
        %v637 = vshrl.u32 %v636, 7
        %v638 = vadd.s32 %v637, 8
        %639 = vset.pattern.permute.xlu0 %v638
        %640 = vperm.xlu0 %639, %v629
        %v641 = vpop.permute.xlu0 %640
        %vm675 = vcmask 1040384
        %v676 = vrot.slane 0.0, 7
        %v677 = vsel %vm675, %v676, %v676
        %v678 = vrot.slane %v440, 7
        %v679 = vrot.slane %v446, 7
        %v680 = vsel %vm675, %v678, %v679
        %v681 = vrot.slane %v453, 7
        %v682 = vrot.slane %v459, 7
        %v683 = vsel %vm675, %v681, %v682
        %v684 = vrot.slane %v466, 7
        %v685 = vrot.slane %v472, 7
        %v686 = vsel %vm675, %v684, %v685
        %v687 = vrot.slane %v479, 7
        %v688 = vrot.slane %v485, 7
        %v689 = vsel %vm675, %v687, %v688
        %v690 = vrot.slane %v492, 7
        %v691 = vrot.slane %v498, 7
        %v692 = vsel %vm675, %v690, %v691
        %v693 = vrot.slane %v505, 7
        %v694 = vrot.slane %v511, 7
        %v695 = vsel %vm675, %v693, %v694
        %v696 = vrot.slane %v518, 7
        %v697 = vrot.slane %v524, 7
        %v698 = vsel %vm675, %v696, %v697
        %v699 = vrot.slane %v531, 7
        %v700 = vrot.slane %v537, 7
        %v701 = vsel %vm675, %v699, %v700
        %v702 = vrot.slane %v544, 7
        %v703 = vrot.slane %v550, 7
        %v704 = vsel %vm675, %v702, %v703
        %v705 = vrot.slane %v557, 7
        %v706 = vrot.slane %v563, 7
        %v707 = vsel %vm675, %v705, %v706
        %v708 = vrot.slane %v570, 7
        %v709 = vrot.slane %v576, 7
        %v710 = vsel %vm675, %v708, %v709
        %v711 = vrot.slane %v583, 7
        %v712 = vrot.slane %v589, 7
        %v713 = vsel %vm675, %v711, %v712
        %v714 = vrot.slane %v596, 7
        %v715 = vrot.slane %v602, 7
        %v716 = vsel %vm675, %v714, %v715
        %v717 = vrot.slane %v609, 7
        %v718 = vrot.slane %v615, 7
        %v719 = vsel %vm675, %v717, %v718
        %v720 = vrot.slane %v622, 7
        %v721 = vrot.slane %v628, 7
        %v722 = vsel %vm675, %v720, %v721
        %v723 = vrot.slane %v635, 7
        %v724 = vrot.slane %v641, 7
        %v725 = vsel %vm675, %v723, %v724
        %v776 = vsel %vm675, 0.0, %v676
        %v777 = vsel %vm675, 0.0, %v678
        %v778 = vsel %vm675, 0.0, %v681
        %v779 = vsel %vm675, 0.0, %v684
        %v780 = vsel %vm675, 0.0, %v687
        %v781 = vsel %vm675, 0.0, %v690
        %v782 = vsel %vm675, 0.0, %v693
        %v783 = vsel %vm675, 0.0, %v696
        %v784 = vsel %vm675, 0.0, %v699
        %v785 = vsel %vm675, 0.0, %v702
        %v786 = vsel %vm675, 0.0, %v705
        %v787 = vsel %vm675, 0.0, %v708
        %v788 = vsel %vm675, 0.0, %v711
        %v789 = vsel %vm675, 0.0, %v714
        %v790 = vsel %vm675, 0.0, %v717
        %v791 = vsel %vm675, 0.0, %v720
        %v792 = vsel %vm675, 0.0, %v723
        %v793 = vsel %vm675, %v676, 0.0
        %v794 = vsel %vm675, %v679, 0.0
        %v795 = vsel %vm675, %v682, 0.0
        %v796 = vsel %vm675, %v685, 0.0
        %v797 = vsel %vm675, %v688, 0.0
        %v798 = vsel %vm675, %v691, 0.0
        %v799 = vsel %vm675, %v694, 0.0
        %v800 = vsel %vm675, %v697, 0.0
        %v801 = vsel %vm675, %v700, 0.0
        %v802 = vsel %vm675, %v703, 0.0
        %v803 = vsel %vm675, %v706, 0.0
        %v804 = vsel %vm675, %v709, 0.0
        %v805 = vsel %vm675, %v712, 0.0
        %v806 = vsel %vm675, %v715, 0.0
        %v807 = vsel %vm675, %v718, 0.0
        %v808 = vsel %vm675, %v721, 0.0
        %v809 = vsel %vm675, %v724, 0.0
        %v810 = vld [vmem:[#allocation4] sm:$0xff]
        %v811 = vld [vmem:[#allocation4 + $0x8] sm:$0x1]
        %v812 = vperm.slane %v810, 0
        %v813 = vmul.f32 %v776, %v812
        %v814 = vmul.f32 %v677, %v812
        %v815 = vmul.f32 %v778, %v812
        %v816 = vmul.f32 %v683, %v812
        %v817 = vmul.f32 %v780, %v812
        %v818 = vmul.f32 %v689, %v812
        %v819 = vmul.f32 %v782, %v812
        %v820 = vmul.f32 %v695, %v812
        %v821 = vmul.f32 %v784, %v812
        %v822 = vmul.f32 %v701, %v812
        %v823 = vmul.f32 %v786, %v812
        %v824 = vmul.f32 %v707, %v812
        %v825 = vmul.f32 %v788, %v812
        %v826 = vmul.f32 %v713, %v812
        %v827 = vmul.f32 %v790, %v812
        %v828 = vmul.f32 %v719, %v812
        %v829 = vadd.f32 %v813, 0.0
        %v830 = vadd.f32 %v814, 0.0
        %v831 = vadd.f32 %v815, 0.0
        %v832 = vadd.f32 %v816, 0.0
        %v833 = vadd.f32 %v817, 0.0
        %v834 = vadd.f32 %v818, 0.0
        %v835 = vadd.f32 %v819, 0.0
        %v836 = vadd.f32 %v820, 0.0
        %v837 = vadd.f32 %v821, 0.0
        %v838 = vadd.f32 %v822, 0.0
        %v839 = vadd.f32 %v823, 0.0
        %v840 = vadd.f32 %v824, 0.0
        %v841 = vadd.f32 %v825, 0.0
        %v842 = vadd.f32 %v826, 0.0
        %v843 = vadd.f32 %v827, 0.0
        %v844 = vadd.f32 %v828, 0.0
        %v845 = vperm.slane %v810, 1
        %v846 = vmul.f32 %v776, %v845
        %v847 = vmul.f32 %v677, %v845
        %v848 = vmul.f32 %v793, %v845
        %v849 = vmul.f32 %v778, %v845
        %v850 = vmul.f32 %v683, %v845
        %v851 = vmul.f32 %v795, %v845
        %v852 = vmul.f32 %v780, %v845
        %v853 = vmul.f32 %v689, %v845
        %v854 = vmul.f32 %v797, %v845
        %v855 = vmul.f32 %v782, %v845
        %v856 = vmul.f32 %v695, %v845
        %v857 = vmul.f32 %v799, %v845
        %v858 = vmul.f32 %v784, %v845
        %v859 = vmul.f32 %v701, %v845
        %v860 = vmul.f32 %v801, %v845
        %v861 = vmul.f32 %v786, %v845
        %v862 = vmul.f32 %v707, %v845
        %v863 = vmul.f32 %v803, %v845
        %v864 = vmul.f32 %v788, %v845
        %v865 = vmul.f32 %v713, %v845
        %v866 = vmul.f32 %v805, %v845
        %v867 = vmul.f32 %v790, %v845
        %v868 = vmul.f32 %v719, %v845
        %v869 = vmul.f32 %v807, %v845
        %vm894 = vcmask 1046528
        %v895 = vrot.slane %v846, 1
        %v896 = vrot.slane %v847, 1
        %v897 = vsel %vm894, %v895, %v896
        %v898 = vrot.slane %v848, 1
        %v899 = vsel %vm894, %v896, %v898
        %v900 = vrot.slane %v849, 1
        %v901 = vrot.slane %v850, 1
        %v902 = vsel %vm894, %v900, %v901
        %v903 = vrot.slane %v851, 1
        %v904 = vsel %vm894, %v901, %v903
        %v905 = vrot.slane %v852, 1
        %v906 = vrot.slane %v853, 1
        %v907 = vsel %vm894, %v905, %v906
        %v908 = vrot.slane %v854, 1
        %v909 = vsel %vm894, %v906, %v908
        %v910 = vrot.slane %v855, 1
        %v911 = vrot.slane %v856, 1
        %v912 = vsel %vm894, %v910, %v911
        %v913 = vrot.slane %v857, 1
        %v914 = vsel %vm894, %v911, %v913
        %v915 = vrot.slane %v858, 1
        %v916 = vrot.slane %v859, 1
        %v917 = vsel %vm894, %v915, %v916
        %v918 = vrot.slane %v860, 1
        %v919 = vsel %vm894, %v916, %v918
        %v920 = vrot.slane %v861, 1
        %v921 = vrot.slane %v862, 1
        %v922 = vsel %vm894, %v920, %v921
        %v923 = vrot.slane %v863, 1
        %v924 = vsel %vm894, %v921, %v923
        %v925 = vrot.slane %v864, 1
        %v926 = vrot.slane %v865, 1
        %v927 = vsel %vm894, %v925, %v926
        %v928 = vrot.slane %v866, 1
        %v929 = vsel %vm894, %v926, %v928
        %v930 = vrot.slane %v867, 1
        %v931 = vrot.slane %v868, 1
        %v932 = vsel %vm894, %v930, %v931
        %v933 = vrot.slane %v869, 1
        %v934 = vsel %vm894, %v931, %v933
        %v951 = vadd.f32 %v829, %v897
        %v952 = vadd.f32 %v830, %v899
        %v953 = vadd.f32 %v831, %v902
        %v954 = vadd.f32 %v832, %v904
        %v955 = vadd.f32 %v833, %v907
        %v956 = vadd.f32 %v834, %v909
        %v957 = vadd.f32 %v835, %v912
        %v958 = vadd.f32 %v836, %v914
        %v959 = vadd.f32 %v837, %v917
        %v960 = vadd.f32 %v838, %v919
        %v961 = vadd.f32 %v839, %v922
        %v962 = vadd.f32 %v840, %v924
        %v963 = vadd.f32 %v841, %v927
        %v964 = vadd.f32 %v842, %v929
        %v965 = vadd.f32 %v843, %v932
        %v966 = vadd.f32 %v844, %v934
        %v967 = vperm.slane %v810, 2
        %v968 = vmul.f32 %v776, %v967
        %v969 = vmul.f32 %v677, %v967
        %v970 = vmul.f32 %v793, %v967
        %v971 = vmul.f32 %v778, %v967
        %v972 = vmul.f32 %v683, %v967
        %v973 = vmul.f32 %v795, %v967
        %v974 = vmul.f32 %v780, %v967
        %v975 = vmul.f32 %v689, %v967
        %v976 = vmul.f32 %v797, %v967
        %v977 = vmul.f32 %v782, %v967
        %v978 = vmul.f32 %v695, %v967
        %v979 = vmul.f32 %v799, %v967
        %v980 = vmul.f32 %v784, %v967
        %v981 = vmul.f32 %v701, %v967
        %v982 = vmul.f32 %v801, %v967
        %v983 = vmul.f32 %v786, %v967
        %v984 = vmul.f32 %v707, %v967
        %v985 = vmul.f32 %v803, %v967
        %v986 = vmul.f32 %v788, %v967
        %v987 = vmul.f32 %v713, %v967
        %v988 = vmul.f32 %v805, %v967
        %v989 = vmul.f32 %v790, %v967
        %v990 = vmul.f32 %v719, %v967
        %v991 = vmul.f32 %v807, %v967
        %vm1016 = vcmask 1045504
        %v1017 = vrot.slane %v968, 2
        %v1018 = vrot.slane %v969, 2
        %v1019 = vsel %vm1016, %v1017, %v1018
        %v1020 = vrot.slane %v970, 2
        %v1021 = vsel %vm1016, %v1018, %v1020
        %v1022 = vrot.slane %v971, 2
        %v1023 = vrot.slane %v972, 2
        %v1024 = vsel %vm1016, %v1022, %v1023
        %v1025 = vrot.slane %v973, 2
        %v1026 = vsel %vm1016, %v1023, %v1025
        %v1027 = vrot.slane %v974, 2
        %v1028 = vrot.slane %v975, 2
        %v1029 = vsel %vm1016, %v1027, %v1028
        %v1030 = vrot.slane %v976, 2
        %v1031 = vsel %vm1016, %v1028, %v1030
        %v1032 = vrot.slane %v977, 2
        %v1033 = vrot.slane %v978, 2
        %v1034 = vsel %vm1016, %v1032, %v1033
        %v1035 = vrot.slane %v979, 2
        %v1036 = vsel %vm1016, %v1033, %v1035
        %v1037 = vrot.slane %v980, 2
        %v1038 = vrot.slane %v981, 2
        %v1039 = vsel %vm1016, %v1037, %v1038
        %v1040 = vrot.slane %v982, 2
        %v1041 = vsel %vm1016, %v1038, %v1040
        %v1042 = vrot.slane %v983, 2
        %v1043 = vrot.slane %v984, 2
        %v1044 = vsel %vm1016, %v1042, %v1043
        %v1045 = vrot.slane %v985, 2
        %v1046 = vsel %vm1016, %v1043, %v1045
        %v1047 = vrot.slane %v986, 2
        %v1048 = vrot.slane %v987, 2
        %v1049 = vsel %vm1016, %v1047, %v1048
        %v1050 = vrot.slane %v988, 2
        %v1051 = vsel %vm1016, %v1048, %v1050
        %v1052 = vrot.slane %v989, 2
        %v1053 = vrot.slane %v990, 2
        %v1054 = vsel %vm1016, %v1052, %v1053
        %v1055 = vrot.slane %v991, 2
        %v1056 = vsel %vm1016, %v1053, %v1055
        %v1073 = vadd.f32 %v951, %v1019
        %v1074 = vadd.f32 %v952, %v1021
        %v1075 = vadd.f32 %v953, %v1024
        %v1076 = vadd.f32 %v954, %v1026
        %v1077 = vadd.f32 %v955, %v1029
        %v1078 = vadd.f32 %v956, %v1031
        %v1079 = vadd.f32 %v957, %v1034
        %v1080 = vadd.f32 %v958, %v1036
        %v1081 = vadd.f32 %v959, %v1039
        %v1082 = vadd.f32 %v960, %v1041
        %v1083 = vadd.f32 %v961, %v1044
        %v1084 = vadd.f32 %v962, %v1046
        %v1085 = vadd.f32 %v963, %v1049
        %v1086 = vadd.f32 %v964, %v1051
        %v1087 = vadd.f32 %v965, %v1054
        %v1088 = vadd.f32 %v966, %v1056
        %v1089 = vperm.slane %v810, 3
        %v1090 = vmul.f32 %v777, %v1089
        %v1091 = vmul.f32 %v680, %v1089
        %v1092 = vmul.f32 %v779, %v1089
        %v1093 = vmul.f32 %v686, %v1089
        %v1094 = vmul.f32 %v781, %v1089
        %v1095 = vmul.f32 %v692, %v1089
        %v1096 = vmul.f32 %v783, %v1089
        %v1097 = vmul.f32 %v698, %v1089
        %v1098 = vmul.f32 %v785, %v1089
        %v1099 = vmul.f32 %v704, %v1089
        %v1100 = vmul.f32 %v787, %v1089
        %v1101 = vmul.f32 %v710, %v1089
        %v1102 = vmul.f32 %v789, %v1089
        %v1103 = vmul.f32 %v716, %v1089
        %v1104 = vmul.f32 %v791, %v1089
        %v1105 = vmul.f32 %v722, %v1089
        %v1106 = vadd.f32 %v1073, %v1090
        %v1107 = vadd.f32 %v1074, %v1091
        %v1108 = vadd.f32 %v1075, %v1092
        %v1109 = vadd.f32 %v1076, %v1093
        %v1110 = vadd.f32 %v1077, %v1094
        %v1111 = vadd.f32 %v1078, %v1095
        %v1112 = vadd.f32 %v1079, %v1096
        %v1113 = vadd.f32 %v1080, %v1097
        %v1114 = vadd.f32 %v1081, %v1098
        %v1115 = vadd.f32 %v1082, %v1099
        %v1116 = vadd.f32 %v1083, %v1100
        %v1117 = vadd.f32 %v1084, %v1101
        %v1118 = vadd.f32 %v1085, %v1102
        %v1119 = vadd.f32 %v1086, %v1103
        %v1120 = vadd.f32 %v1087, %v1104
        %v1121 = vadd.f32 %v1088, %v1105
        %v1122 = vperm.slane %v810, 4
        %v1123 = vmul.f32 %v777, %v1122
        %v1124 = vmul.f32 %v680, %v1122
        %v1125 = vmul.f32 %v794, %v1122
        %v1126 = vmul.f32 %v779, %v1122
        %v1127 = vmul.f32 %v686, %v1122
        %v1128 = vmul.f32 %v796, %v1122
        %v1129 = vmul.f32 %v781, %v1122
        %v1130 = vmul.f32 %v692, %v1122
        %v1131 = vmul.f32 %v798, %v1122
        %v1132 = vmul.f32 %v783, %v1122
        %v1133 = vmul.f32 %v698, %v1122
        %v1134 = vmul.f32 %v800, %v1122
        %v1135 = vmul.f32 %v785, %v1122
        %v1136 = vmul.f32 %v704, %v1122
        %v1137 = vmul.f32 %v802, %v1122
        %v1138 = vmul.f32 %v787, %v1122
        %v1139 = vmul.f32 %v710, %v1122
        %v1140 = vmul.f32 %v804, %v1122
        %v1141 = vmul.f32 %v789, %v1122
        %v1142 = vmul.f32 %v716, %v1122
        %v1143 = vmul.f32 %v806, %v1122
        %v1144 = vmul.f32 %v791, %v1122
        %v1145 = vmul.f32 %v722, %v1122
        %v1146 = vmul.f32 %v808, %v1122
        %v1171 = vrot.slane %v1123, 1
        %v1172 = vrot.slane %v1124, 1
        %v1173 = vsel %vm894, %v1171, %v1172
        %v1174 = vrot.slane %v1125, 1
        %v1175 = vsel %vm894, %v1172, %v1174
        %v1176 = vrot.slane %v1126, 1
        %v1177 = vrot.slane %v1127, 1
        %v1178 = vsel %vm894, %v1176, %v1177
        %v1179 = vrot.slane %v1128, 1
        %v1180 = vsel %vm894, %v1177, %v1179
        %v1181 = vrot.slane %v1129, 1
        %v1182 = vrot.slane %v1130, 1
        %v1183 = vsel %vm894, %v1181, %v1182
        %v1184 = vrot.slane %v1131, 1
        %v1185 = vsel %vm894, %v1182, %v1184
        %v1186 = vrot.slane %v1132, 1
        %v1187 = vrot.slane %v1133, 1
        %v1188 = vsel %vm894, %v1186, %v1187
        %v1189 = vrot.slane %v1134, 1
        %v1190 = vsel %vm894, %v1187, %v1189
        %v1191 = vrot.slane %v1135, 1
        %v1192 = vrot.slane %v1136, 1
        %v1193 = vsel %vm894, %v1191, %v1192
        %v1194 = vrot.slane %v1137, 1
        %v1195 = vsel %vm894, %v1192, %v1194
        %v1196 = vrot.slane %v1138, 1
        %v1197 = vrot.slane %v1139, 1
        %v1198 = vsel %vm894, %v1196, %v1197
        %v1199 = vrot.slane %v1140, 1
        %v1200 = vsel %vm894, %v1197, %v1199
        %v1201 = vrot.slane %v1141, 1
        %v1202 = vrot.slane %v1142, 1
        %v1203 = vsel %vm894, %v1201, %v1202
        %v1204 = vrot.slane %v1143, 1
        %v1205 = vsel %vm894, %v1202, %v1204
        %v1206 = vrot.slane %v1144, 1
        %v1207 = vrot.slane %v1145, 1
        %v1208 = vsel %vm894, %v1206, %v1207
        %v1209 = vrot.slane %v1146, 1
        %v1210 = vsel %vm894, %v1207, %v1209
        %v1227 = vadd.f32 %v1106, %v1173
        %v1228 = vadd.f32 %v1107, %v1175
        %v1229 = vadd.f32 %v1108, %v1178
        %v1230 = vadd.f32 %v1109, %v1180
        %v1231 = vadd.f32 %v1110, %v1183
        %v1232 = vadd.f32 %v1111, %v1185
        %v1233 = vadd.f32 %v1112, %v1188
        %v1234 = vadd.f32 %v1113, %v1190
        %v1235 = vadd.f32 %v1114, %v1193
        %v1236 = vadd.f32 %v1115, %v1195
        %v1237 = vadd.f32 %v1116, %v1198
        %v1238 = vadd.f32 %v1117, %v1200
        %v1239 = vadd.f32 %v1118, %v1203
        %v1240 = vadd.f32 %v1119, %v1205
        %v1241 = vadd.f32 %v1120, %v1208
        %v1242 = vadd.f32 %v1121, %v1210
        %v1243 = vperm.slane %v810, 5
        %v1244 = vmul.f32 %v777, %v1243
        %v1245 = vmul.f32 %v680, %v1243
        %v1246 = vmul.f32 %v794, %v1243
        %v1247 = vmul.f32 %v779, %v1243
        %v1248 = vmul.f32 %v686, %v1243
        %v1249 = vmul.f32 %v796, %v1243
        %v1250 = vmul.f32 %v781, %v1243
        %v1251 = vmul.f32 %v692, %v1243
        %v1252 = vmul.f32 %v798, %v1243
        %v1253 = vmul.f32 %v783, %v1243
        %v1254 = vmul.f32 %v698, %v1243
        %v1255 = vmul.f32 %v800, %v1243
        %v1256 = vmul.f32 %v785, %v1243
        %v1257 = vmul.f32 %v704, %v1243
        %v1258 = vmul.f32 %v802, %v1243
        %v1259 = vmul.f32 %v787, %v1243
        %v1260 = vmul.f32 %v710, %v1243
        %v1261 = vmul.f32 %v804, %v1243
        %v1262 = vmul.f32 %v789, %v1243
        %v1263 = vmul.f32 %v716, %v1243
        %v1264 = vmul.f32 %v806, %v1243
        %v1265 = vmul.f32 %v791, %v1243
        %v1266 = vmul.f32 %v722, %v1243
        %v1267 = vmul.f32 %v808, %v1243
        %v1292 = vrot.slane %v1244, 2
        %v1293 = vrot.slane %v1245, 2
        %v1294 = vsel %vm1016, %v1292, %v1293
        %v1295 = vrot.slane %v1246, 2
        %v1296 = vsel %vm1016, %v1293, %v1295
        %v1297 = vrot.slane %v1247, 2
        %v1298 = vrot.slane %v1248, 2
        %v1299 = vsel %vm1016, %v1297, %v1298
        %v1300 = vrot.slane %v1249, 2
        %v1301 = vsel %vm1016, %v1298, %v1300
        %v1302 = vrot.slane %v1250, 2
        %v1303 = vrot.slane %v1251, 2
        %v1304 = vsel %vm1016, %v1302, %v1303
        %v1305 = vrot.slane %v1252, 2
        %v1306 = vsel %vm1016, %v1303, %v1305
        %v1307 = vrot.slane %v1253, 2
        %v1308 = vrot.slane %v1254, 2
        %v1309 = vsel %vm1016, %v1307, %v1308
        %v1310 = vrot.slane %v1255, 2
        %v1311 = vsel %vm1016, %v1308, %v1310
        %v1312 = vrot.slane %v1256, 2
        %v1313 = vrot.slane %v1257, 2
        %v1314 = vsel %vm1016, %v1312, %v1313
        %v1315 = vrot.slane %v1258, 2
        %v1316 = vsel %vm1016, %v1313, %v1315
        %v1317 = vrot.slane %v1259, 2
        %v1318 = vrot.slane %v1260, 2
        %v1319 = vsel %vm1016, %v1317, %v1318
        %v1320 = vrot.slane %v1261, 2
        %v1321 = vsel %vm1016, %v1318, %v1320
        %v1322 = vrot.slane %v1262, 2
        %v1323 = vrot.slane %v1263, 2
        %v1324 = vsel %vm1016, %v1322, %v1323
        %v1325 = vrot.slane %v1264, 2
        %v1326 = vsel %vm1016, %v1323, %v1325
        %v1327 = vrot.slane %v1265, 2
        %v1328 = vrot.slane %v1266, 2
        %v1329 = vsel %vm1016, %v1327, %v1328
        %v1330 = vrot.slane %v1267, 2
        %v1331 = vsel %vm1016, %v1328, %v1330
        %v1348 = vadd.f32 %v1227, %v1294
        %v1349 = vadd.f32 %v1228, %v1296
        %v1350 = vadd.f32 %v1229, %v1299
        %v1351 = vadd.f32 %v1230, %v1301
        %v1352 = vadd.f32 %v1231, %v1304
        %v1353 = vadd.f32 %v1232, %v1306
        %v1354 = vadd.f32 %v1233, %v1309
        %v1355 = vadd.f32 %v1234, %v1311
        %v1356 = vadd.f32 %v1235, %v1314
        %v1357 = vadd.f32 %v1236, %v1316
        %v1358 = vadd.f32 %v1237, %v1319
        %v1359 = vadd.f32 %v1238, %v1321
        %v1360 = vadd.f32 %v1239, %v1324
        %v1361 = vadd.f32 %v1240, %v1326
        %v1362 = vadd.f32 %v1241, %v1329
        %v1363 = vadd.f32 %v1242, %v1331
        %v1364 = vperm.slane %v810, 6
        %v1365 = vmul.f32 %v778, %v1364
        %v1366 = vmul.f32 %v683, %v1364
        %v1367 = vmul.f32 %v780, %v1364
        %v1368 = vmul.f32 %v689, %v1364
        %v1369 = vmul.f32 %v782, %v1364
        %v1370 = vmul.f32 %v695, %v1364
        %v1371 = vmul.f32 %v784, %v1364
        %v1372 = vmul.f32 %v701, %v1364
        %v1373 = vmul.f32 %v786, %v1364
        %v1374 = vmul.f32 %v707, %v1364
        %v1375 = vmul.f32 %v788, %v1364
        %v1376 = vmul.f32 %v713, %v1364
        %v1377 = vmul.f32 %v790, %v1364
        %v1378 = vmul.f32 %v719, %v1364
        %v1379 = vmul.f32 %v792, %v1364
        %v1380 = vmul.f32 %v725, %v1364
        %v1381 = vadd.f32 %v1348, %v1365
        %v1382 = vadd.f32 %v1349, %v1366
        %v1383 = vadd.f32 %v1350, %v1367
        %v1384 = vadd.f32 %v1351, %v1368
        %v1385 = vadd.f32 %v1352, %v1369
        %v1386 = vadd.f32 %v1353, %v1370
        %v1387 = vadd.f32 %v1354, %v1371
        %v1388 = vadd.f32 %v1355, %v1372
        %v1389 = vadd.f32 %v1356, %v1373
        %v1390 = vadd.f32 %v1357, %v1374
        %v1391 = vadd.f32 %v1358, %v1375
        %v1392 = vadd.f32 %v1359, %v1376
        %v1393 = vadd.f32 %v1360, %v1377
        %v1394 = vadd.f32 %v1361, %v1378
        %v1395 = vadd.f32 %v1362, %v1379
        %v1396 = vadd.f32 %v1363, %v1380
        %v1397 = vperm.slane %v810, 7
        %v1398 = vmul.f32 %v778, %v1397
        %v1399 = vmul.f32 %v683, %v1397
        %v1400 = vmul.f32 %v795, %v1397
        %v1401 = vmul.f32 %v780, %v1397
        %v1402 = vmul.f32 %v689, %v1397
        %v1403 = vmul.f32 %v797, %v1397
        %v1404 = vmul.f32 %v782, %v1397
        %v1405 = vmul.f32 %v695, %v1397
        %v1406 = vmul.f32 %v799, %v1397
        %v1407 = vmul.f32 %v784, %v1397
        %v1408 = vmul.f32 %v701, %v1397
        %v1409 = vmul.f32 %v801, %v1397
        %v1410 = vmul.f32 %v786, %v1397
        %v1411 = vmul.f32 %v707, %v1397
        %v1412 = vmul.f32 %v803, %v1397
        %v1413 = vmul.f32 %v788, %v1397
        %v1414 = vmul.f32 %v713, %v1397
        %v1415 = vmul.f32 %v805, %v1397
        %v1416 = vmul.f32 %v790, %v1397
        %v1417 = vmul.f32 %v719, %v1397
        %v1418 = vmul.f32 %v807, %v1397
        %v1419 = vmul.f32 %v792, %v1397
        %v1420 = vmul.f32 %v725, %v1397
        %v1421 = vmul.f32 %v809, %v1397
        %v1446 = vrot.slane %v1398, 1
        %v1447 = vrot.slane %v1399, 1
        %v1448 = vsel %vm894, %v1446, %v1447
        %v1449 = vrot.slane %v1400, 1
        %v1450 = vsel %vm894, %v1447, %v1449
        %v1451 = vrot.slane %v1401, 1
        %v1452 = vrot.slane %v1402, 1
        %v1453 = vsel %vm894, %v1451, %v1452
        %v1454 = vrot.slane %v1403, 1
        %v1455 = vsel %vm894, %v1452, %v1454
        %v1456 = vrot.slane %v1404, 1
        %v1457 = vrot.slane %v1405, 1
        %v1458 = vsel %vm894, %v1456, %v1457
        %v1459 = vrot.slane %v1406, 1
        %v1460 = vsel %vm894, %v1457, %v1459
        %v1461 = vrot.slane %v1407, 1
        %v1462 = vrot.slane %v1408, 1
        %v1463 = vsel %vm894, %v1461, %v1462
        %v1464 = vrot.slane %v1409, 1
        %v1465 = vsel %vm894, %v1462, %v1464
        %v1466 = vrot.slane %v1410, 1
        %v1467 = vrot.slane %v1411, 1
        %v1468 = vsel %vm894, %v1466, %v1467
        %v1469 = vrot.slane %v1412, 1
        %v1470 = vsel %vm894, %v1467, %v1469
        %v1471 = vrot.slane %v1413, 1
        %v1472 = vrot.slane %v1414, 1
        %v1473 = vsel %vm894, %v1471, %v1472
        %v1474 = vrot.slane %v1415, 1
        %v1475 = vsel %vm894, %v1472, %v1474
        %v1476 = vrot.slane %v1416, 1
        %v1477 = vrot.slane %v1417, 1
        %v1478 = vsel %vm894, %v1476, %v1477
        %v1479 = vrot.slane %v1418, 1
        %v1480 = vsel %vm894, %v1477, %v1479
        %v1481 = vrot.slane %v1419, 1
        %v1482 = vrot.slane %v1420, 1
        %v1483 = vsel %vm894, %v1481, %v1482
        %v1484 = vrot.slane %v1421, 1
        %v1485 = vsel %vm894, %v1482, %v1484
        %v1502 = vadd.f32 %v1381, %v1448
        %v1503 = vadd.f32 %v1382, %v1450
        %v1504 = vadd.f32 %v1383, %v1453
        %v1505 = vadd.f32 %v1384, %v1455
        %v1506 = vadd.f32 %v1385, %v1458
        %v1507 = vadd.f32 %v1386, %v1460
        %v1508 = vadd.f32 %v1387, %v1463
        %v1509 = vadd.f32 %v1388, %v1465
        %v1510 = vadd.f32 %v1389, %v1468
        %v1511 = vadd.f32 %v1390, %v1470
        %v1512 = vadd.f32 %v1391, %v1473
        %v1513 = vadd.f32 %v1392, %v1475
        %v1514 = vadd.f32 %v1393, %v1478
        %v1515 = vadd.f32 %v1394, %v1480
        %v1516 = vadd.f32 %v1395, %v1483
        %v1517 = vadd.f32 %v1396, %v1485
        %v1518 = vperm.slane %v811, 0
        %v1519 = vmul.f32 %v778, %v1518
        %v1520 = vmul.f32 %v683, %v1518
        %v1521 = vmul.f32 %v795, %v1518
        %v1522 = vmul.f32 %v780, %v1518
        %v1523 = vmul.f32 %v689, %v1518
        %v1524 = vmul.f32 %v797, %v1518
        %v1525 = vmul.f32 %v782, %v1518
        %v1526 = vmul.f32 %v695, %v1518
        %v1527 = vmul.f32 %v799, %v1518
        %v1528 = vmul.f32 %v784, %v1518
        %v1529 = vmul.f32 %v701, %v1518
        %v1530 = vmul.f32 %v801, %v1518
        %v1531 = vmul.f32 %v786, %v1518
        %v1532 = vmul.f32 %v707, %v1518
        %v1533 = vmul.f32 %v803, %v1518
        %v1534 = vmul.f32 %v788, %v1518
        %v1535 = vmul.f32 %v713, %v1518
        %v1536 = vmul.f32 %v805, %v1518
        %v1537 = vmul.f32 %v790, %v1518
        %v1538 = vmul.f32 %v719, %v1518
        %v1539 = vmul.f32 %v807, %v1518
        %v1540 = vmul.f32 %v792, %v1518
        %v1541 = vmul.f32 %v725, %v1518
        %v1542 = vmul.f32 %v809, %v1518
        %v1567 = vrot.slane %v1519, 2
        %v1568 = vrot.slane %v1520, 2
        %v1569 = vsel %vm1016, %v1567, %v1568
        %v1570 = vrot.slane %v1521, 2
        %v1571 = vsel %vm1016, %v1568, %v1570
        %v1572 = vrot.slane %v1522, 2
        %v1573 = vrot.slane %v1523, 2
        %v1574 = vsel %vm1016, %v1572, %v1573
        %v1575 = vrot.slane %v1524, 2
        %v1576 = vsel %vm1016, %v1573, %v1575
        %v1577 = vrot.slane %v1525, 2
        %v1578 = vrot.slane %v1526, 2
        %v1579 = vsel %vm1016, %v1577, %v1578
        %v1580 = vrot.slane %v1527, 2
        %v1581 = vsel %vm1016, %v1578, %v1580
        %v1582 = vrot.slane %v1528, 2
        %v1583 = vrot.slane %v1529, 2
        %v1584 = vsel %vm1016, %v1582, %v1583
        %v1585 = vrot.slane %v1530, 2
        %v1586 = vsel %vm1016, %v1583, %v1585
        %v1587 = vrot.slane %v1531, 2
        %v1588 = vrot.slane %v1532, 2
        %v1589 = vsel %vm1016, %v1587, %v1588
        %v1590 = vrot.slane %v1533, 2
        %v1591 = vsel %vm1016, %v1588, %v1590
        %v1592 = vrot.slane %v1534, 2
        %v1593 = vrot.slane %v1535, 2
        %v1594 = vsel %vm1016, %v1592, %v1593
        %v1595 = vrot.slane %v1536, 2
        %v1596 = vsel %vm1016, %v1593, %v1595
        %v1597 = vrot.slane %v1537, 2
        %v1598 = vrot.slane %v1538, 2
        %v1599 = vsel %vm1016, %v1597, %v1598
        %v1600 = vrot.slane %v1539, 2
        %v1601 = vsel %vm1016, %v1598, %v1600
        %v1602 = vrot.slane %v1540, 2
        %v1603 = vrot.slane %v1541, 2
        %v1604 = vsel %vm1016, %v1602, %v1603
        %v1605 = vrot.slane %v1542, 2
        %v1606 = vsel %vm1016, %v1603, %v1605
        %v1623 = vadd.f32 %v1502, %v1569
        %v1624 = vadd.f32 %v1503, %v1571
        %v1625 = vadd.f32 %v1504, %v1574
        %v1626 = vadd.f32 %v1505, %v1576
        %v1627 = vadd.f32 %v1506, %v1579
        %v1628 = vadd.f32 %v1507, %v1581
        %v1629 = vadd.f32 %v1508, %v1584
        %v1630 = vadd.f32 %v1509, %v1586
        %v1631 = vadd.f32 %v1510, %v1589
        %v1632 = vadd.f32 %v1511, %v1591
        %v1633 = vadd.f32 %v1512, %v1594
        %v1634 = vadd.f32 %v1513, %v1596
        %v1635 = vadd.f32 %v1514, %v1599
        %v1636 = vadd.f32 %v1515, %v1601
        %v1637 = vadd.f32 %v1516, %v1604
        %v1638 = vadd.f32 %v1517, %v1606
        %v1655 = vrot.slane %v1623, 2
        %v1656 = vrot.slane %v1623, 4
        %v1657 = vrot.slane %v1623, 6
        %v1658 = vrot.slane %v1624, 2
        %v1659 = vrot.slane %v1624, 4
        %v1660 = vrot.slane %v1624, 6
        %v1661 = vrot.slane %v1625, 2
        %v1662 = vrot.slane %v1625, 4
        %v1663 = vrot.slane %v1625, 6
        %v1664 = vrot.slane %v1626, 2
        %v1665 = vrot.slane %v1626, 4
        %v1666 = vrot.slane %v1626, 6
        %v1667 = vrot.slane %v1627, 2
        %v1668 = vrot.slane %v1627, 4
        %v1669 = vrot.slane %v1627, 6
        %v1670 = vrot.slane %v1628, 2
        %v1671 = vrot.slane %v1628, 4
        %v1672 = vrot.slane %v1628, 6
        %v1673 = vrot.slane %v1629, 2
        %v1674 = vrot.slane %v1629, 4
        %v1675 = vrot.slane %v1629, 6
        %v1676 = vrot.slane %v1630, 2
        %v1677 = vrot.slane %v1630, 4
        %v1678 = vrot.slane %v1630, 6
        %v1679 = vrot.slane %v1631, 2
        %v1680 = vrot.slane %v1631, 4
        %v1681 = vrot.slane %v1631, 6
        %v1682 = vrot.slane %v1632, 2
        %v1683 = vrot.slane %v1632, 4
        %v1684 = vrot.slane %v1632, 6
        %v1685 = vrot.slane %v1633, 2
        %v1686 = vrot.slane %v1633, 4
        %v1687 = vrot.slane %v1633, 6
        %v1688 = vrot.slane %v1634, 2
        %v1689 = vrot.slane %v1634, 4
        %v1690 = vrot.slane %v1634, 6
        %v1691 = vrot.slane %v1635, 2
        %v1692 = vrot.slane %v1635, 4
        %v1693 = vrot.slane %v1635, 6
        %v1694 = vrot.slane %v1636, 2
        %v1695 = vrot.slane %v1636, 4
        %v1696 = vrot.slane %v1636, 6
        %v1697 = vrot.slane %v1637, 2
        %v1698 = vrot.slane %v1637, 4
        %v1699 = vrot.slane %v1637, 6
        %v1700 = vrot.slane %v1638, 2
        %v1701 = vrot.slane %v1638, 4
        %v1702 = vrot.slane %v1638, 6
        %v1751 = vld [vmem:[#allocation6] sm:$0x1]
        %v1753 = vperm.slane %v1751, 0
        %v1754 = vrot.slane %v1753, 2
        %v1755 = vrot.slane %v1753, 4
        %v1756 = vrot.slane %v1753, 6
        %v1757 = vrot.slane %v1753, 1
        %v1758 = vrot.slane %v1754, 1
        %v1759 = vrot.slane %v1755, 1
        %v1760 = vrot.slane %v1756, 1
        %v1769 = vadd.f32 %v1623, %v1753
        %v1770 = vadd.f32 %v1655, %v1757
        %v1771 = vadd.f32 %v1656, %v1754
        %v1772 = vadd.f32 %v1657, %v1758
        %v1773 = vadd.f32 %v1624, %v1755
        %v1774 = vadd.f32 %v1658, %v1759
        %v1775 = vadd.f32 %v1659, %v1756
        %v1776 = vadd.f32 %v1660, %v1760
        %v1777 = vadd.f32 %v1625, %v1753
        %v1778 = vadd.f32 %v1661, %v1757
        %v1779 = vadd.f32 %v1662, %v1754
        %v1780 = vadd.f32 %v1663, %v1758
        %v1781 = vadd.f32 %v1626, %v1755
        %v1782 = vadd.f32 %v1664, %v1759
        %v1783 = vadd.f32 %v1665, %v1756
        %v1784 = vadd.f32 %v1666, %v1760
        %v1785 = vadd.f32 %v1627, %v1753
        %v1786 = vadd.f32 %v1667, %v1757
        %v1787 = vadd.f32 %v1668, %v1754
        %v1788 = vadd.f32 %v1669, %v1758
        %v1789 = vadd.f32 %v1628, %v1755
        %v1790 = vadd.f32 %v1670, %v1759
        %v1791 = vadd.f32 %v1671, %v1756
        %v1792 = vadd.f32 %v1672, %v1760
        %v1793 = vadd.f32 %v1629, %v1753
        %v1794 = vadd.f32 %v1673, %v1757
        %v1795 = vadd.f32 %v1674, %v1754
        %v1796 = vadd.f32 %v1675, %v1758
        %v1797 = vadd.f32 %v1630, %v1755
        %v1798 = vadd.f32 %v1676, %v1759
        %v1799 = vadd.f32 %v1677, %v1756
        %v1800 = vadd.f32 %v1678, %v1760
        %v1801 = vadd.f32 %v1631, %v1753
        %v1802 = vadd.f32 %v1679, %v1757
        %v1803 = vadd.f32 %v1680, %v1754
        %v1804 = vadd.f32 %v1681, %v1758
        %v1805 = vadd.f32 %v1632, %v1755
        %v1806 = vadd.f32 %v1682, %v1759
        %v1807 = vadd.f32 %v1683, %v1756
        %v1808 = vadd.f32 %v1684, %v1760
        %v1809 = vadd.f32 %v1633, %v1753
        %v1810 = vadd.f32 %v1685, %v1757
        %v1811 = vadd.f32 %v1686, %v1754
        %v1812 = vadd.f32 %v1687, %v1758
        %v1813 = vadd.f32 %v1634, %v1755
        %v1814 = vadd.f32 %v1688, %v1759
        %v1815 = vadd.f32 %v1689, %v1756
        %v1816 = vadd.f32 %v1690, %v1760
        %v1817 = vadd.f32 %v1635, %v1753
        %v1818 = vadd.f32 %v1691, %v1757
        %v1819 = vadd.f32 %v1692, %v1754
        %v1820 = vadd.f32 %v1693, %v1758
        %v1821 = vadd.f32 %v1636, %v1755
        %v1822 = vadd.f32 %v1694, %v1759
        %v1823 = vadd.f32 %v1695, %v1756
        %v1824 = vadd.f32 %v1696, %v1760
        %v1825 = vadd.f32 %v1637, %v1753
        %v1826 = vadd.f32 %v1697, %v1757
        %v1827 = vadd.f32 %v1698, %v1754
        %v1828 = vadd.f32 %v1699, %v1758
        %v1829 = vadd.f32 %v1638, %v1755
        %v1830 = vadd.f32 %v1700, %v1759
        %v1831 = vadd.f32 %v1701, %v1756
        %v1832 = vadd.f32 %v1702, %v1760
        %v1833 = vmax.f32 %v1769, 0.0
        %v1834 = vmax.f32 %v1770, 0.0
        %v1835 = vmax.f32 %v1771, 0.0
        %v1836 = vmax.f32 %v1772, 0.0
        %v1837 = vmax.f32 %v1773, 0.0
        %v1838 = vmax.f32 %v1774, 0.0
        %v1839 = vmax.f32 %v1775, 0.0
        %v1840 = vmax.f32 %v1776, 0.0
        %v1841 = vmax.f32 %v1777, 0.0
        %v1842 = vmax.f32 %v1778, 0.0
        %v1843 = vmax.f32 %v1779, 0.0
        %v1844 = vmax.f32 %v1780, 0.0
        %v1845 = vmax.f32 %v1781, 0.0
        %v1846 = vmax.f32 %v1782, 0.0
        %v1847 = vmax.f32 %v1783, 0.0
        %v1848 = vmax.f32 %v1784, 0.0
        %v1849 = vmax.f32 %v1785, 0.0
        %v1850 = vmax.f32 %v1786, 0.0
        %v1851 = vmax.f32 %v1787, 0.0
        %v1852 = vmax.f32 %v1788, 0.0
        %v1853 = vmax.f32 %v1789, 0.0
        %v1854 = vmax.f32 %v1790, 0.0
        %v1855 = vmax.f32 %v1791, 0.0
        %v1856 = vmax.f32 %v1792, 0.0
        %v1857 = vmax.f32 %v1793, 0.0
        %v1858 = vmax.f32 %v1794, 0.0
        %v1859 = vmax.f32 %v1795, 0.0
        %v1860 = vmax.f32 %v1796, 0.0
        %v1861 = vmax.f32 %v1797, 0.0
        %v1862 = vmax.f32 %v1798, 0.0
        %v1863 = vmax.f32 %v1799, 0.0
        %v1864 = vmax.f32 %v1800, 0.0
        %v1865 = vmax.f32 %v1801, 0.0
        %v1866 = vmax.f32 %v1802, 0.0
        %v1867 = vmax.f32 %v1803, 0.0
        %v1868 = vmax.f32 %v1804, 0.0
        %v1869 = vmax.f32 %v1805, 0.0
        %v1870 = vmax.f32 %v1806, 0.0
        %v1871 = vmax.f32 %v1807, 0.0
        %v1872 = vmax.f32 %v1808, 0.0
        %v1873 = vmax.f32 %v1809, 0.0
        %v1874 = vmax.f32 %v1810, 0.0
        %v1875 = vmax.f32 %v1811, 0.0
        %v1876 = vmax.f32 %v1812, 0.0
        %v1877 = vmax.f32 %v1813, 0.0
        %v1878 = vmax.f32 %v1814, 0.0
        %v1879 = vmax.f32 %v1815, 0.0
        %v1880 = vmax.f32 %v1816, 0.0
        %v1881 = vmax.f32 %v1817, 0.0
        %v1882 = vmax.f32 %v1818, 0.0
        %v1883 = vmax.f32 %v1819, 0.0
        %v1884 = vmax.f32 %v1820, 0.0
        %v1885 = vmax.f32 %v1821, 0.0
        %v1886 = vmax.f32 %v1822, 0.0
        %v1887 = vmax.f32 %v1823, 0.0
        %v1888 = vmax.f32 %v1824, 0.0
        %v1889 = vmax.f32 %v1825, 0.0
        %v1890 = vmax.f32 %v1826, 0.0
        %v1891 = vmax.f32 %v1827, 0.0
        %v1892 = vmax.f32 %v1828, 0.0
        %v1893 = vmax.f32 %v1829, 0.0
        %v1894 = vmax.f32 %v1830, 0.0
        %v1895 = vmax.f32 %v1831, 0.0
        %v1896 = vmax.f32 %v1832, 0.0
        %v1961 = vperm.slane %v1833, 0
        %v1962 = vperm.slane %v1834, 0
        %v1963 = vperm.slane %v1835, 0
        %v1964 = vperm.slane %v1836, 0
        %v1965 = vperm.slane %v1837, 0
        %v1966 = vperm.slane %v1838, 0
        %v1967 = vperm.slane %v1839, 0
        %v1968 = vperm.slane %v1840, 0
        %v1969 = vperm.slane %v1841, 0
        %v1970 = vperm.slane %v1842, 0
        %v1971 = vperm.slane %v1843, 0
        %v1972 = vperm.slane %v1844, 0
        %v1973 = vperm.slane %v1845, 0
        %v1974 = vperm.slane %v1846, 0
        %v1975 = vperm.slane %v1847, 0
        %v1976 = vperm.slane %v1848, 0
        %v1977 = vperm.slane %v1849, 0
        %v1978 = vperm.slane %v1850, 0
        %v1979 = vperm.slane %v1851, 0
        %v1980 = vperm.slane %v1852, 0
        %v1981 = vperm.slane %v1853, 0
        %v1982 = vperm.slane %v1854, 0
        %v1983 = vperm.slane %v1855, 0
        %v1984 = vperm.slane %v1856, 0
        %v1985 = vperm.slane %v1857, 0
        %v1986 = vperm.slane %v1858, 0
        %v1987 = vperm.slane %v1859, 0
        %v1988 = vperm.slane %v1860, 0
        %v1989 = vperm.slane %v1861, 0
        %v1990 = vperm.slane %v1862, 0
        %v1991 = vperm.slane %v1863, 0
        %v1992 = vperm.slane %v1864, 0
        %v1993 = vperm.slane %v1865, 0
        %v1994 = vperm.slane %v1866, 0
        %v1995 = vperm.slane %v1867, 0
        %v1996 = vperm.slane %v1868, 0
        %v1997 = vperm.slane %v1869, 0
        %v1998 = vperm.slane %v1870, 0
        %v1999 = vperm.slane %v1871, 0
        %v2000 = vperm.slane %v1872, 0
        %v2001 = vperm.slane %v1873, 0
        %v2002 = vperm.slane %v1874, 0
        %v2003 = vperm.slane %v1875, 0
        %v2004 = vperm.slane %v1876, 0
        %v2005 = vperm.slane %v1877, 0
        %v2006 = vperm.slane %v1878, 0
        %v2007 = vperm.slane %v1879, 0
        %v2008 = vperm.slane %v1880, 0
        %v2009 = vperm.slane %v1881, 0
        %v2010 = vperm.slane %v1882, 0
        %v2011 = vperm.slane %v1883, 0
        %v2012 = vperm.slane %v1884, 0
        %v2013 = vperm.slane %v1885, 0
        %v2014 = vperm.slane %v1886, 0
        %v2015 = vperm.slane %v1887, 0
        %v2016 = vperm.slane %v1888, 0
        %v2017 = vperm.slane %v1889, 0
        %v2018 = vperm.slane %v1890, 0
        %v2019 = vperm.slane %v1891, 0
        %v2020 = vperm.slane %v1892, 0
        %v2021 = vperm.slane %v1893, 0
        %v2022 = vperm.slane %v1894, 0
        %v2023 = vperm.slane %v1895, 0
        %v2024 = vperm.slane %v1896, 0
        %vm2025 = vcmask 1041409
        %v2026 = vsel %vm2025, %v1962, %v1961
        %vm2027 = vcmask 1042434
        %v2028 = vsel %vm2027, %v1963, %v2026
        %vm2029 = vcmask 1043459
        %v2030 = vsel %vm2029, %v1964, %v2028
        %vm2031 = vcmask 1044484
        %v2032 = vsel %vm2031, %v1965, %v2030
        %vm2033 = vcmask 1045509
        %v2034 = vsel %vm2033, %v1966, %v2032
        %vm2035 = vcmask 1046534
        %v2036 = vsel %vm2035, %v1967, %v2034
        %vm2037 = vcmask 1047559
        %v2038 = vsel %vm2037, %v1968, %v2036
        %v2039 = vsel %vm2025, %v1970, %v1969
        %v2040 = vsel %vm2027, %v1971, %v2039
        %v2041 = vsel %vm2029, %v1972, %v2040
        %v2042 = vsel %vm2031, %v1973, %v2041
        %v2043 = vsel %vm2033, %v1974, %v2042
        %v2044 = vsel %vm2035, %v1975, %v2043
        %v2045 = vsel %vm2037, %v1976, %v2044
        %v2046 = vsel %vm2025, %v1978, %v1977
        %v2047 = vsel %vm2027, %v1979, %v2046
        %v2048 = vsel %vm2029, %v1980, %v2047
        %v2049 = vsel %vm2031, %v1981, %v2048
        %v2050 = vsel %vm2033, %v1982, %v2049
        %v2051 = vsel %vm2035, %v1983, %v2050
        %v2052 = vsel %vm2037, %v1984, %v2051
        %v2053 = vsel %vm2025, %v1986, %v1985
        %v2054 = vsel %vm2027, %v1987, %v2053
        %v2055 = vsel %vm2029, %v1988, %v2054
        %v2056 = vsel %vm2031, %v1989, %v2055
        %v2057 = vsel %vm2033, %v1990, %v2056
        %v2058 = vsel %vm2035, %v1991, %v2057
        %v2059 = vsel %vm2037, %v1992, %v2058
        %v2060 = vsel %vm2025, %v1994, %v1993
        %v2061 = vsel %vm2027, %v1995, %v2060
        %v2062 = vsel %vm2029, %v1996, %v2061
        %v2063 = vsel %vm2031, %v1997, %v2062
        %v2064 = vsel %vm2033, %v1998, %v2063
        %v2065 = vsel %vm2035, %v1999, %v2064
        %v2066 = vsel %vm2037, %v2000, %v2065
        %v2067 = vsel %vm2025, %v2002, %v2001
        %v2068 = vsel %vm2027, %v2003, %v2067
        %v2069 = vsel %vm2029, %v2004, %v2068
        %v2070 = vsel %vm2031, %v2005, %v2069
        %v2071 = vsel %vm2033, %v2006, %v2070
        %v2072 = vsel %vm2035, %v2007, %v2071
        %v2073 = vsel %vm2037, %v2008, %v2072
        %v2074 = vsel %vm2025, %v2010, %v2009
        %v2075 = vsel %vm2027, %v2011, %v2074
        %v2076 = vsel %vm2029, %v2012, %v2075
        %v2077 = vsel %vm2031, %v2013, %v2076
        %v2078 = vsel %vm2033, %v2014, %v2077
        %v2079 = vsel %vm2035, %v2015, %v2078
        %v2080 = vsel %vm2037, %v2016, %v2079
        %v2081 = vsel %vm2025, %v2018, %v2017
        %v2082 = vsel %vm2027, %v2019, %v2081
        %v2083 = vsel %vm2029, %v2020, %v2082
        %v2084 = vsel %vm2031, %v2021, %v2083
        %v2085 = vsel %vm2033, %v2022, %v2084
        %v2086 = vsel %vm2035, %v2023, %v2085
        %v2087 = vsel %vm2037, %v2024, %v2086
        %v2088 = vrot.slane %v2038, 7
        %v2089 = vrot.slane %v2045, 7
        %v2090 = vrot.slane %v2052, 7
        %v2091 = vrot.slane %v2059, 7
        %v2092 = vrot.slane %v2066, 7
        %v2093 = vrot.slane %v2073, 7
        %v2094 = vrot.slane %v2080, 7
        %v2095 = vrot.slane %v2087, 7
        %v2104 = vsel %vm675, 0.0, %v2088
        %v2105 = vsel %vm675, 0.0, %v2089
        %v2106 = vsel %vm675, 0.0, %v2090
        %v2107 = vsel %vm675, 0.0, %v2091
        %v2108 = vsel %vm675, 0.0, %v2092
        %v2109 = vsel %vm675, 0.0, %v2093
        %v2110 = vsel %vm675, 0.0, %v2094
        %v2111 = vsel %vm675, 0.0, %v2095
        %v2112 = vsel %vm675, %v2088, 0.0
        %v2113 = vsel %vm675, %v2089, 0.0
        %v2114 = vsel %vm675, %v2090, 0.0
        %v2115 = vsel %vm675, %v2091, 0.0
        %v2116 = vsel %vm675, %v2092, 0.0
        %v2117 = vsel %vm675, %v2093, 0.0
        %v2118 = vsel %vm675, %v2094, 0.0
        %v2119 = vsel %vm675, %v2095, 0.0
        %v2124 = vrot.slane %v776, 2
        %v2125 = vrot.slane %v776, 4
        %v2126 = vrot.slane %v776, 6
        %v2127 = vrot.slane %v2105, 2
        %v2128 = vrot.slane %v2105, 4
        %v2129 = vrot.slane %v2105, 6
        %v2130 = vrot.slane %v2107, 2
        %v2131 = vrot.slane %v2107, 4
        %v2132 = vrot.slane %v2107, 6
        %v2133 = vrot.slane %v2109, 2
        %v2134 = vrot.slane %v2109, 4
        %v2135 = vrot.slane %v2109, 6
        %v2136 = vld [vmem:[#allocation7] sm:$0xff]
        %v2137 = vld [vmem:[#allocation7 + $0x8] sm:$0xff]
        %v2138 = vld [vmem:[#allocation7 + $0x10] sm:$0xff]
        %v2139 = vld [vmem:[#allocation7 + $0x18] sm:$0xff]
        %vm2144 = vmor %vm675, %vm2027
        %vm2145 = vmor %vm2144, %vm2031
        %vm2146 = vmor %vm2145, %vm2035
        %v2147 = vrot.slane %v776, 7
        %v2148 = vrot.slane %v2147, 2
        %v2149 = vrot.slane %v2124, 7
        %v2150 = vsel %vm2146, %v2148, %v2149
        %v2151 = vrot.slane %v2149, 2
        %v2152 = vrot.slane %v2125, 7
        %v2153 = vsel %vm2146, %v2151, %v2152
        %v2154 = vrot.slane %v2152, 2
        %v2155 = vrot.slane %v2126, 7
        %v2156 = vsel %vm2146, %v2154, %v2155
        %v2157 = vrot.slane %v2155, 2
        %v2158 = vrot.slane %v793, 7
        %v2159 = vsel %vm2146, %v2157, %v2158
        %v2160 = vrot.slane %v2105, 7
        %v2161 = vrot.slane %v2160, 2
        %v2162 = vrot.slane %v2127, 7
        %v2163 = vsel %vm2146, %v2161, %v2162
        %v2164 = vrot.slane %v2162, 2
        %v2165 = vrot.slane %v2128, 7
        %v2166 = vsel %vm2146, %v2164, %v2165
        %v2167 = vrot.slane %v2165, 2
        %v2168 = vrot.slane %v2129, 7
        %v2169 = vsel %vm2146, %v2167, %v2168
        %v2170 = vrot.slane %v2168, 2
        %v2171 = vrot.slane %v2113, 7
        %v2172 = vsel %vm2146, %v2170, %v2171
        %v2173 = vrot.slane %v2107, 7
        %v2174 = vrot.slane %v2173, 2
        %v2175 = vrot.slane %v2130, 7
        %v2176 = vsel %vm2146, %v2174, %v2175
        %v2177 = vrot.slane %v2175, 2
        %v2178 = vrot.slane %v2131, 7
        %v2179 = vsel %vm2146, %v2177, %v2178
        %v2180 = vrot.slane %v2178, 2
        %v2181 = vrot.slane %v2132, 7
        %v2182 = vsel %vm2146, %v2180, %v2181
        %v2183 = vrot.slane %v2181, 2
        %v2184 = vrot.slane %v2115, 7
        %v2185 = vsel %vm2146, %v2183, %v2184
        %v2186 = vrot.slane %v2109, 7
        %v2187 = vrot.slane %v2186, 2
        %v2188 = vrot.slane %v2133, 7
        %v2189 = vsel %vm2146, %v2187, %v2188
        %v2190 = vrot.slane %v2188, 2
        %v2191 = vrot.slane %v2134, 7
        %v2192 = vsel %vm2146, %v2190, %v2191
        %v2193 = vrot.slane %v2191, 2
        %v2194 = vrot.slane %v2135, 7
        %v2195 = vsel %vm2146, %v2193, %v2194
        %v2196 = vrot.slane %v2194, 2
        %v2197 = vrot.slane %v2117, 7
        %v2198 = vsel %vm2146, %v2196, %v2197
        %s2199 = scalar_lea.vmem [#allocation7], 32
        %v2200 = vld [vmem:[%s2199] sm:$0xff]
        %v2201 = vld [vmem:[%s2199 + $0x8] sm:$0xff]
        %v2202 = vld [vmem:[%s2199 + $0x10] sm:$0xff]
        %v2203 = vld [vmem:[%s2199 + $0x18] sm:$0xff]
        %v2204 = vperm.slane %v2150, 0
        %v2205 = vperm.slane %v2153, 0
        %v2206 = vperm.slane %v2156, 0
        %v2207 = vperm.slane %v2159, 0
        %v2208 = vperm.slane %v2163, 0
        %v2209 = vperm.slane %v2166, 0
        %v2210 = vperm.slane %v2169, 0
        %v2211 = vperm.slane %v2172, 0
        %v2212 = vperm.slane %v2176, 0
        %v2213 = vperm.slane %v2179, 0
        %v2214 = vperm.slane %v2182, 0
        %v2215 = vperm.slane %v2185, 0
        %v2216 = vperm.slane %v2189, 0
        %v2217 = vperm.slane %v2192, 0
        %v2218 = vperm.slane %v2195, 0
        %v2219 = vperm.slane %v2198, 0
        %v2220 = vsel %vm2025, %v2205, %v2204
        %v2221 = vsel %vm2027, %v2206, %v2220
        %v2222 = vsel %vm2029, %v2207, %v2221
        %v2223 = vsel %vm2031, %v2208, %v2222
        %v2224 = vsel %vm2033, %v2209, %v2223
        %v2225 = vsel %vm2035, %v2210, %v2224
        %v2226 = vsel %vm2037, %v2211, %v2225
        %v2227 = vsel %vm2025, %v2213, %v2212
        %v2228 = vsel %vm2027, %v2214, %v2227
        %v2229 = vsel %vm2029, %v2215, %v2228
        %v2230 = vsel %vm2031, %v2216, %v2229
        %v2231 = vsel %vm2033, %v2217, %v2230
        %v2232 = vsel %vm2035, %v2218, %v2231
        %v2233 = vsel %vm2037, %v2219, %v2232
        %vm2234 = vcmask 261120
        %v2235 = vsel %vm2234, %v2226, 0
        %v2237 = vsel %vm2234, %v2233, 0
        %2239 = vmatpush.msra.mxu0 0.0
        %2240 = vmatpush.msra.mxu0 0.0
        %2241 = vmatpush.msra.mxu0 0.0
        %2242 = vmatpush.msra.mxu0 0.0
        %2243 = vmatpush.msra.mxu0 0.0
        %2244 = vmatpush.msra.mxu0 0.0
        %2245 = vmatpush.msra.mxu0 0.0
        %2246 = vmatpush.msra.mxu0 0.0
        %2247 = vmatpush.msra.mxu0 0.0
        %2248 = vmatpush.msra.mxu0 0.0
        %2249 = vmatpush.msra.mxu0 0.0
        %2250 = vmatpush.msra.mxu0 0.0
        %2251 = vmatpush.msra.mxu0 %v2203
        %2252 = vmatpush.msra.mxu0 %v2202
        %2253 = vmatpush.msra.mxu0 %v2201
        %2254 = vmatpush.msra.mxu0 %v2200
        %2255 = vmatmul.f32.gmra.mxu0 %v2235
        %v2256 = vpop.f32.mrf.mxu0
        %v2257 = vadd.f32 0.0, %v2256
        %2258 = vmatmul.f32.gmra.mxu0 %v2237
        %v2259 = vpop.f32.mrf.mxu0
        %v2260 = vadd.f32 0.0, %v2259
        %2261 = vdwg.mxu0
        %v2262 = vperm.slane %v776, 0
        %v2263 = vperm.slane %v2124, 0
        %v2264 = vperm.slane %v2125, 0
        %v2265 = vperm.slane %v2126, 0
        %v2266 = vperm.slane %v2105, 0
        %v2267 = vperm.slane %v2127, 0
        %v2268 = vperm.slane %v2128, 0
        %v2269 = vperm.slane %v2129, 0
        %v2270 = vperm.slane %v2107, 0
        %v2271 = vperm.slane %v2130, 0
        %v2272 = vperm.slane %v2131, 0
        %v2273 = vperm.slane %v2132, 0
        %v2274 = vperm.slane %v2109, 0
        %v2275 = vperm.slane %v2133, 0
        %v2276 = vperm.slane %v2134, 0
        %v2277 = vperm.slane %v2135, 0
        %v2278 = vsel %vm2025, %v2263, %v2262
        %v2279 = vsel %vm2027, %v2264, %v2278
        %v2280 = vsel %vm2029, %v2265, %v2279
        %v2281 = vsel %vm2031, %v2266, %v2280
        %v2282 = vsel %vm2033, %v2267, %v2281
        %v2283 = vsel %vm2035, %v2268, %v2282
        %v2284 = vsel %vm2037, %v2269, %v2283
        %v2285 = vsel %vm2025, %v2271, %v2270
        %v2286 = vsel %vm2027, %v2272, %v2285
        %v2287 = vsel %vm2029, %v2273, %v2286
        %v2288 = vsel %vm2031, %v2274, %v2287
        %v2289 = vsel %vm2033, %v2275, %v2288
        %v2290 = vsel %vm2035, %v2276, %v2289
        %v2291 = vsel %vm2037, %v2277, %v2290
        %v2292 = vsel %vm2234, %v2284, 0
        %v2294 = vsel %vm2234, %v2291, 0
        %2296 = vmatpush.msra.mxu0 0.0
        %2297 = vmatpush.msra.mxu0 0.0
        %2298 = vmatpush.msra.mxu0 0.0
        %2299 = vmatpush.msra.mxu0 0.0
        %2300 = vmatpush.msra.mxu0 0.0
        %2301 = vmatpush.msra.mxu0 0.0
        %2302 = vmatpush.msra.mxu0 0.0
        %2303 = vmatpush.msra.mxu0 0.0
        %2304 = vmatpush.msra.mxu0 0.0
        %2305 = vmatpush.msra.mxu0 0.0
        %2306 = vmatpush.msra.mxu0 0.0
        %2307 = vmatpush.msra.mxu0 0.0
        %2308 = vmatpush.msra.mxu0 %v2139
        %2309 = vmatpush.msra.mxu0 %v2138
        %2310 = vmatpush.msra.mxu0 %v2137
        %2311 = vmatpush.msra.mxu0 %v2136
        %2312 = vmatmul.f32.gmra.mxu0 %v2292
        %v2313 = vpop.f32.mrf.mxu0
        %v2314 = vadd.f32 %v2257, %v2313
        %2315 = vmatmul.f32.gmra.mxu0 %v2294
        %v2316 = vpop.f32.mrf.mxu0
        %v2317 = vadd.f32 %v2260, %v2316
        %2318 = vdwg.mxu0
        %2319 = vst.sshfl [vmem:[#allocation1] sm:$0xff pattern:$0x73625140] %v776
        %2320 = vst.sshfl [vmem:[#allocation1 + $0x20] sm:$0xff pattern:$0x73625140] %v793
        %s2321 = scalar_lea.vmem [#allocation1], 1
        %v2322 = vld [vmem:[%s2321] ss:$4 sm:$0xff]
        %s2323 = scalar_lea.vmem [#allocation1], 2
        %v2324 = vld [vmem:[%s2323] ss:$4 sm:$0xff]
        %s2325 = scalar_lea.vmem [#allocation1], 3
        %v2326 = vld [vmem:[%s2325] ss:$4 sm:$0xff]
        %s2327 = scalar_lea.vmem [#allocation1], 32
        %v2328 = vld [vmem:[%s2327] ss:$4 sm:$0xff]
        %2329 = vst.sshfl [vmem:[#allocation1] sm:$0xff pattern:$0x73625140] %v2105
        %2330 = vst.sshfl [vmem:[#allocation1 + $0x20] sm:$0xff pattern:$0x73625140] %v2113
        %v2331 = vld [vmem:[%s2321] ss:$4 sm:$0xff]
        %v2332 = vld [vmem:[%s2323] ss:$4 sm:$0xff]
        %v2333 = vld [vmem:[%s2325] ss:$4 sm:$0xff]
        %v2334 = vld [vmem:[%s2327] ss:$4 sm:$0xff]
        %2335 = vst.sshfl [vmem:[#allocation1] sm:$0xff pattern:$0x73625140] %v2107
        %2336 = vst.sshfl [vmem:[#allocation1 + $0x20] sm:$0xff pattern:$0x73625140] %v2115
        %v2337 = vld [vmem:[%s2321] ss:$4 sm:$0xff]
        %v2338 = vld [vmem:[%s2323] ss:$4 sm:$0xff]
        %v2339 = vld [vmem:[%s2325] ss:$4 sm:$0xff]
        %v2340 = vld [vmem:[%s2327] ss:$4 sm:$0xff]
        %2341 = vst.sshfl [vmem:[#allocation1] sm:$0xff pattern:$0x73625140] %v2109
        %2342 = vst.sshfl [vmem:[#allocation1 + $0x20] sm:$0xff pattern:$0x73625140] %v2117
        %v2343 = vld [vmem:[%s2321] ss:$4 sm:$0xff]
        %v2344 = vld [vmem:[%s2323] ss:$4 sm:$0xff]
        %v2345 = vld [vmem:[%s2325] ss:$4 sm:$0xff]
        %v2346 = vld [vmem:[%s2327] ss:$4 sm:$0xff]
        %s2347 = scalar_lea.vmem [#allocation7], 64
        %v2348 = vld [vmem:[%s2347] sm:$0xff]
        %v2349 = vld [vmem:[%s2347 + $0x8] sm:$0xff]
        %v2350 = vld [vmem:[%s2347 + $0x10] sm:$0xff]
        %v2351 = vld [vmem:[%s2347 + $0x18] sm:$0xff]
        %v2352 = vperm.slane %v2322, 0
        %v2353 = vperm.slane %v2324, 0
        %v2354 = vperm.slane %v2326, 0
        %v2355 = vperm.slane %v2328, 0
        %v2356 = vperm.slane %v2331, 0
        %v2357 = vperm.slane %v2332, 0
        %v2358 = vperm.slane %v2333, 0
        %v2359 = vperm.slane %v2334, 0
        %v2360 = vperm.slane %v2337, 0
        %v2361 = vperm.slane %v2338, 0
        %v2362 = vperm.slane %v2339, 0
        %v2363 = vperm.slane %v2340, 0
        %v2364 = vperm.slane %v2343, 0
        %v2365 = vperm.slane %v2344, 0
        %v2366 = vperm.slane %v2345, 0
        %v2367 = vperm.slane %v2346, 0
        %v2368 = vsel %vm2025, %v2353, %v2352
        %v2369 = vsel %vm2027, %v2354, %v2368
        %v2370 = vsel %vm2029, %v2355, %v2369
        %v2371 = vsel %vm2031, %v2356, %v2370
        %v2372 = vsel %vm2033, %v2357, %v2371
        %v2373 = vsel %vm2035, %v2358, %v2372
        %v2374 = vsel %vm2037, %v2359, %v2373
        %v2375 = vsel %vm2025, %v2361, %v2360
        %v2376 = vsel %vm2027, %v2362, %v2375
        %v2377 = vsel %vm2029, %v2363, %v2376
        %v2378 = vsel %vm2031, %v2364, %v2377
        %v2379 = vsel %vm2033, %v2365, %v2378
        %v2380 = vsel %vm2035, %v2366, %v2379
        %v2381 = vsel %vm2037, %v2367, %v2380
        %v2382 = vsel %vm2234, %v2374, 0
        %v2384 = vsel %vm2234, %v2381, 0
        %2386 = vmatpush.msra.mxu0 0.0
        %2387 = vmatpush.msra.mxu0 0.0
        %2388 = vmatpush.msra.mxu0 0.0
        %2389 = vmatpush.msra.mxu0 0.0
        %2390 = vmatpush.msra.mxu0 0.0
        %2391 = vmatpush.msra.mxu0 0.0
        %2392 = vmatpush.msra.mxu0 0.0
        %2393 = vmatpush.msra.mxu0 0.0
        %2394 = vmatpush.msra.mxu0 0.0
        %2395 = vmatpush.msra.mxu0 0.0
        %2396 = vmatpush.msra.mxu0 0.0
        %2397 = vmatpush.msra.mxu0 0.0
        %2398 = vmatpush.msra.mxu0 %v2351
        %2399 = vmatpush.msra.mxu0 %v2350
        %2400 = vmatpush.msra.mxu0 %v2349
        %2401 = vmatpush.msra.mxu0 %v2348
        %2402 = vmatmul.f32.gmra.mxu0 %v2382
        %v2403 = vpop.f32.mrf.mxu0
        %v2404 = vadd.f32 0.0, %v2403
        %2405 = vmatmul.f32.gmra.mxu0 %v2384
        %v2406 = vpop.f32.mrf.mxu0
        %v2407 = vadd.f32 0.0, %v2406
        %2408 = vdwg.mxu0
        %v2409 = vadd.f32 %v2314, %v2404
        %v2410 = vadd.f32 %v2317, %v2407
        %v2415 = vrot.slane %v2104, 2
        %v2416 = vrot.slane %v2104, 4
        %v2417 = vrot.slane %v2104, 6
        %v2418 = vrot.slane %v2106, 2
        %v2419 = vrot.slane %v2106, 4
        %v2420 = vrot.slane %v2106, 6
        %v2421 = vrot.slane %v2108, 2
        %v2422 = vrot.slane %v2108, 4
        %v2423 = vrot.slane %v2108, 6
        %v2424 = vrot.slane %v2110, 2
        %v2425 = vrot.slane %v2110, 4
        %v2426 = vrot.slane %v2110, 6
        %s2427 = scalar_lea.vmem [#allocation7], 96
        %v2428 = vld [vmem:[%s2427] sm:$0xff]
        %v2429 = vld [vmem:[%s2427 + $0x8] sm:$0xff]
        %v2430 = vld [vmem:[%s2427 + $0x10] sm:$0xff]
        %v2431 = vld [vmem:[%s2427 + $0x18] sm:$0xff]
        %v2432 = vperm.slane %v2104, 0
        %v2433 = vperm.slane %v2415, 0
        %v2434 = vperm.slane %v2416, 0
        %v2435 = vperm.slane %v2417, 0
        %v2436 = vperm.slane %v2106, 0
        %v2437 = vperm.slane %v2418, 0
        %v2438 = vperm.slane %v2419, 0
        %v2439 = vperm.slane %v2420, 0
        %v2440 = vperm.slane %v2108, 0
        %v2441 = vperm.slane %v2421, 0
        %v2442 = vperm.slane %v2422, 0
        %v2443 = vperm.slane %v2423, 0
        %v2444 = vperm.slane %v2110, 0
        %v2445 = vperm.slane %v2424, 0
        %v2446 = vperm.slane %v2425, 0
        %v2447 = vperm.slane %v2426, 0
        %v2448 = vsel %vm2025, %v2433, %v2432
        %v2449 = vsel %vm2027, %v2434, %v2448
        %v2450 = vsel %vm2029, %v2435, %v2449
        %v2451 = vsel %vm2031, %v2436, %v2450
        %v2452 = vsel %vm2033, %v2437, %v2451
        %v2453 = vsel %vm2035, %v2438, %v2452
        %v2454 = vsel %vm2037, %v2439, %v2453
        %v2455 = vsel %vm2025, %v2441, %v2440
        %v2456 = vsel %vm2027, %v2442, %v2455
        %v2457 = vsel %vm2029, %v2443, %v2456
        %v2458 = vsel %vm2031, %v2444, %v2457
        %v2459 = vsel %vm2033, %v2445, %v2458
        %v2460 = vsel %vm2035, %v2446, %v2459
        %v2461 = vsel %vm2037, %v2447, %v2460
        %v2462 = vsel %vm2234, %v2454, 0
        %v2464 = vsel %vm2234, %v2461, 0
        %2466 = vmatpush.msra.mxu0 0.0
        %2467 = vmatpush.msra.mxu0 0.0
        %2468 = vmatpush.msra.mxu0 0.0
        %2469 = vmatpush.msra.mxu0 0.0
        %2470 = vmatpush.msra.mxu0 0.0
        %2471 = vmatpush.msra.mxu0 0.0
        %2472 = vmatpush.msra.mxu0 0.0
        %2473 = vmatpush.msra.mxu0 0.0
        %2474 = vmatpush.msra.mxu0 0.0
        %2475 = vmatpush.msra.mxu0 0.0
        %2476 = vmatpush.msra.mxu0 0.0
        %2477 = vmatpush.msra.mxu0 0.0
        %2478 = vmatpush.msra.mxu0 %v2431
        %2479 = vmatpush.msra.mxu0 %v2430
        %2480 = vmatpush.msra.mxu0 %v2429
        %2481 = vmatpush.msra.mxu0 %v2428
        %2482 = vmatmul.f32.gmra.mxu0 %v2462
        %v2483 = vpop.f32.mrf.mxu0
        %v2484 = vadd.f32 0.0, %v2483
        %2485 = vmatmul.f32.gmra.mxu0 %v2464
        %v2486 = vpop.f32.mrf.mxu0
        %v2487 = vadd.f32 0.0, %v2486
        %2488 = vdwg.mxu0
        %v2489 = vadd.f32 %v2409, %v2484
        %v2490 = vadd.f32 %v2410, %v2487
        %v2495 = vrot.slane %v2104, 7
        %v2496 = vrot.slane %v2495, 2
        %v2497 = vrot.slane %v2415, 7
        %v2498 = vsel %vm2146, %v2496, %v2497
        %v2499 = vrot.slane %v2497, 2
        %v2500 = vrot.slane %v2416, 7
        %v2501 = vsel %vm2146, %v2499, %v2500
        %v2502 = vrot.slane %v2500, 2
        %v2503 = vrot.slane %v2417, 7
        %v2504 = vsel %vm2146, %v2502, %v2503
        %v2505 = vrot.slane %v2503, 2
        %v2506 = vrot.slane %v2112, 7
        %v2507 = vsel %vm2146, %v2505, %v2506
        %v2508 = vrot.slane %v2106, 7
        %v2509 = vrot.slane %v2508, 2
        %v2510 = vrot.slane %v2418, 7
        %v2511 = vsel %vm2146, %v2509, %v2510
        %v2512 = vrot.slane %v2510, 2
        %v2513 = vrot.slane %v2419, 7
        %v2514 = vsel %vm2146, %v2512, %v2513
        %v2515 = vrot.slane %v2513, 2
        %v2516 = vrot.slane %v2420, 7
        %v2517 = vsel %vm2146, %v2515, %v2516
        %v2518 = vrot.slane %v2516, 2
        %v2519 = vrot.slane %v2114, 7
        %v2520 = vsel %vm2146, %v2518, %v2519
        %v2521 = vrot.slane %v2108, 7
        %v2522 = vrot.slane %v2521, 2
        %v2523 = vrot.slane %v2421, 7
        %v2524 = vsel %vm2146, %v2522, %v2523
        %v2525 = vrot.slane %v2523, 2
        %v2526 = vrot.slane %v2422, 7
        %v2527 = vsel %vm2146, %v2525, %v2526
        %v2528 = vrot.slane %v2526, 2
        %v2529 = vrot.slane %v2423, 7
        %v2530 = vsel %vm2146, %v2528, %v2529
        %v2531 = vrot.slane %v2529, 2
        %v2532 = vrot.slane %v2116, 7
        %v2533 = vsel %vm2146, %v2531, %v2532
        %v2534 = vrot.slane %v2110, 7
        %v2535 = vrot.slane %v2534, 2
        %v2536 = vrot.slane %v2424, 7
        %v2537 = vsel %vm2146, %v2535, %v2536
        %v2538 = vrot.slane %v2536, 2
        %v2539 = vrot.slane %v2425, 7
        %v2540 = vsel %vm2146, %v2538, %v2539
        %v2541 = vrot.slane %v2539, 2
        %v2542 = vrot.slane %v2426, 7
        %v2543 = vsel %vm2146, %v2541, %v2542
        %v2544 = vrot.slane %v2542, 2
        %v2545 = vrot.slane %v2118, 7
        %v2546 = vsel %vm2146, %v2544, %v2545
        %s2547 = scalar_lea.vmem [#allocation7], 128
        %v2548 = vld [vmem:[%s2547] sm:$0xff]
        %v2549 = vld [vmem:[%s2547 + $0x8] sm:$0xff]
        %v2550 = vld [vmem:[%s2547 + $0x10] sm:$0xff]
        %v2551 = vld [vmem:[%s2547 + $0x18] sm:$0xff]
        %v2552 = vperm.slane %v2498, 0
        %v2553 = vperm.slane %v2501, 0
        %v2554 = vperm.slane %v2504, 0
        %v2555 = vperm.slane %v2507, 0
        %v2556 = vperm.slane %v2511, 0
        %v2557 = vperm.slane %v2514, 0
        %v2558 = vperm.slane %v2517, 0
        %v2559 = vperm.slane %v2520, 0
        %v2560 = vperm.slane %v2524, 0
        %v2561 = vperm.slane %v2527, 0
        %v2562 = vperm.slane %v2530, 0
        %v2563 = vperm.slane %v2533, 0
        %v2564 = vperm.slane %v2537, 0
        %v2565 = vperm.slane %v2540, 0
        %v2566 = vperm.slane %v2543, 0
        %v2567 = vperm.slane %v2546, 0
        %v2568 = vsel %vm2025, %v2553, %v2552
        %v2569 = vsel %vm2027, %v2554, %v2568
        %v2570 = vsel %vm2029, %v2555, %v2569
        %v2571 = vsel %vm2031, %v2556, %v2570
        %v2572 = vsel %vm2033, %v2557, %v2571
        %v2573 = vsel %vm2035, %v2558, %v2572
        %v2574 = vsel %vm2037, %v2559, %v2573
        %v2575 = vsel %vm2025, %v2561, %v2560
        %v2576 = vsel %vm2027, %v2562, %v2575
        %v2577 = vsel %vm2029, %v2563, %v2576
        %v2578 = vsel %vm2031, %v2564, %v2577
        %v2579 = vsel %vm2033, %v2565, %v2578
        %v2580 = vsel %vm2035, %v2566, %v2579
        %v2581 = vsel %vm2037, %v2567, %v2580
        %v2582 = vsel %vm2234, %v2574, 0
        %v2584 = vsel %vm2234, %v2581, 0
        %2586 = vmatpush.msra.mxu0 0.0
        %2587 = vmatpush.msra.mxu0 0.0
        %2588 = vmatpush.msra.mxu0 0.0
        %2589 = vmatpush.msra.mxu0 0.0
        %2590 = vmatpush.msra.mxu0 0.0
        %2591 = vmatpush.msra.mxu0 0.0
        %2592 = vmatpush.msra.mxu0 0.0
        %2593 = vmatpush.msra.mxu0 0.0
        %2594 = vmatpush.msra.mxu0 0.0
        %2595 = vmatpush.msra.mxu0 0.0
        %2596 = vmatpush.msra.mxu0 0.0
        %2597 = vmatpush.msra.mxu0 0.0
        %2598 = vmatpush.msra.mxu0 %v2551
        %2599 = vmatpush.msra.mxu0 %v2550
        %2600 = vmatpush.msra.mxu0 %v2549
        %2601 = vmatpush.msra.mxu0 %v2548
        %2602 = vmatmul.f32.gmra.mxu0 %v2582
        %v2603 = vpop.f32.mrf.mxu0
        %v2604 = vadd.f32 0.0, %v2603
        %2605 = vmatmul.f32.gmra.mxu0 %v2584
        %v2606 = vpop.f32.mrf.mxu0
        %v2607 = vadd.f32 0.0, %v2606
        %2608 = vdwg.mxu0
        %v2609 = vadd.f32 %v2489, %v2604
        %v2610 = vadd.f32 %v2490, %v2607
        %2611 = vst.sshfl [vmem:[#allocation1] sm:$0xff pattern:$0x73625140] %v2104
        %2612 = vst.sshfl [vmem:[#allocation1 + $0x20] sm:$0xff pattern:$0x73625140] %v2112
        %s2613 = scalar_lea.vmem [#allocation1], 1
        %v2614 = vld [vmem:[%s2613] ss:$4 sm:$0xff]
        %s2615 = scalar_lea.vmem [#allocation1], 2
        %v2616 = vld [vmem:[%s2615] ss:$4 sm:$0xff]
        %s2617 = scalar_lea.vmem [#allocation1], 3
        %v2618 = vld [vmem:[%s2617] ss:$4 sm:$0xff]
        %s2619 = scalar_lea.vmem [#allocation1], 32
        %v2620 = vld [vmem:[%s2619] ss:$4 sm:$0xff]
        %2621 = vst.sshfl [vmem:[#allocation1] sm:$0xff pattern:$0x73625140] %v2106
        %2622 = vst.sshfl [vmem:[#allocation1 + $0x20] sm:$0xff pattern:$0x73625140] %v2114
        %v2623 = vld [vmem:[%s2613] ss:$4 sm:$0xff]
        %v2624 = vld [vmem:[%s2615] ss:$4 sm:$0xff]
        %v2625 = vld [vmem:[%s2617] ss:$4 sm:$0xff]
        %v2626 = vld [vmem:[%s2619] ss:$4 sm:$0xff]
        %2627 = vst.sshfl [vmem:[#allocation1] sm:$0xff pattern:$0x73625140] %v2108
        %2628 = vst.sshfl [vmem:[#allocation1 + $0x20] sm:$0xff pattern:$0x73625140] %v2116
        %v2629 = vld [vmem:[%s2613] ss:$4 sm:$0xff]
        %v2630 = vld [vmem:[%s2615] ss:$4 sm:$0xff]
        %v2631 = vld [vmem:[%s2617] ss:$4 sm:$0xff]
        %v2632 = vld [vmem:[%s2619] ss:$4 sm:$0xff]
        %2633 = vst.sshfl [vmem:[#allocation1] sm:$0xff pattern:$0x73625140] %v2110
        %2634 = vst.sshfl [vmem:[#allocation1 + $0x20] sm:$0xff pattern:$0x73625140] %v2118
        %v2635 = vld [vmem:[%s2613] ss:$4 sm:$0xff]
        %v2636 = vld [vmem:[%s2615] ss:$4 sm:$0xff]
        %v2637 = vld [vmem:[%s2617] ss:$4 sm:$0xff]
        %v2638 = vld [vmem:[%s2619] ss:$4 sm:$0xff]
        %s2639 = scalar_lea.vmem [#allocation7], 160
        %v2640 = vld [vmem:[%s2639] sm:$0xff]
        %v2641 = vld [vmem:[%s2639 + $0x8] sm:$0xff]
        %v2642 = vld [vmem:[%s2639 + $0x10] sm:$0xff]
        %v2643 = vld [vmem:[%s2639 + $0x18] sm:$0xff]
        %v2644 = vperm.slane %v2614, 0
        %v2645 = vperm.slane %v2616, 0
        %v2646 = vperm.slane %v2618, 0
        %v2647 = vperm.slane %v2620, 0
        %v2648 = vperm.slane %v2623, 0
        %v2649 = vperm.slane %v2624, 0
        %v2650 = vperm.slane %v2625, 0
        %v2651 = vperm.slane %v2626, 0
        %v2652 = vperm.slane %v2629, 0
        %v2653 = vperm.slane %v2630, 0
        %v2654 = vperm.slane %v2631, 0
        %v2655 = vperm.slane %v2632, 0
        %v2656 = vperm.slane %v2635, 0
        %v2657 = vperm.slane %v2636, 0
        %v2658 = vperm.slane %v2637, 0
        %v2659 = vperm.slane %v2638, 0
        %v2660 = vsel %vm2025, %v2645, %v2644
        %v2661 = vsel %vm2027, %v2646, %v2660
        %v2662 = vsel %vm2029, %v2647, %v2661
        %v2663 = vsel %vm2031, %v2648, %v2662
        %v2664 = vsel %vm2033, %v2649, %v2663
        %v2665 = vsel %vm2035, %v2650, %v2664
        %v2666 = vsel %vm2037, %v2651, %v2665
        %v2667 = vsel %vm2025, %v2653, %v2652
        %v2668 = vsel %vm2027, %v2654, %v2667
        %v2669 = vsel %vm2029, %v2655, %v2668
        %v2670 = vsel %vm2031, %v2656, %v2669
        %v2671 = vsel %vm2033, %v2657, %v2670
        %v2672 = vsel %vm2035, %v2658, %v2671
        %v2673 = vsel %vm2037, %v2659, %v2672
        %v2674 = vsel %vm2234, %v2666, 0
        %v2676 = vsel %vm2234, %v2673, 0
        %2678 = vmatpush.msra.mxu0 0.0
        %2679 = vmatpush.msra.mxu0 0.0
        %2680 = vmatpush.msra.mxu0 0.0
        %2681 = vmatpush.msra.mxu0 0.0
        %2682 = vmatpush.msra.mxu0 0.0
        %2683 = vmatpush.msra.mxu0 0.0
        %2684 = vmatpush.msra.mxu0 0.0
        %2685 = vmatpush.msra.mxu0 0.0
        %2686 = vmatpush.msra.mxu0 0.0
        %2687 = vmatpush.msra.mxu0 0.0
        %2688 = vmatpush.msra.mxu0 0.0
        %2689 = vmatpush.msra.mxu0 0.0
        %2690 = vmatpush.msra.mxu0 %v2643
        %2691 = vmatpush.msra.mxu0 %v2642
        %2692 = vmatpush.msra.mxu0 %v2641
        %2693 = vmatpush.msra.mxu0 %v2640
        %2694 = vmatmul.f32.gmra.mxu0 %v2674
        %v2695 = vpop.f32.mrf.mxu0
        %v2696 = vadd.f32 0.0, %v2695
        %2697 = vmatmul.f32.gmra.mxu0 %v2676
        %v2698 = vpop.f32.mrf.mxu0
        %v2699 = vadd.f32 0.0, %v2698
        %2700 = vdwg.mxu0
        %v2701 = vadd.f32 %v2609, %v2696
        %v2702 = vadd.f32 %v2610, %v2699
        %v2704 = vrot.slane %v2111, 2
        %v2705 = vrot.slane %v2111, 4
        %v2706 = vrot.slane %v2111, 6
        %s2707 = scalar_lea.vmem [#allocation7], 192
        %v2708 = vld [vmem:[%s2707] sm:$0xff]
        %v2709 = vld [vmem:[%s2707 + $0x8] sm:$0xff]
        %v2710 = vld [vmem:[%s2707 + $0x10] sm:$0xff]
        %v2711 = vld [vmem:[%s2707 + $0x18] sm:$0xff]
        %v2712 = vperm.slane %v2111, 0
        %v2713 = vperm.slane %v2704, 0
        %v2714 = vperm.slane %v2705, 0
        %v2715 = vperm.slane %v2706, 0
        %v2716 = vsel %vm2025, %v2267, %v2266
        %v2717 = vsel %vm2027, %v2268, %v2716
        %v2718 = vsel %vm2029, %v2269, %v2717
        %v2719 = vsel %vm2031, %v2270, %v2718
        %v2720 = vsel %vm2033, %v2271, %v2719
        %v2721 = vsel %vm2035, %v2272, %v2720
        %v2722 = vsel %vm2037, %v2273, %v2721
        %v2723 = vsel %vm2025, %v2275, %v2274
        %v2724 = vsel %vm2027, %v2276, %v2723
        %v2725 = vsel %vm2029, %v2277, %v2724
        %v2726 = vsel %vm2031, %v2712, %v2725
        %v2727 = vsel %vm2033, %v2713, %v2726
        %v2728 = vsel %vm2035, %v2714, %v2727
        %v2729 = vsel %vm2037, %v2715, %v2728
        %v2730 = vsel %vm2234, %v2722, 0
        %v2732 = vsel %vm2234, %v2729, 0
        %2734 = vmatpush.msra.mxu0 0.0
        %2735 = vmatpush.msra.mxu0 0.0
        %2736 = vmatpush.msra.mxu0 0.0
        %2737 = vmatpush.msra.mxu0 0.0
        %2738 = vmatpush.msra.mxu0 0.0
        %2739 = vmatpush.msra.mxu0 0.0
        %2740 = vmatpush.msra.mxu0 0.0
        %2741 = vmatpush.msra.mxu0 0.0
        %2742 = vmatpush.msra.mxu0 0.0
        %2743 = vmatpush.msra.mxu0 0.0
        %2744 = vmatpush.msra.mxu0 0.0
        %2745 = vmatpush.msra.mxu0 0.0
        %2746 = vmatpush.msra.mxu0 %v2711
        %2747 = vmatpush.msra.mxu0 %v2710
        %2748 = vmatpush.msra.mxu0 %v2709
        %2749 = vmatpush.msra.mxu0 %v2708
        %2750 = vmatmul.f32.gmra.mxu0 %v2730
        %v2751 = vpop.f32.mrf.mxu0
        %v2752 = vadd.f32 0.0, %v2751
        %2753 = vmatmul.f32.gmra.mxu0 %v2732
        %v2754 = vpop.f32.mrf.mxu0
        %v2755 = vadd.f32 0.0, %v2754
        %2756 = vdwg.mxu0
        %v2757 = vadd.f32 %v2701, %v2752
        %v2758 = vadd.f32 %v2702, %v2755
        %v2760 = vrot.slane %v2111, 7
        %v2761 = vrot.slane %v2760, 2
        %v2762 = vrot.slane %v2704, 7
        %v2763 = vsel %vm2146, %v2761, %v2762
        %v2764 = vrot.slane %v2762, 2
        %v2765 = vrot.slane %v2705, 7
        %v2766 = vsel %vm2146, %v2764, %v2765
        %v2767 = vrot.slane %v2765, 2
        %v2768 = vrot.slane %v2706, 7
        %v2769 = vsel %vm2146, %v2767, %v2768
        %v2770 = vrot.slane %v2768, 2
        %v2771 = vrot.slane %v2119, 7
        %v2772 = vsel %vm2146, %v2770, %v2771
        %s2773 = scalar_lea.vmem [#allocation7], 224
        %v2774 = vld [vmem:[%s2773] sm:$0xff]
        %v2775 = vld [vmem:[%s2773 + $0x8] sm:$0xff]
        %v2776 = vld [vmem:[%s2773 + $0x10] sm:$0xff]
        %v2777 = vld [vmem:[%s2773 + $0x18] sm:$0xff]
        %v2778 = vperm.slane %v2763, 0
        %v2779 = vperm.slane %v2766, 0
        %v2780 = vperm.slane %v2769, 0
        %v2781 = vperm.slane %v2772, 0
        %v2782 = vsel %vm2025, %v2209, %v2208
        %v2783 = vsel %vm2027, %v2210, %v2782
        %v2784 = vsel %vm2029, %v2211, %v2783
        %v2785 = vsel %vm2031, %v2212, %v2784
        %v2786 = vsel %vm2033, %v2213, %v2785
        %v2787 = vsel %vm2035, %v2214, %v2786
        %v2788 = vsel %vm2037, %v2215, %v2787
        %v2789 = vsel %vm2025, %v2217, %v2216
        %v2790 = vsel %vm2027, %v2218, %v2789
        %v2791 = vsel %vm2029, %v2219, %v2790
        %v2792 = vsel %vm2031, %v2778, %v2791
        %v2793 = vsel %vm2033, %v2779, %v2792
        %v2794 = vsel %vm2035, %v2780, %v2793
        %v2795 = vsel %vm2037, %v2781, %v2794
        %v2796 = vsel %vm2234, %v2788, 0
        %v2798 = vsel %vm2234, %v2795, 0
        %2800 = vmatpush.msra.mxu0 0.0
        %2801 = vmatpush.msra.mxu0 0.0
        %2802 = vmatpush.msra.mxu0 0.0
        %2803 = vmatpush.msra.mxu0 0.0
        %2804 = vmatpush.msra.mxu0 0.0
        %2805 = vmatpush.msra.mxu0 0.0
        %2806 = vmatpush.msra.mxu0 0.0
        %2807 = vmatpush.msra.mxu0 0.0
        %2808 = vmatpush.msra.mxu0 0.0
        %2809 = vmatpush.msra.mxu0 0.0
        %2810 = vmatpush.msra.mxu0 0.0
        %2811 = vmatpush.msra.mxu0 0.0
        %2812 = vmatpush.msra.mxu0 %v2777
        %2813 = vmatpush.msra.mxu0 %v2776
        %2814 = vmatpush.msra.mxu0 %v2775
        %2815 = vmatpush.msra.mxu0 %v2774
        %2816 = vmatmul.f32.gmra.mxu0 %v2796
        %v2817 = vpop.f32.mrf.mxu0
        %v2818 = vadd.f32 0.0, %v2817
        %2819 = vmatmul.f32.gmra.mxu0 %v2798
        %v2820 = vpop.f32.mrf.mxu0
        %v2821 = vadd.f32 0.0, %v2820
        %2822 = vdwg.mxu0
        %v2823 = vadd.f32 %v2757, %v2818
        %v2824 = vadd.f32 %v2758, %v2821
        %2825 = vst.sshfl [vmem:[#allocation1] sm:$0xff pattern:$0x73625140] %v2105
        %2826 = vst.sshfl [vmem:[#allocation1 + $0x20] sm:$0xff pattern:$0x73625140] %v2113
        %s2827 = scalar_lea.vmem [#allocation1], 1
        %v2828 = vld [vmem:[%s2827] ss:$4 sm:$0xff]
        %s2829 = scalar_lea.vmem [#allocation1], 2
        %v2830 = vld [vmem:[%s2829] ss:$4 sm:$0xff]
        %s2831 = scalar_lea.vmem [#allocation1], 3
        %v2832 = vld [vmem:[%s2831] ss:$4 sm:$0xff]
        %s2833 = scalar_lea.vmem [#allocation1], 32
        %v2834 = vld [vmem:[%s2833] ss:$4 sm:$0xff]
        %2835 = vst.sshfl [vmem:[#allocation1] sm:$0xff pattern:$0x73625140] %v2107
        %2836 = vst.sshfl [vmem:[#allocation1 + $0x20] sm:$0xff pattern:$0x73625140] %v2115
        %v2837 = vld [vmem:[%s2827] ss:$4 sm:$0xff]
        %v2838 = vld [vmem:[%s2829] ss:$4 sm:$0xff]
        %v2839 = vld [vmem:[%s2831] ss:$4 sm:$0xff]
        %v2840 = vld [vmem:[%s2833] ss:$4 sm:$0xff]
        %2841 = vst.sshfl [vmem:[#allocation1] sm:$0xff pattern:$0x73625140] %v2109
        %2842 = vst.sshfl [vmem:[#allocation1 + $0x20] sm:$0xff pattern:$0x73625140] %v2117
        %v2843 = vld [vmem:[%s2827] ss:$4 sm:$0xff]
        %v2844 = vld [vmem:[%s2829] ss:$4 sm:$0xff]
        %v2845 = vld [vmem:[%s2831] ss:$4 sm:$0xff]
        %v2846 = vld [vmem:[%s2833] ss:$4 sm:$0xff]
        %2847 = vst.sshfl [vmem:[#allocation1] sm:$0xff pattern:$0x73625140] %v2111
        %2848 = vst.sshfl [vmem:[#allocation1 + $0x20] sm:$0xff pattern:$0x73625140] %v2119
        %v2849 = vld [vmem:[%s2827] ss:$4 sm:$0xff]
        %v2850 = vld [vmem:[%s2829] ss:$4 sm:$0xff]
        %v2851 = vld [vmem:[%s2831] ss:$4 sm:$0xff]
        %v2852 = vld [vmem:[%s2833] ss:$4 sm:$0xff]
        %s2853 = scalar_lea.vmem [#allocation7], 256
        %v2854 = vld [vmem:[%s2853] sm:$0xff]
        %v2855 = vld [vmem:[%s2853 + $0x8] sm:$0xff]
        %v2856 = vld [vmem:[%s2853 + $0x10] sm:$0xff]
        %v2857 = vld [vmem:[%s2853 + $0x18] sm:$0xff]
        %v2858 = vperm.slane %v2828, 0
        %v2859 = vperm.slane %v2830, 0
        %v2860 = vperm.slane %v2832, 0
        %v2861 = vperm.slane %v2834, 0
        %v2862 = vperm.slane %v2837, 0
        %v2863 = vperm.slane %v2838, 0
        %v2864 = vperm.slane %v2839, 0
        %v2865 = vperm.slane %v2840, 0
        %v2866 = vperm.slane %v2843, 0
        %v2867 = vperm.slane %v2844, 0
        %v2868 = vperm.slane %v2845, 0
        %v2869 = vperm.slane %v2846, 0
        %v2870 = vperm.slane %v2849, 0
        %v2871 = vperm.slane %v2850, 0
        %v2872 = vperm.slane %v2851, 0
        %v2873 = vperm.slane %v2852, 0
        %v2874 = vsel %vm2025, %v2859, %v2858
        %v2875 = vsel %vm2027, %v2860, %v2874
        %v2876 = vsel %vm2029, %v2861, %v2875
        %v2877 = vsel %vm2031, %v2862, %v2876
        %v2878 = vsel %vm2033, %v2863, %v2877
        %v2879 = vsel %vm2035, %v2864, %v2878
        %v2880 = vsel %vm2037, %v2865, %v2879
        %v2881 = vsel %vm2025, %v2867, %v2866
        %v2882 = vsel %vm2027, %v2868, %v2881
        %v2883 = vsel %vm2029, %v2869, %v2882
        %v2884 = vsel %vm2031, %v2870, %v2883
        %v2885 = vsel %vm2033, %v2871, %v2884
        %v2886 = vsel %vm2035, %v2872, %v2885
        %v2887 = vsel %vm2037, %v2873, %v2886
        %v2888 = vsel %vm2234, %v2880, 0
        %v2890 = vsel %vm2234, %v2887, 0
        %2892 = vmatpush.msra.mxu0 0.0
        %2893 = vmatpush.msra.mxu0 0.0
        %2894 = vmatpush.msra.mxu0 0.0
        %2895 = vmatpush.msra.mxu0 0.0
        %2896 = vmatpush.msra.mxu0 0.0
        %2897 = vmatpush.msra.mxu0 0.0
        %2898 = vmatpush.msra.mxu0 0.0
        %2899 = vmatpush.msra.mxu0 0.0
        %2900 = vmatpush.msra.mxu0 0.0
        %2901 = vmatpush.msra.mxu0 0.0
        %2902 = vmatpush.msra.mxu0 0.0
        %2903 = vmatpush.msra.mxu0 0.0
        %2904 = vmatpush.msra.mxu0 %v2857
        %2905 = vmatpush.msra.mxu0 %v2856
        %2906 = vmatpush.msra.mxu0 %v2855
        %2907 = vmatpush.msra.mxu0 %v2854
        %2908 = vmatmul.f32.gmra.mxu0 %v2888
        %v2909 = vpop.f32.mrf.mxu0
        %v2910 = vadd.f32 0.0, %v2909
        %2911 = vmatmul.f32.gmra.mxu0 %v2890
        %v2912 = vpop.f32.mrf.mxu0
        %v2913 = vadd.f32 0.0, %v2912
        %2914 = vdwg.mxu0
        %v2915 = vadd.f32 %v2823, %v2910
        %v2916 = vadd.f32 %v2824, %v2913
        %v2917 = vld [vmem:[%s4] sm:$0x1]
        %v2919 = vperm.slane %v2917, 0
        %v2921 = vadd.f32 %v2915, %v2919
        %v2922 = vadd.f32 %v2916, %v2919
        %v2923 = vmax.f32 %v2921, 0.0
        %v2924 = vmax.f32 %v2922, 0.0
        %v2927 = vrot.slane %v2923, 4
        %v2928 = vrot.slane %v2924, 4
        %v2929 = vrot.slane %v2923, 7
        %v2930 = vrot.slane %v2927, 7
        %v2931 = vrot.slane %v2924, 7
        %v2932 = vrot.slane %v2928, 7
        %v2937 = vsel %vm675, 0.0, %v2929
        %v2938 = vsel %vm675, 0.0, %v2930
        %v2939 = vsel %vm675, 0.0, %v2931
        %v2940 = vsel %vm675, 0.0, %v2932
        %vm2941 = vcmask 1044480
        %v2942 = vsel %vm2941, %v776, 0.0
        %v2943 = vsel %vm2941, %v2937, 0.0
        %v2944 = vsel %vm2941, %v2938, 0.0
        %v2945 = vsel %vm2941, %v2939, 0.0
        %v2946 = vsel %vm2941, %v2940, 0.0
        %v2947 = vld [vmem:[#allocation9] sm:$0xff]
        %v2948 = vld [vmem:[#allocation9 + $0x8] sm:$0xff]
        %v2949 = vld [vmem:[#allocation9 + $0x10] sm:$0xff]
        %v2950 = vld [vmem:[#allocation9 + $0x18] sm:$0xff]
        %v2951 = vld [vmem:[#allocation9 + $0x20] sm:$0xff]
        %v2952 = vld [vmem:[#allocation9 + $0x28] sm:$0xff]
        %v2953 = vld [vmem:[#allocation9 + $0x30] sm:$0xff]
        %v2954 = vld [vmem:[#allocation9 + $0x38] sm:$0xff]
        %v2959 = vrot.slane %v2942, 4
        %v2960 = vrot.slane %v2943, 4
        %v2961 = vrot.slane %v2944, 4
        %v2962 = vrot.slane %v2945, 4
        %vm2963 = vcmask 1042432
        %vm2964 = vcmask 1046532
        %vm2965 = vmor %vm2963, %vm2964
        %v2966 = vrot.slane %v2942, 5
        %v2967 = vrot.slane %v2966, 4
        %v2968 = vrot.slane %v2959, 5
        %v2969 = vsel %vm2965, %v2967, %v2968
        %v2970 = vrot.slane %v2943, 5
        %v2971 = vrot.slane %v2970, 4
        %v2972 = vrot.slane %v2960, 5
        %v2973 = vsel %vm2965, %v2971, %v2972
        %v2974 = vrot.slane %v2944, 5
        %v2975 = vrot.slane %v2974, 4
        %v2976 = vrot.slane %v2961, 5
        %v2977 = vsel %vm2965, %v2975, %v2976
        %v2978 = vrot.slane %v2945, 5
        %v2979 = vrot.slane %v2978, 4
        %v2980 = vrot.slane %v2962, 5
        %v2981 = vsel %vm2965, %v2979, %v2980
        %s2982 = scalar_lea.vmem [#allocation9], 64
        %v2983 = vld [vmem:[%s2982] sm:$0xff]
        %v2984 = vld [vmem:[%s2982 + $0x8] sm:$0xff]
        %v2985 = vld [vmem:[%s2982 + $0x10] sm:$0xff]
        %v2986 = vld [vmem:[%s2982 + $0x18] sm:$0xff]
        %v2987 = vld [vmem:[%s2982 + $0x20] sm:$0xff]
        %v2988 = vld [vmem:[%s2982 + $0x28] sm:$0xff]
        %v2989 = vld [vmem:[%s2982 + $0x30] sm:$0xff]
        %v2990 = vld [vmem:[%s2982 + $0x38] sm:$0xff]
        %2991 = vst [vmem:[#allocation1] ss:$2 sm:$0xff] %v2969
        %s2992 = scalar_lea.vmem [#allocation1], 1
        %2993 = vst [vmem:[%s2992] ss:$2 sm:$0xff] %v2973
        %s2994 = scalar_lea.vmem [#allocation1], 16
        %2995 = vst [vmem:[%s2994] ss:$2 sm:$0xff] %v2977
        %s2996 = scalar_lea.vmem [#allocation1], 17
        %2997 = vst [vmem:[%s2996] ss:$2 sm:$0xff] %v2981
        %v2998 = vld.sshfl [vmem:[#allocation1] sm:$0xff pattern:$0x75316420]
        %v2999 = vld.sshfl [vmem:[#allocation1 + $0x10] sm:$0xff pattern:$0x75316420]
        %vm3000 = vcmask 523264
        %v3001 = vsel %vm3000, %v2998, 0
        %v3003 = vsel %vm3000, %v2999, 0
        %3005 = vmatpush.msra.mxu0 0.0
        %3006 = vmatpush.msra.mxu0 0.0
        %3007 = vmatpush.msra.mxu0 0.0
        %3008 = vmatpush.msra.mxu0 0.0
        %3009 = vmatpush.msra.mxu0 0.0
        %3010 = vmatpush.msra.mxu0 0.0
        %3011 = vmatpush.msra.mxu0 0.0
        %3012 = vmatpush.msra.mxu0 0.0
        %3013 = vmatpush.msra.mxu0 %v2990
        %3014 = vmatpush.msra.mxu0 %v2989
        %3015 = vmatpush.msra.mxu0 %v2988
        %3016 = vmatpush.msra.mxu0 %v2987
        %3017 = vmatpush.msra.mxu0 %v2986
        %3018 = vmatpush.msra.mxu0 %v2985
        %3019 = vmatpush.msra.mxu0 %v2984
        %3020 = vmatpush.msra.mxu0 %v2983
        %3021 = vmatmul.f32.gmra.mxu0 %v3001
        %v3022 = vpop.f32.mrf.mxu0
        %v3023 = vadd.f32 0.0, %v3022
        %3024 = vmatmul.f32.gmra.mxu0 %v3003
        %v3025 = vpop.f32.mrf.mxu0
        %v3026 = vadd.f32 0.0, %v3025
        %3027 = vdwg.mxu0
        %3028 = vst [vmem:[#allocation1] ss:$2 sm:$0xff] %v2942
        %s3029 = scalar_lea.vmem [#allocation1], 1
        %3030 = vst [vmem:[%s3029] ss:$2 sm:$0xff] %v2943
        %s3031 = scalar_lea.vmem [#allocation1], 16
        %3032 = vst [vmem:[%s3031] ss:$2 sm:$0xff] %v2944
        %s3033 = scalar_lea.vmem [#allocation1], 17
        %3034 = vst [vmem:[%s3033] ss:$2 sm:$0xff] %v2945
        %v3035 = vld.sshfl [vmem:[#allocation1] sm:$0xff pattern:$0x75316420]
        %v3036 = vld.sshfl [vmem:[#allocation1 + $0x10] sm:$0xff pattern:$0x75316420]
        %v3037 = vsel %vm3000, %v3035, 0
        %v3039 = vsel %vm3000, %v3036, 0
        %3041 = vmatpush.msra.mxu0 0.0
        %3042 = vmatpush.msra.mxu0 0.0
        %3043 = vmatpush.msra.mxu0 0.0
        %3044 = vmatpush.msra.mxu0 0.0
        %3045 = vmatpush.msra.mxu0 0.0
        %3046 = vmatpush.msra.mxu0 0.0
        %3047 = vmatpush.msra.mxu0 0.0
        %3048 = vmatpush.msra.mxu0 0.0
        %3049 = vmatpush.msra.mxu0 %v2954
        %3050 = vmatpush.msra.mxu0 %v2953
        %3051 = vmatpush.msra.mxu0 %v2952
        %3052 = vmatpush.msra.mxu0 %v2951
        %3053 = vmatpush.msra.mxu0 %v2950
        %3054 = vmatpush.msra.mxu0 %v2949
        %3055 = vmatpush.msra.mxu0 %v2948
        %3056 = vmatpush.msra.mxu0 %v2947
        %3057 = vmatmul.f32.gmra.mxu0 %v3037
        %v3058 = vpop.f32.mrf.mxu0
        %v3059 = vadd.f32 %v3023, %v3058
        %3060 = vmatmul.f32.gmra.mxu0 %v3039
        %v3061 = vpop.f32.mrf.mxu0
        %v3062 = vadd.f32 %v3026, %v3061
        %3063 = vdwg.mxu0
        %vm3064 = vcmask 1041408
        %vm3065 = vcmask 1045508
        %vm3066 = vmor %vm3064, %vm3065
        %v3067 = vrot.slane %v2942, 6
        %v3068 = vrot.slane %v3067, 4
        %v3069 = vrot.slane %v2959, 6
        %v3070 = vsel %vm3066, %v3068, %v3069
        %v3071 = vrot.slane %v2943, 6
        %v3072 = vrot.slane %v3071, 4
        %v3073 = vrot.slane %v2960, 6
        %v3074 = vsel %vm3066, %v3072, %v3073
        %v3075 = vrot.slane %v2944, 6
        %v3076 = vrot.slane %v3075, 4
        %v3077 = vrot.slane %v2961, 6
        %v3078 = vsel %vm3066, %v3076, %v3077
        %v3079 = vrot.slane %v2945, 6
        %v3080 = vrot.slane %v3079, 4
        %v3081 = vrot.slane %v2962, 6
        %v3082 = vsel %vm3066, %v3080, %v3081
        %s3083 = scalar_lea.vmem [#allocation9], 128
        %v3084 = vld [vmem:[%s3083] sm:$0xff]
        %v3085 = vld [vmem:[%s3083 + $0x8] sm:$0xff]
        %v3086 = vld [vmem:[%s3083 + $0x10] sm:$0xff]
        %v3087 = vld [vmem:[%s3083 + $0x18] sm:$0xff]
        %v3088 = vld [vmem:[%s3083 + $0x20] sm:$0xff]
        %v3089 = vld [vmem:[%s3083 + $0x28] sm:$0xff]
        %v3090 = vld [vmem:[%s3083 + $0x30] sm:$0xff]
        %v3091 = vld [vmem:[%s3083 + $0x38] sm:$0xff]
        %3092 = vst [vmem:[#allocation1] ss:$2 sm:$0xff] %v3070
        %s3093 = scalar_lea.vmem [#allocation1], 1
        %3094 = vst [vmem:[%s3093] ss:$2 sm:$0xff] %v3074
        %s3095 = scalar_lea.vmem [#allocation1], 16
        %3096 = vst [vmem:[%s3095] ss:$2 sm:$0xff] %v3078
        %s3097 = scalar_lea.vmem [#allocation1], 17
        %3098 = vst [vmem:[%s3097] ss:$2 sm:$0xff] %v3082
        %v3099 = vld.sshfl [vmem:[#allocation1] sm:$0xff pattern:$0x75316420]
        %v3100 = vld.sshfl [vmem:[#allocation1 + $0x10] sm:$0xff pattern:$0x75316420]
        %v3101 = vsel %vm3000, %v3099, 0
        %v3103 = vsel %vm3000, %v3100, 0
        %3105 = vmatpush.msra.mxu0 0.0
        %3106 = vmatpush.msra.mxu0 0.0
        %3107 = vmatpush.msra.mxu0 0.0
        %3108 = vmatpush.msra.mxu0 0.0
        %3109 = vmatpush.msra.mxu0 0.0
        %3110 = vmatpush.msra.mxu0 0.0
        %3111 = vmatpush.msra.mxu0 0.0
        %3112 = vmatpush.msra.mxu0 0.0
        %3113 = vmatpush.msra.mxu0 %v3091
        %3114 = vmatpush.msra.mxu0 %v3090
        %3115 = vmatpush.msra.mxu0 %v3089
        %3116 = vmatpush.msra.mxu0 %v3088
        %3117 = vmatpush.msra.mxu0 %v3087
        %3118 = vmatpush.msra.mxu0 %v3086
        %3119 = vmatpush.msra.mxu0 %v3085
        %3120 = vmatpush.msra.mxu0 %v3084
        %3121 = vmatmul.f32.gmra.mxu0 %v3101
        %v3122 = vpop.f32.mrf.mxu0
        %v3123 = vadd.f32 0.0, %v3122
        %3124 = vmatmul.f32.gmra.mxu0 %v3103
        %v3125 = vpop.f32.mrf.mxu0
        %v3126 = vadd.f32 0.0, %v3125
        %3127 = vdwg.mxu0
        %v3128 = vadd.f32 %v3059, %v3123
        %v3129 = vadd.f32 %v3062, %v3126
        %s3130 = scalar_lea.vmem [#allocation9], 192
        %v3131 = vld [vmem:[%s3130] sm:$0xff]
        %v3132 = vld [vmem:[%s3130 + $0x8] sm:$0xff]
        %v3133 = vld [vmem:[%s3130 + $0x10] sm:$0xff]
        %v3134 = vld [vmem:[%s3130 + $0x18] sm:$0xff]
        %v3135 = vld [vmem:[%s3130 + $0x20] sm:$0xff]
        %v3136 = vld [vmem:[%s3130 + $0x28] sm:$0xff]
        %v3137 = vld [vmem:[%s3130 + $0x30] sm:$0xff]
        %v3138 = vld [vmem:[%s3130 + $0x38] sm:$0xff]
        %3140 = vst [vmem:[#allocation1] ss:$2 sm:$0xff] %v2943
        %s3141 = scalar_lea.vmem [#allocation1], 1
        %3142 = vst [vmem:[%s3141] ss:$2 sm:$0xff] %v2944
        %s3143 = scalar_lea.vmem [#allocation1], 16
        %3144 = vst [vmem:[%s3143] ss:$2 sm:$0xff] %v2945
        %s3145 = scalar_lea.vmem [#allocation1], 17
        %3146 = vst [vmem:[%s3145] ss:$2 sm:$0xff] %v2946
        %v3147 = vld.sshfl [vmem:[#allocation1] sm:$0xff pattern:$0x75316420]
        %v3148 = vld.sshfl [vmem:[#allocation1 + $0x10] sm:$0xff pattern:$0x75316420]
        %v3149 = vsel %vm3000, %v3147, 0
        %v3151 = vsel %vm3000, %v3148, 0
        %3153 = vmatpush.msra.mxu0 0.0
        %3154 = vmatpush.msra.mxu0 0.0
        %3155 = vmatpush.msra.mxu0 0.0
        %3156 = vmatpush.msra.mxu0 0.0
        %3157 = vmatpush.msra.mxu0 0.0
        %3158 = vmatpush.msra.mxu0 0.0
        %3159 = vmatpush.msra.mxu0 0.0
        %3160 = vmatpush.msra.mxu0 0.0
        %3161 = vmatpush.msra.mxu0 %v3138
        %3162 = vmatpush.msra.mxu0 %v3137
        %3163 = vmatpush.msra.mxu0 %v3136
        %3164 = vmatpush.msra.mxu0 %v3135
        %3165 = vmatpush.msra.mxu0 %v3134
        %3166 = vmatpush.msra.mxu0 %v3133
        %3167 = vmatpush.msra.mxu0 %v3132
        %3168 = vmatpush.msra.mxu0 %v3131
        %3169 = vmatmul.f32.gmra.mxu0 %v3149
        %v3170 = vpop.f32.mrf.mxu0
        %v3171 = vadd.f32 0.0, %v3170
        %3172 = vmatmul.f32.gmra.mxu0 %v3151
        %v3173 = vpop.f32.mrf.mxu0
        %v3174 = vadd.f32 0.0, %v3173
        %3175 = vdwg.mxu0
        %v3176 = vadd.f32 %v3128, %v3171
        %v3177 = vadd.f32 %v3129, %v3174
        %v3178 = vrot.slane %v2946, 4
        %v3179 = vrot.slane %v2946, 5
        %v3180 = vrot.slane %v3179, 4
        %v3181 = vrot.slane %v3178, 5
        %v3182 = vsel %vm2965, %v3180, %v3181
        %s3183 = scalar_lea.vmem [#allocation9], 256
        %v3184 = vld [vmem:[%s3183] sm:$0xff]
        %v3185 = vld [vmem:[%s3183 + $0x8] sm:$0xff]
        %v3186 = vld [vmem:[%s3183 + $0x10] sm:$0xff]
        %v3187 = vld [vmem:[%s3183 + $0x18] sm:$0xff]
        %v3188 = vld [vmem:[%s3183 + $0x20] sm:$0xff]
        %v3189 = vld [vmem:[%s3183 + $0x28] sm:$0xff]
        %v3190 = vld [vmem:[%s3183 + $0x30] sm:$0xff]
        %v3191 = vld [vmem:[%s3183 + $0x38] sm:$0xff]
        %3192 = vst [vmem:[#allocation1] ss:$2 sm:$0xff] %v2973
        %s3193 = scalar_lea.vmem [#allocation1], 1
        %3194 = vst [vmem:[%s3193] ss:$2 sm:$0xff] %v2977
        %s3195 = scalar_lea.vmem [#allocation1], 16
        %3196 = vst [vmem:[%s3195] ss:$2 sm:$0xff] %v2981
        %s3197 = scalar_lea.vmem [#allocation1], 17
        %3198 = vst [vmem:[%s3197] ss:$2 sm:$0xff] %v3182
        %v3199 = vld.sshfl [vmem:[#allocation1] sm:$0xff pattern:$0x75316420]
        %v3200 = vld.sshfl [vmem:[#allocation1 + $0x10] sm:$0xff pattern:$0x75316420]
        %v3201 = vsel %vm3000, %v3199, 0
        %v3203 = vsel %vm3000, %v3200, 0
        %3205 = vmatpush.msra.mxu0 0.0
        %3206 = vmatpush.msra.mxu0 0.0
        %3207 = vmatpush.msra.mxu0 0.0
        %3208 = vmatpush.msra.mxu0 0.0
        %3209 = vmatpush.msra.mxu0 0.0
        %3210 = vmatpush.msra.mxu0 0.0
        %3211 = vmatpush.msra.mxu0 0.0
        %3212 = vmatpush.msra.mxu0 0.0
        %3213 = vmatpush.msra.mxu0 %v3191
        %3214 = vmatpush.msra.mxu0 %v3190
        %3215 = vmatpush.msra.mxu0 %v3189
        %3216 = vmatpush.msra.mxu0 %v3188
        %3217 = vmatpush.msra.mxu0 %v3187
        %3218 = vmatpush.msra.mxu0 %v3186
        %3219 = vmatpush.msra.mxu0 %v3185
        %3220 = vmatpush.msra.mxu0 %v3184
        %3221 = vmatmul.f32.gmra.mxu0 %v3201
        %v3222 = vpop.f32.mrf.mxu0
        %v3223 = vadd.f32 0.0, %v3222
        %3224 = vmatmul.f32.gmra.mxu0 %v3203
        %v3225 = vpop.f32.mrf.mxu0
        %v3226 = vadd.f32 0.0, %v3225
        %3227 = vdwg.mxu0
        %v3228 = vadd.f32 %v3176, %v3223
        %v3229 = vadd.f32 %v3177, %v3226
        %v3230 = vrot.slane %v2946, 6
        %v3231 = vrot.slane %v3230, 4
        %v3232 = vrot.slane %v3178, 6
        %v3233 = vsel %vm3066, %v3231, %v3232
        %s3234 = scalar_lea.vmem [#allocation9], 320
        %v3235 = vld [vmem:[%s3234] sm:$0xff]
        %v3236 = vld [vmem:[%s3234 + $0x8] sm:$0xff]
        %v3237 = vld [vmem:[%s3234 + $0x10] sm:$0xff]
        %v3238 = vld [vmem:[%s3234 + $0x18] sm:$0xff]
        %v3239 = vld [vmem:[%s3234 + $0x20] sm:$0xff]
        %v3240 = vld [vmem:[%s3234 + $0x28] sm:$0xff]
        %v3241 = vld [vmem:[%s3234 + $0x30] sm:$0xff]
        %v3242 = vld [vmem:[%s3234 + $0x38] sm:$0xff]
        %3243 = vst [vmem:[#allocation1] ss:$2 sm:$0xff] %v3074
        %s3244 = scalar_lea.vmem [#allocation1], 1
        %3245 = vst [vmem:[%s3244] ss:$2 sm:$0xff] %v3078
        %s3246 = scalar_lea.vmem [#allocation1], 16
        %3247 = vst [vmem:[%s3246] ss:$2 sm:$0xff] %v3082
        %s3248 = scalar_lea.vmem [#allocation1], 17
        %3249 = vst [vmem:[%s3248] ss:$2 sm:$0xff] %v3233
        %v3250 = vld.sshfl [vmem:[#allocation1] sm:$0xff pattern:$0x75316420]
        %v3251 = vld.sshfl [vmem:[#allocation1 + $0x10] sm:$0xff pattern:$0x75316420]
        %v3252 = vsel %vm3000, %v3250, 0
        %v3254 = vsel %vm3000, %v3251, 0
        %3256 = vmatpush.msra.mxu0 0.0
        %3257 = vmatpush.msra.mxu0 0.0
        %3258 = vmatpush.msra.mxu0 0.0
        %3259 = vmatpush.msra.mxu0 0.0
        %3260 = vmatpush.msra.mxu0 0.0
        %3261 = vmatpush.msra.mxu0 0.0
        %3262 = vmatpush.msra.mxu0 0.0
        %3263 = vmatpush.msra.mxu0 0.0
        %3264 = vmatpush.msra.mxu0 %v3242
        %3265 = vmatpush.msra.mxu0 %v3241
        %3266 = vmatpush.msra.mxu0 %v3240
        %3267 = vmatpush.msra.mxu0 %v3239
        %3268 = vmatpush.msra.mxu0 %v3238
        %3269 = vmatpush.msra.mxu0 %v3237
        %3270 = vmatpush.msra.mxu0 %v3236
        %3271 = vmatpush.msra.mxu0 %v3235
        %3272 = vmatmul.f32.gmra.mxu0 %v3252
        %v3273 = vpop.f32.mrf.mxu0
        %v3274 = vadd.f32 0.0, %v3273
        %3275 = vmatmul.f32.gmra.mxu0 %v3254
        %v3276 = vpop.f32.mrf.mxu0
        %v3277 = vadd.f32 0.0, %v3276
        %3278 = vdwg.mxu0
        %v3279 = vadd.f32 %v3228, %v3274
        %v3280 = vadd.f32 %v3229, %v3277
        %s3281 = scalar_lea.vmem [#allocation9], 384
        %v3282 = vld [vmem:[%s3281] sm:$0xff]
        %v3283 = vld [vmem:[%s3281 + $0x8] sm:$0xff]
        %v3284 = vld [vmem:[%s3281 + $0x10] sm:$0xff]
        %v3285 = vld [vmem:[%s3281 + $0x18] sm:$0xff]
        %v3286 = vld [vmem:[%s3281 + $0x20] sm:$0xff]
        %v3287 = vld [vmem:[%s3281 + $0x28] sm:$0xff]
        %v3288 = vld [vmem:[%s3281 + $0x30] sm:$0xff]
        %v3289 = vld [vmem:[%s3281 + $0x38] sm:$0xff]
        %3290 = vst [vmem:[#allocation1] ss:$2 sm:$0xff] %v2944
        %s3291 = scalar_lea.vmem [#allocation1], 1
        %3292 = vst [vmem:[%s3291] ss:$2 sm:$0xff] %v2945
        %s3293 = scalar_lea.vmem [#allocation1], 16
        %3294 = vst [vmem:[%s3293] ss:$2 sm:$0xff] %v2946
        %s3295 = scalar_lea.vmem [#allocation1], 17
        %3296 = vst [vmem:[%s3295] ss:$2 sm:$0xff] %v2942
        %v3297 = vld.sshfl [vmem:[#allocation1] sm:$0xff pattern:$0x75316420]
        %v3298 = vld.sshfl [vmem:[#allocation1 + $0x10] sm:$0xff pattern:$0x75316420]
        %v3299 = vsel %vm3000, %v3297, 0
        %v3301 = vsel %vm3000, %v3298, 0
        %3303 = vmatpush.msra.mxu0 0.0
        %3304 = vmatpush.msra.mxu0 0.0
        %3305 = vmatpush.msra.mxu0 0.0
        %3306 = vmatpush.msra.mxu0 0.0
        %3307 = vmatpush.msra.mxu0 0.0
        %3308 = vmatpush.msra.mxu0 0.0
        %3309 = vmatpush.msra.mxu0 0.0
        %3310 = vmatpush.msra.mxu0 0.0
        %3311 = vmatpush.msra.mxu0 %v3289
        %3312 = vmatpush.msra.mxu0 %v3288
        %3313 = vmatpush.msra.mxu0 %v3287
        %3314 = vmatpush.msra.mxu0 %v3286
        %3315 = vmatpush.msra.mxu0 %v3285
        %3316 = vmatpush.msra.mxu0 %v3284
        %3317 = vmatpush.msra.mxu0 %v3283
        %3318 = vmatpush.msra.mxu0 %v3282
        %3319 = vmatmul.f32.gmra.mxu0 %v3299
        %v3320 = vpop.f32.mrf.mxu0
        %v3321 = vadd.f32 0.0, %v3320
        %3322 = vmatmul.f32.gmra.mxu0 %v3301
        %v3323 = vpop.f32.mrf.mxu0
        %v3324 = vadd.f32 0.0, %v3323
        %3325 = vdwg.mxu0
        %v3326 = vadd.f32 %v3279, %v3321
        %v3327 = vadd.f32 %v3280, %v3324
        %s3328 = scalar_lea.vmem [#allocation9], 448
        %v3329 = vld [vmem:[%s3328] sm:$0xff]
        %v3330 = vld [vmem:[%s3328 + $0x8] sm:$0xff]
        %v3331 = vld [vmem:[%s3328 + $0x10] sm:$0xff]
        %v3332 = vld [vmem:[%s3328 + $0x18] sm:$0xff]
        %v3333 = vld [vmem:[%s3328 + $0x20] sm:$0xff]
        %v3334 = vld [vmem:[%s3328 + $0x28] sm:$0xff]
        %v3335 = vld [vmem:[%s3328 + $0x30] sm:$0xff]
        %v3336 = vld [vmem:[%s3328 + $0x38] sm:$0xff]
        %3337 = vst [vmem:[#allocation1] ss:$2 sm:$0xff] %v2977
        %s3338 = scalar_lea.vmem [#allocation1], 1
        %3339 = vst [vmem:[%s3338] ss:$2 sm:$0xff] %v2981
        %s3340 = scalar_lea.vmem [#allocation1], 16
        %3341 = vst [vmem:[%s3340] ss:$2 sm:$0xff] %v3182
        %s3342 = scalar_lea.vmem [#allocation1], 17
        %3343 = vst [vmem:[%s3342] ss:$2 sm:$0xff] %v2969
        %v3344 = vld.sshfl [vmem:[#allocation1] sm:$0xff pattern:$0x75316420]
        %v3345 = vld.sshfl [vmem:[#allocation1 + $0x10] sm:$0xff pattern:$0x75316420]
        %v3346 = vsel %vm3000, %v3344, 0
        %v3348 = vsel %vm3000, %v3345, 0
        %3350 = vmatpush.msra.mxu0 0.0
        %3351 = vmatpush.msra.mxu0 0.0
        %3352 = vmatpush.msra.mxu0 0.0
        %3353 = vmatpush.msra.mxu0 0.0
        %3354 = vmatpush.msra.mxu0 0.0
        %3355 = vmatpush.msra.mxu0 0.0
        %3356 = vmatpush.msra.mxu0 0.0
        %3357 = vmatpush.msra.mxu0 0.0
        %3358 = vmatpush.msra.mxu0 %v3336
        %3359 = vmatpush.msra.mxu0 %v3335
        %3360 = vmatpush.msra.mxu0 %v3334
        %3361 = vmatpush.msra.mxu0 %v3333
        %3362 = vmatpush.msra.mxu0 %v3332
        %3363 = vmatpush.msra.mxu0 %v3331
        %3364 = vmatpush.msra.mxu0 %v3330
        %3365 = vmatpush.msra.mxu0 %v3329
        %3366 = vmatmul.f32.gmra.mxu0 %v3346
        %v3367 = vpop.f32.mrf.mxu0
        %v3368 = vadd.f32 0.0, %v3367
        %3369 = vmatmul.f32.gmra.mxu0 %v3348
        %v3370 = vpop.f32.mrf.mxu0
        %v3371 = vadd.f32 0.0, %v3370
        %3372 = vdwg.mxu0
        %v3373 = vadd.f32 %v3326, %v3368
        %v3374 = vadd.f32 %v3327, %v3371
        %s3375 = scalar_lea.vmem [#allocation9], 512
        %v3376 = vld [vmem:[%s3375] sm:$0xff]
        %v3377 = vld [vmem:[%s3375 + $0x8] sm:$0xff]
        %v3378 = vld [vmem:[%s3375 + $0x10] sm:$0xff]
        %v3379 = vld [vmem:[%s3375 + $0x18] sm:$0xff]
        %v3380 = vld [vmem:[%s3375 + $0x20] sm:$0xff]
        %v3381 = vld [vmem:[%s3375 + $0x28] sm:$0xff]
        %v3382 = vld [vmem:[%s3375 + $0x30] sm:$0xff]
        %v3383 = vld [vmem:[%s3375 + $0x38] sm:$0xff]
        %3384 = vst [vmem:[#allocation1] ss:$2 sm:$0xff] %v3078
        %s3385 = scalar_lea.vmem [#allocation1], 1
        %3386 = vst [vmem:[%s3385] ss:$2 sm:$0xff] %v3082
        %s3387 = scalar_lea.vmem [#allocation1], 16
        %3388 = vst [vmem:[%s3387] ss:$2 sm:$0xff] %v3233
        %s3389 = scalar_lea.vmem [#allocation1], 17
        %3390 = vst [vmem:[%s3389] ss:$2 sm:$0xff] %v3070
        %v3391 = vld.sshfl [vmem:[#allocation1] sm:$0xff pattern:$0x75316420]
        %v3392 = vld.sshfl [vmem:[#allocation1 + $0x10] sm:$0xff pattern:$0x75316420]
        %v3393 = vsel %vm3000, %v3391, 0
        %v3395 = vsel %vm3000, %v3392, 0
        %3397 = vmatpush.msra.mxu0 0.0
        %3398 = vmatpush.msra.mxu0 0.0
        %3399 = vmatpush.msra.mxu0 0.0
        %3400 = vmatpush.msra.mxu0 0.0
        %3401 = vmatpush.msra.mxu0 0.0
        %3402 = vmatpush.msra.mxu0 0.0
        %3403 = vmatpush.msra.mxu0 0.0
        %3404 = vmatpush.msra.mxu0 0.0
        %3405 = vmatpush.msra.mxu0 %v3383
        %3406 = vmatpush.msra.mxu0 %v3382
        %3407 = vmatpush.msra.mxu0 %v3381
        %3408 = vmatpush.msra.mxu0 %v3380
        %3409 = vmatpush.msra.mxu0 %v3379
        %3410 = vmatpush.msra.mxu0 %v3378
        %3411 = vmatpush.msra.mxu0 %v3377
        %3412 = vmatpush.msra.mxu0 %v3376
        %3413 = vmatmul.f32.gmra.mxu0 %v3393
        %v3414 = vpop.f32.mrf.mxu0
        %v3415 = vadd.f32 0.0, %v3414
        %3416 = vmatmul.f32.gmra.mxu0 %v3395
        %v3417 = vpop.f32.mrf.mxu0
        %v3418 = vadd.f32 0.0, %v3417
        %3419 = vdwg.mxu0
        %v3420 = vadd.f32 %v3373, %v3415
        %v3421 = vadd.f32 %v3374, %v3418
        %v3422 = vld [vmem:[%s6] sm:$0x1]
        %v3424 = vperm.slane %v3422, 0
        %v3426 = vadd.f32 %v3420, %v3424
        %v3427 = vadd.f32 %v3421, %v3424
        %v3428 = vmax.f32 %v3426, 0.0
        %v3429 = vmax.f32 %v3427, 0.0
        %v3430 = vld [vmem:[#allocation10] sm:$0xff]
        %v3431 = vld [vmem:[#allocation10 + $0x8] sm:$0xff]
        %v3432 = vld [vmem:[#allocation10 + $0x10] sm:$0xff]
        %v3433 = vld [vmem:[#allocation10 + $0x18] sm:$0xff]
        %v3434 = vld [vmem:[#allocation10 + $0x20] sm:$0xff]
        %v3435 = vld [vmem:[#allocation10 + $0x28] sm:$0xff]
        %v3436 = vld [vmem:[#allocation10 + $0x30] sm:$0xff]
        %v3437 = vld [vmem:[#allocation10 + $0x38] sm:$0xff]
        %v3438 = vld [vmem:[#allocation10 + $0x40] sm:$0xff]
        %v3439 = vld [vmem:[#allocation10 + $0x48] sm:$0xff]
        %v3440 = vld [vmem:[#allocation10 + $0x50] sm:$0xff]
        %v3441 = vld [vmem:[#allocation10 + $0x58] sm:$0xff]
        %v3442 = vld [vmem:[#allocation10 + $0x60] sm:$0xff]
        %v3443 = vld [vmem:[#allocation10 + $0x68] sm:$0xff]
        %v3444 = vld [vmem:[#allocation10 + $0x70] sm:$0xff]
        %v3445 = vld [vmem:[#allocation10 + $0x78] sm:$0xff]
        %s3446 = scalar_lea.vmem [#allocation10], 128
        %v3447 = vld [vmem:[%s3446] sm:$0xff]
        %v3448 = vld [vmem:[%s3446 + $0x8] sm:$0xff]
        %v3449 = vld [vmem:[%s3446 + $0x10] sm:$0xff]
        %v3450 = vld [vmem:[%s3446 + $0x18] sm:$0xff]
        %v3451 = vld [vmem:[%s3446 + $0x20] sm:$0xff]
        %v3452 = vld [vmem:[%s3446 + $0x28] sm:$0xff]
        %v3453 = vld [vmem:[%s3446 + $0x30] sm:$0xff]
        %v3454 = vld [vmem:[%s3446 + $0x38] sm:$0xff]
        %v3455 = vld [vmem:[%s3446 + $0x40] sm:$0xff]
        %v3456 = vld [vmem:[%s3446 + $0x48] sm:$0xff]
        %v3457 = vld [vmem:[%s3446 + $0x50] sm:$0xff]
        %v3458 = vld [vmem:[%s3446 + $0x58] sm:$0xff]
        %v3459 = vld [vmem:[%s3446 + $0x60] sm:$0xff]
        %v3460 = vld [vmem:[%s3446 + $0x68] sm:$0xff]
        %v3461 = vld [vmem:[%s3446 + $0x70] sm:$0xff]
        %v3462 = vld [vmem:[%s3446 + $0x78] sm:$0xff]
        %v3464 = vrot.slane %v3428, 1
        %3466 = vmatpush.msra.mxu0 %v3462
        %3467 = vmatpush.msra.mxu0 %v3461
        %3468 = vmatpush.msra.mxu0 %v3460
        %3469 = vmatpush.msra.mxu0 %v3459
        %3470 = vmatpush.msra.mxu0 %v3458
        %3471 = vmatpush.msra.mxu0 %v3457
        %3472 = vmatpush.msra.mxu0 %v3456
        %3473 = vmatpush.msra.mxu0 %v3455
        %3474 = vmatpush.msra.mxu0 %v3454
        %3475 = vmatpush.msra.mxu0 %v3453
        %3476 = vmatpush.msra.mxu0 %v3452
        %3477 = vmatpush.msra.mxu0 %v3451
        %3478 = vmatpush.msra.mxu0 %v3450
        %3479 = vmatpush.msra.mxu0 %v3449
        %3480 = vmatpush.msra.mxu0 %v3448
        %3481 = vmatpush.msra.mxu0 %v3447
        %3482 = vmatmul.f32.gmra.mxu0 %v3464
        %v3483 = vpop.f32.mrf.mxu0
        %v3484 = vadd.f32 0.0, %v3483
        %3485 = vdwg.mxu0
        %3486 = vmatpush.msra.mxu0 %v3445
        %3487 = vmatpush.msra.mxu0 %v3444
        %3488 = vmatpush.msra.mxu0 %v3443
        %3489 = vmatpush.msra.mxu0 %v3442
        %3490 = vmatpush.msra.mxu0 %v3441
        %3491 = vmatpush.msra.mxu0 %v3440
        %3492 = vmatpush.msra.mxu0 %v3439
        %3493 = vmatpush.msra.mxu0 %v3438
        %3494 = vmatpush.msra.mxu0 %v3437
        %3495 = vmatpush.msra.mxu0 %v3436
        %3496 = vmatpush.msra.mxu0 %v3435
        %3497 = vmatpush.msra.mxu0 %v3434
        %3498 = vmatpush.msra.mxu0 %v3433
        %3499 = vmatpush.msra.mxu0 %v3432
        %3500 = vmatpush.msra.mxu0 %v3431
        %3501 = vmatpush.msra.mxu0 %v3430
        %3502 = vmatmul.f32.gmra.mxu0 %v3428
        %v3503 = vpop.f32.mrf.mxu0
        %v3504 = vadd.f32 %v3484, %v3503
        %3505 = vdwg.mxu0
        %s3506 = scalar_lea.vmem [#allocation10], 256
        %v3507 = vld [vmem:[%s3506] sm:$0xff]
        %v3508 = vld [vmem:[%s3506 + $0x8] sm:$0xff]
        %v3509 = vld [vmem:[%s3506 + $0x10] sm:$0xff]
        %v3510 = vld [vmem:[%s3506 + $0x18] sm:$0xff]
        %v3511 = vld [vmem:[%s3506 + $0x20] sm:$0xff]
        %v3512 = vld [vmem:[%s3506 + $0x28] sm:$0xff]
        %v3513 = vld [vmem:[%s3506 + $0x30] sm:$0xff]
        %v3514 = vld [vmem:[%s3506 + $0x38] sm:$0xff]
        %v3515 = vld [vmem:[%s3506 + $0x40] sm:$0xff]
        %v3516 = vld [vmem:[%s3506 + $0x48] sm:$0xff]
        %v3517 = vld [vmem:[%s3506 + $0x50] sm:$0xff]
        %v3518 = vld [vmem:[%s3506 + $0x58] sm:$0xff]
        %v3519 = vld [vmem:[%s3506 + $0x60] sm:$0xff]
        %v3520 = vld [vmem:[%s3506 + $0x68] sm:$0xff]
        %v3521 = vld [vmem:[%s3506 + $0x70] sm:$0xff]
        %v3522 = vld [vmem:[%s3506 + $0x78] sm:$0xff]
        %v3523 = vrot.slane %v3428, 2
        %3525 = vmatpush.msra.mxu0 %v3522
        %3526 = vmatpush.msra.mxu0 %v3521
        %3527 = vmatpush.msra.mxu0 %v3520
        %3528 = vmatpush.msra.mxu0 %v3519
        %3529 = vmatpush.msra.mxu0 %v3518
        %3530 = vmatpush.msra.mxu0 %v3517
        %3531 = vmatpush.msra.mxu0 %v3516
        %3532 = vmatpush.msra.mxu0 %v3515
        %3533 = vmatpush.msra.mxu0 %v3514
        %3534 = vmatpush.msra.mxu0 %v3513
        %3535 = vmatpush.msra.mxu0 %v3512
        %3536 = vmatpush.msra.mxu0 %v3511
        %3537 = vmatpush.msra.mxu0 %v3510
        %3538 = vmatpush.msra.mxu0 %v3509
        %3539 = vmatpush.msra.mxu0 %v3508
        %3540 = vmatpush.msra.mxu0 %v3507
        %3541 = vmatmul.f32.gmra.mxu0 %v3523
        %v3542 = vpop.f32.mrf.mxu0
        %v3543 = vadd.f32 0.0, %v3542
        %3544 = vdwg.mxu0
        %v3545 = vadd.f32 %v3504, %v3543
        %s3546 = scalar_lea.vmem [#allocation10], 384
        %v3547 = vld [vmem:[%s3546] sm:$0xff]
        %v3548 = vld [vmem:[%s3546 + $0x8] sm:$0xff]
        %v3549 = vld [vmem:[%s3546 + $0x10] sm:$0xff]
        %v3550 = vld [vmem:[%s3546 + $0x18] sm:$0xff]
        %v3551 = vld [vmem:[%s3546 + $0x20] sm:$0xff]
        %v3552 = vld [vmem:[%s3546 + $0x28] sm:$0xff]
        %v3553 = vld [vmem:[%s3546 + $0x30] sm:$0xff]
        %v3554 = vld [vmem:[%s3546 + $0x38] sm:$0xff]
        %v3555 = vld [vmem:[%s3546 + $0x40] sm:$0xff]
        %v3556 = vld [vmem:[%s3546 + $0x48] sm:$0xff]
        %v3557 = vld [vmem:[%s3546 + $0x50] sm:$0xff]
        %v3558 = vld [vmem:[%s3546 + $0x58] sm:$0xff]
        %v3559 = vld [vmem:[%s3546 + $0x60] sm:$0xff]
        %v3560 = vld [vmem:[%s3546 + $0x68] sm:$0xff]
        %v3561 = vld [vmem:[%s3546 + $0x70] sm:$0xff]
        %v3562 = vld [vmem:[%s3546 + $0x78] sm:$0xff]
        %v3563 = vrot.slane %v3428, 3
        %3565 = vmatpush.msra.mxu0 %v3562
        %3566 = vmatpush.msra.mxu0 %v3561
        %3567 = vmatpush.msra.mxu0 %v3560
        %3568 = vmatpush.msra.mxu0 %v3559
        %3569 = vmatpush.msra.mxu0 %v3558
        %3570 = vmatpush.msra.mxu0 %v3557
        %3571 = vmatpush.msra.mxu0 %v3556
        %3572 = vmatpush.msra.mxu0 %v3555
        %3573 = vmatpush.msra.mxu0 %v3554
        %3574 = vmatpush.msra.mxu0 %v3553
        %3575 = vmatpush.msra.mxu0 %v3552
        %3576 = vmatpush.msra.mxu0 %v3551
        %3577 = vmatpush.msra.mxu0 %v3550
        %3578 = vmatpush.msra.mxu0 %v3549
        %3579 = vmatpush.msra.mxu0 %v3548
        %3580 = vmatpush.msra.mxu0 %v3547
        %3581 = vmatmul.f32.gmra.mxu0 %v3563
        %v3582 = vpop.f32.mrf.mxu0
        %v3583 = vadd.f32 0.0, %v3582
        %3584 = vdwg.mxu0
        %v3585 = vadd.f32 %v3545, %v3583
        %s3586 = scalar_lea.vmem [#allocation10], 512
        %v3587 = vld [vmem:[%s3586] sm:$0xff]
        %v3588 = vld [vmem:[%s3586 + $0x8] sm:$0xff]
        %v3589 = vld [vmem:[%s3586 + $0x10] sm:$0xff]
        %v3590 = vld [vmem:[%s3586 + $0x18] sm:$0xff]
        %v3591 = vld [vmem:[%s3586 + $0x20] sm:$0xff]
        %v3592 = vld [vmem:[%s3586 + $0x28] sm:$0xff]
        %v3593 = vld [vmem:[%s3586 + $0x30] sm:$0xff]
        %v3594 = vld [vmem:[%s3586 + $0x38] sm:$0xff]
        %v3595 = vld [vmem:[%s3586 + $0x40] sm:$0xff]
        %v3596 = vld [vmem:[%s3586 + $0x48] sm:$0xff]
        %v3597 = vld [vmem:[%s3586 + $0x50] sm:$0xff]
        %v3598 = vld [vmem:[%s3586 + $0x58] sm:$0xff]
        %v3599 = vld [vmem:[%s3586 + $0x60] sm:$0xff]
        %v3600 = vld [vmem:[%s3586 + $0x68] sm:$0xff]
        %v3601 = vld [vmem:[%s3586 + $0x70] sm:$0xff]
        %v3602 = vld [vmem:[%s3586 + $0x78] sm:$0xff]
        %v3603 = vrot.slane %v3428, 4
        %3605 = vmatpush.msra.mxu0 %v3602
        %3606 = vmatpush.msra.mxu0 %v3601
        %3607 = vmatpush.msra.mxu0 %v3600
        %3608 = vmatpush.msra.mxu0 %v3599
        %3609 = vmatpush.msra.mxu0 %v3598
        %3610 = vmatpush.msra.mxu0 %v3597
        %3611 = vmatpush.msra.mxu0 %v3596
        %3612 = vmatpush.msra.mxu0 %v3595
        %3613 = vmatpush.msra.mxu0 %v3594
        %3614 = vmatpush.msra.mxu0 %v3593
        %3615 = vmatpush.msra.mxu0 %v3592
        %3616 = vmatpush.msra.mxu0 %v3591
        %3617 = vmatpush.msra.mxu0 %v3590
        %3618 = vmatpush.msra.mxu0 %v3589
        %3619 = vmatpush.msra.mxu0 %v3588
        %3620 = vmatpush.msra.mxu0 %v3587
        %3621 = vmatmul.f32.gmra.mxu0 %v3603
        %v3622 = vpop.f32.mrf.mxu0
        %v3623 = vadd.f32 0.0, %v3622
        %3624 = vdwg.mxu0
        %v3625 = vadd.f32 %v3585, %v3623
        %s3626 = scalar_lea.vmem [#allocation10], 640
        %v3627 = vld [vmem:[%s3626] sm:$0xff]
        %v3628 = vld [vmem:[%s3626 + $0x8] sm:$0xff]
        %v3629 = vld [vmem:[%s3626 + $0x10] sm:$0xff]
        %v3630 = vld [vmem:[%s3626 + $0x18] sm:$0xff]
        %v3631 = vld [vmem:[%s3626 + $0x20] sm:$0xff]
        %v3632 = vld [vmem:[%s3626 + $0x28] sm:$0xff]
        %v3633 = vld [vmem:[%s3626 + $0x30] sm:$0xff]
        %v3634 = vld [vmem:[%s3626 + $0x38] sm:$0xff]
        %v3635 = vld [vmem:[%s3626 + $0x40] sm:$0xff]
        %v3636 = vld [vmem:[%s3626 + $0x48] sm:$0xff]
        %v3637 = vld [vmem:[%s3626 + $0x50] sm:$0xff]
        %v3638 = vld [vmem:[%s3626 + $0x58] sm:$0xff]
        %v3639 = vld [vmem:[%s3626 + $0x60] sm:$0xff]
        %v3640 = vld [vmem:[%s3626 + $0x68] sm:$0xff]
        %v3641 = vld [vmem:[%s3626 + $0x70] sm:$0xff]
        %v3642 = vld [vmem:[%s3626 + $0x78] sm:$0xff]
        %v3643 = vrot.slane %v3428, 5
        %3645 = vmatpush.msra.mxu0 %v3642
        %3646 = vmatpush.msra.mxu0 %v3641
        %3647 = vmatpush.msra.mxu0 %v3640
        %3648 = vmatpush.msra.mxu0 %v3639
        %3649 = vmatpush.msra.mxu0 %v3638
        %3650 = vmatpush.msra.mxu0 %v3637
        %3651 = vmatpush.msra.mxu0 %v3636
        %3652 = vmatpush.msra.mxu0 %v3635
        %3653 = vmatpush.msra.mxu0 %v3634
        %3654 = vmatpush.msra.mxu0 %v3633
        %3655 = vmatpush.msra.mxu0 %v3632
        %3656 = vmatpush.msra.mxu0 %v3631
        %3657 = vmatpush.msra.mxu0 %v3630
        %3658 = vmatpush.msra.mxu0 %v3629
        %3659 = vmatpush.msra.mxu0 %v3628
        %3660 = vmatpush.msra.mxu0 %v3627
        %3661 = vmatmul.f32.gmra.mxu0 %v3643
        %v3662 = vpop.f32.mrf.mxu0
        %v3663 = vadd.f32 0.0, %v3662
        %3664 = vdwg.mxu0
        %v3665 = vadd.f32 %v3625, %v3663
        %s3666 = scalar_lea.vmem [#allocation10], 768
        %v3667 = vld [vmem:[%s3666] sm:$0xff]
        %v3668 = vld [vmem:[%s3666 + $0x8] sm:$0xff]
        %v3669 = vld [vmem:[%s3666 + $0x10] sm:$0xff]
        %v3670 = vld [vmem:[%s3666 + $0x18] sm:$0xff]
        %v3671 = vld [vmem:[%s3666 + $0x20] sm:$0xff]
        %v3672 = vld [vmem:[%s3666 + $0x28] sm:$0xff]
        %v3673 = vld [vmem:[%s3666 + $0x30] sm:$0xff]
        %v3674 = vld [vmem:[%s3666 + $0x38] sm:$0xff]
        %v3675 = vld [vmem:[%s3666 + $0x40] sm:$0xff]
        %v3676 = vld [vmem:[%s3666 + $0x48] sm:$0xff]
        %v3677 = vld [vmem:[%s3666 + $0x50] sm:$0xff]
        %v3678 = vld [vmem:[%s3666 + $0x58] sm:$0xff]
        %v3679 = vld [vmem:[%s3666 + $0x60] sm:$0xff]
        %v3680 = vld [vmem:[%s3666 + $0x68] sm:$0xff]
        %v3681 = vld [vmem:[%s3666 + $0x70] sm:$0xff]
        %v3682 = vld [vmem:[%s3666 + $0x78] sm:$0xff]
        %v3683 = vrot.slane %v3428, 6
        %3685 = vmatpush.msra.mxu0 %v3682
        %3686 = vmatpush.msra.mxu0 %v3681
        %3687 = vmatpush.msra.mxu0 %v3680
        %3688 = vmatpush.msra.mxu0 %v3679
        %3689 = vmatpush.msra.mxu0 %v3678
        %3690 = vmatpush.msra.mxu0 %v3677
        %3691 = vmatpush.msra.mxu0 %v3676
        %3692 = vmatpush.msra.mxu0 %v3675
        %3693 = vmatpush.msra.mxu0 %v3674
        %3694 = vmatpush.msra.mxu0 %v3673
        %3695 = vmatpush.msra.mxu0 %v3672
        %3696 = vmatpush.msra.mxu0 %v3671
        %3697 = vmatpush.msra.mxu0 %v3670
        %3698 = vmatpush.msra.mxu0 %v3669
        %3699 = vmatpush.msra.mxu0 %v3668
        %3700 = vmatpush.msra.mxu0 %v3667
        %3701 = vmatmul.f32.gmra.mxu0 %v3683
        %v3702 = vpop.f32.mrf.mxu0
        %v3703 = vadd.f32 0.0, %v3702
        %3704 = vdwg.mxu0
        %v3705 = vadd.f32 %v3665, %v3703
        %s3706 = scalar_lea.vmem [#allocation10], 896
        %v3707 = vld [vmem:[%s3706] sm:$0xff]
        %v3708 = vld [vmem:[%s3706 + $0x8] sm:$0xff]
        %v3709 = vld [vmem:[%s3706 + $0x10] sm:$0xff]
        %v3710 = vld [vmem:[%s3706 + $0x18] sm:$0xff]
        %v3711 = vld [vmem:[%s3706 + $0x20] sm:$0xff]
        %v3712 = vld [vmem:[%s3706 + $0x28] sm:$0xff]
        %v3713 = vld [vmem:[%s3706 + $0x30] sm:$0xff]
        %v3714 = vld [vmem:[%s3706 + $0x38] sm:$0xff]
        %v3715 = vld [vmem:[%s3706 + $0x40] sm:$0xff]
        %v3716 = vld [vmem:[%s3706 + $0x48] sm:$0xff]
        %v3717 = vld [vmem:[%s3706 + $0x50] sm:$0xff]
        %v3718 = vld [vmem:[%s3706 + $0x58] sm:$0xff]
        %v3719 = vld [vmem:[%s3706 + $0x60] sm:$0xff]
        %v3720 = vld [vmem:[%s3706 + $0x68] sm:$0xff]
        %v3721 = vld [vmem:[%s3706 + $0x70] sm:$0xff]
        %v3722 = vld [vmem:[%s3706 + $0x78] sm:$0xff]
        %v3723 = vrot.slane %v3428, 7
        %3725 = vmatpush.msra.mxu0 %v3722
        %3726 = vmatpush.msra.mxu0 %v3721
        %3727 = vmatpush.msra.mxu0 %v3720
        %3728 = vmatpush.msra.mxu0 %v3719
        %3729 = vmatpush.msra.mxu0 %v3718
        %3730 = vmatpush.msra.mxu0 %v3717
        %3731 = vmatpush.msra.mxu0 %v3716
        %3732 = vmatpush.msra.mxu0 %v3715
        %3733 = vmatpush.msra.mxu0 %v3714
        %3734 = vmatpush.msra.mxu0 %v3713
        %3735 = vmatpush.msra.mxu0 %v3712
        %3736 = vmatpush.msra.mxu0 %v3711
        %3737 = vmatpush.msra.mxu0 %v3710
        %3738 = vmatpush.msra.mxu0 %v3709
        %3739 = vmatpush.msra.mxu0 %v3708
        %3740 = vmatpush.msra.mxu0 %v3707
        %3741 = vmatmul.f32.gmra.mxu0 %v3723
        %v3742 = vpop.f32.mrf.mxu0
        %v3743 = vadd.f32 0.0, %v3742
        %3744 = vdwg.mxu0
        %v3745 = vadd.f32 %v3705, %v3743
        %s3746 = scalar_lea.vmem [#allocation10], 1024
        %v3747 = vld [vmem:[%s3746] sm:$0xff]
        %v3748 = vld [vmem:[%s3746 + $0x8] sm:$0xff]
        %v3749 = vld [vmem:[%s3746 + $0x10] sm:$0xff]
        %v3750 = vld [vmem:[%s3746 + $0x18] sm:$0xff]
        %v3751 = vld [vmem:[%s3746 + $0x20] sm:$0xff]
        %v3752 = vld [vmem:[%s3746 + $0x28] sm:$0xff]
        %v3753 = vld [vmem:[%s3746 + $0x30] sm:$0xff]
        %v3754 = vld [vmem:[%s3746 + $0x38] sm:$0xff]
        %v3755 = vld [vmem:[%s3746 + $0x40] sm:$0xff]
        %v3756 = vld [vmem:[%s3746 + $0x48] sm:$0xff]
        %v3757 = vld [vmem:[%s3746 + $0x50] sm:$0xff]
        %v3758 = vld [vmem:[%s3746 + $0x58] sm:$0xff]
        %v3759 = vld [vmem:[%s3746 + $0x60] sm:$0xff]
        %v3760 = vld [vmem:[%s3746 + $0x68] sm:$0xff]
        %v3761 = vld [vmem:[%s3746 + $0x70] sm:$0xff]
        %v3762 = vld [vmem:[%s3746 + $0x78] sm:$0xff]
        %3763 = vmatpush.msra.mxu0 %v3762
        %3764 = vmatpush.msra.mxu0 %v3761
        %3765 = vmatpush.msra.mxu0 %v3760
        %3766 = vmatpush.msra.mxu0 %v3759
        %3767 = vmatpush.msra.mxu0 %v3758
        %3768 = vmatpush.msra.mxu0 %v3757
        %3769 = vmatpush.msra.mxu0 %v3756
        %3770 = vmatpush.msra.mxu0 %v3755
        %3771 = vmatpush.msra.mxu0 %v3754
        %3772 = vmatpush.msra.mxu0 %v3753
        %3773 = vmatpush.msra.mxu0 %v3752
        %3774 = vmatpush.msra.mxu0 %v3751
        %3775 = vmatpush.msra.mxu0 %v3750
        %3776 = vmatpush.msra.mxu0 %v3749
        %3777 = vmatpush.msra.mxu0 %v3748
        %3778 = vmatpush.msra.mxu0 %v3747
        %3779 = vmatmul.f32.gmra.mxu0 %v3429
        %v3780 = vpop.f32.mrf.mxu0
        %v3781 = vadd.f32 0.0, %v3780
        %3782 = vdwg.mxu0
        %v3783 = vadd.f32 %v3745, %v3781
        %s3784 = scalar_lea.vmem [#allocation10], 1152
        %v3785 = vld [vmem:[%s3784] sm:$0xff]
        %v3786 = vld [vmem:[%s3784 + $0x8] sm:$0xff]
        %v3787 = vld [vmem:[%s3784 + $0x10] sm:$0xff]
        %v3788 = vld [vmem:[%s3784 + $0x18] sm:$0xff]
        %v3789 = vld [vmem:[%s3784 + $0x20] sm:$0xff]
        %v3790 = vld [vmem:[%s3784 + $0x28] sm:$0xff]
        %v3791 = vld [vmem:[%s3784 + $0x30] sm:$0xff]
        %v3792 = vld [vmem:[%s3784 + $0x38] sm:$0xff]
        %v3793 = vld [vmem:[%s3784 + $0x40] sm:$0xff]
        %v3794 = vld [vmem:[%s3784 + $0x48] sm:$0xff]
        %v3795 = vld [vmem:[%s3784 + $0x50] sm:$0xff]
        %v3796 = vld [vmem:[%s3784 + $0x58] sm:$0xff]
        %v3797 = vld [vmem:[%s3784 + $0x60] sm:$0xff]
        %v3798 = vld [vmem:[%s3784 + $0x68] sm:$0xff]
        %v3799 = vld [vmem:[%s3784 + $0x70] sm:$0xff]
        %v3800 = vld [vmem:[%s3784 + $0x78] sm:$0xff]
        %v3802 = vrot.slane %v3429, 1
        %3804 = vmatpush.msra.mxu0 %v3800
        %3805 = vmatpush.msra.mxu0 %v3799
        %3806 = vmatpush.msra.mxu0 %v3798
        %3807 = vmatpush.msra.mxu0 %v3797
        %3808 = vmatpush.msra.mxu0 %v3796
        %3809 = vmatpush.msra.mxu0 %v3795
        %3810 = vmatpush.msra.mxu0 %v3794
        %3811 = vmatpush.msra.mxu0 %v3793
        %3812 = vmatpush.msra.mxu0 %v3792
        %3813 = vmatpush.msra.mxu0 %v3791
        %3814 = vmatpush.msra.mxu0 %v3790
        %3815 = vmatpush.msra.mxu0 %v3789
        %3816 = vmatpush.msra.mxu0 %v3788
        %3817 = vmatpush.msra.mxu0 %v3787
        %3818 = vmatpush.msra.mxu0 %v3786
        %3819 = vmatpush.msra.mxu0 %v3785
        %3820 = vmatmul.f32.gmra.mxu0 %v3802
        %v3821 = vpop.f32.mrf.mxu0
        %v3822 = vadd.f32 0.0, %v3821
        %3823 = vdwg.mxu0
        %v3824 = vadd.f32 %v3783, %v3822
        %s3825 = scalar_lea.vmem [#allocation10], 1280
        %v3826 = vld [vmem:[%s3825] sm:$0xff]
        %v3827 = vld [vmem:[%s3825 + $0x8] sm:$0xff]
        %v3828 = vld [vmem:[%s3825 + $0x10] sm:$0xff]
        %v3829 = vld [vmem:[%s3825 + $0x18] sm:$0xff]
        %v3830 = vld [vmem:[%s3825 + $0x20] sm:$0xff]
        %v3831 = vld [vmem:[%s3825 + $0x28] sm:$0xff]
        %v3832 = vld [vmem:[%s3825 + $0x30] sm:$0xff]
        %v3833 = vld [vmem:[%s3825 + $0x38] sm:$0xff]
        %v3834 = vld [vmem:[%s3825 + $0x40] sm:$0xff]
        %v3835 = vld [vmem:[%s3825 + $0x48] sm:$0xff]
        %v3836 = vld [vmem:[%s3825 + $0x50] sm:$0xff]
        %v3837 = vld [vmem:[%s3825 + $0x58] sm:$0xff]
        %v3838 = vld [vmem:[%s3825 + $0x60] sm:$0xff]
        %v3839 = vld [vmem:[%s3825 + $0x68] sm:$0xff]
        %v3840 = vld [vmem:[%s3825 + $0x70] sm:$0xff]
        %v3841 = vld [vmem:[%s3825 + $0x78] sm:$0xff]
        %v3842 = vrot.slane %v3429, 2
        %3844 = vmatpush.msra.mxu0 %v3841
        %3845 = vmatpush.msra.mxu0 %v3840
        %3846 = vmatpush.msra.mxu0 %v3839
        %3847 = vmatpush.msra.mxu0 %v3838
        %3848 = vmatpush.msra.mxu0 %v3837
        %3849 = vmatpush.msra.mxu0 %v3836
        %3850 = vmatpush.msra.mxu0 %v3835
        %3851 = vmatpush.msra.mxu0 %v3834
        %3852 = vmatpush.msra.mxu0 %v3833
        %3853 = vmatpush.msra.mxu0 %v3832
        %3854 = vmatpush.msra.mxu0 %v3831
        %3855 = vmatpush.msra.mxu0 %v3830
        %3856 = vmatpush.msra.mxu0 %v3829
        %3857 = vmatpush.msra.mxu0 %v3828
        %3858 = vmatpush.msra.mxu0 %v3827
        %3859 = vmatpush.msra.mxu0 %v3826
        %3860 = vmatmul.f32.gmra.mxu0 %v3842
        %v3861 = vpop.f32.mrf.mxu0
        %v3862 = vadd.f32 0.0, %v3861
        %3863 = vdwg.mxu0
        %v3864 = vadd.f32 %v3824, %v3862
        %s3865 = scalar_lea.vmem [#allocation10], 1408
        %v3866 = vld [vmem:[%s3865] sm:$0xff]
        %v3867 = vld [vmem:[%s3865 + $0x8] sm:$0xff]
        %v3868 = vld [vmem:[%s3865 + $0x10] sm:$0xff]
        %v3869 = vld [vmem:[%s3865 + $0x18] sm:$0xff]
        %v3870 = vld [vmem:[%s3865 + $0x20] sm:$0xff]
        %v3871 = vld [vmem:[%s3865 + $0x28] sm:$0xff]
        %v3872 = vld [vmem:[%s3865 + $0x30] sm:$0xff]
        %v3873 = vld [vmem:[%s3865 + $0x38] sm:$0xff]
        %v3874 = vld [vmem:[%s3865 + $0x40] sm:$0xff]
        %v3875 = vld [vmem:[%s3865 + $0x48] sm:$0xff]
        %v3876 = vld [vmem:[%s3865 + $0x50] sm:$0xff]
        %v3877 = vld [vmem:[%s3865 + $0x58] sm:$0xff]
        %v3878 = vld [vmem:[%s3865 + $0x60] sm:$0xff]
        %v3879 = vld [vmem:[%s3865 + $0x68] sm:$0xff]
        %v3880 = vld [vmem:[%s3865 + $0x70] sm:$0xff]
        %v3881 = vld [vmem:[%s3865 + $0x78] sm:$0xff]
        %v3882 = vrot.slane %v3429, 3
        %3884 = vmatpush.msra.mxu0 %v3881
        %3885 = vmatpush.msra.mxu0 %v3880
        %3886 = vmatpush.msra.mxu0 %v3879
        %3887 = vmatpush.msra.mxu0 %v3878
        %3888 = vmatpush.msra.mxu0 %v3877
        %3889 = vmatpush.msra.mxu0 %v3876
        %3890 = vmatpush.msra.mxu0 %v3875
        %3891 = vmatpush.msra.mxu0 %v3874
        %3892 = vmatpush.msra.mxu0 %v3873
        %3893 = vmatpush.msra.mxu0 %v3872
        %3894 = vmatpush.msra.mxu0 %v3871
        %3895 = vmatpush.msra.mxu0 %v3870
        %3896 = vmatpush.msra.mxu0 %v3869
        %3897 = vmatpush.msra.mxu0 %v3868
        %3898 = vmatpush.msra.mxu0 %v3867
        %3899 = vmatpush.msra.mxu0 %v3866
        %3900 = vmatmul.f32.gmra.mxu0 %v3882
        %v3901 = vpop.f32.mrf.mxu0
        %v3902 = vadd.f32 0.0, %v3901
        %3903 = vdwg.mxu0
        %v3904 = vadd.f32 %v3864, %v3902
        %s3905 = scalar_lea.vmem [#allocation10], 1536
        %v3906 = vld [vmem:[%s3905] sm:$0xff]
        %v3907 = vld [vmem:[%s3905 + $0x8] sm:$0xff]
        %v3908 = vld [vmem:[%s3905 + $0x10] sm:$0xff]
        %v3909 = vld [vmem:[%s3905 + $0x18] sm:$0xff]
        %v3910 = vld [vmem:[%s3905 + $0x20] sm:$0xff]
        %v3911 = vld [vmem:[%s3905 + $0x28] sm:$0xff]
        %v3912 = vld [vmem:[%s3905 + $0x30] sm:$0xff]
        %v3913 = vld [vmem:[%s3905 + $0x38] sm:$0xff]
        %v3914 = vld [vmem:[%s3905 + $0x40] sm:$0xff]
        %v3915 = vld [vmem:[%s3905 + $0x48] sm:$0xff]
        %v3916 = vld [vmem:[%s3905 + $0x50] sm:$0xff]
        %v3917 = vld [vmem:[%s3905 + $0x58] sm:$0xff]
        %v3918 = vld [vmem:[%s3905 + $0x60] sm:$0xff]
        %v3919 = vld [vmem:[%s3905 + $0x68] sm:$0xff]
        %v3920 = vld [vmem:[%s3905 + $0x70] sm:$0xff]
        %v3921 = vld [vmem:[%s3905 + $0x78] sm:$0xff]
        %v3922 = vrot.slane %v3429, 4
        %3924 = vmatpush.msra.mxu0 %v3921
        %3925 = vmatpush.msra.mxu0 %v3920
        %3926 = vmatpush.msra.mxu0 %v3919
        %3927 = vmatpush.msra.mxu0 %v3918
        %3928 = vmatpush.msra.mxu0 %v3917
        %3929 = vmatpush.msra.mxu0 %v3916
        %3930 = vmatpush.msra.mxu0 %v3915
        %3931 = vmatpush.msra.mxu0 %v3914
        %3932 = vmatpush.msra.mxu0 %v3913
        %3933 = vmatpush.msra.mxu0 %v3912
        %3934 = vmatpush.msra.mxu0 %v3911
        %3935 = vmatpush.msra.mxu0 %v3910
        %3936 = vmatpush.msra.mxu0 %v3909
        %3937 = vmatpush.msra.mxu0 %v3908
        %3938 = vmatpush.msra.mxu0 %v3907
        %3939 = vmatpush.msra.mxu0 %v3906
        %3940 = vmatmul.f32.gmra.mxu0 %v3922
        %v3941 = vpop.f32.mrf.mxu0
        %v3942 = vadd.f32 0.0, %v3941
        %3943 = vdwg.mxu0
        %v3944 = vadd.f32 %v3904, %v3942
        %s3945 = scalar_lea.vmem [#allocation10], 1664
        %v3946 = vld [vmem:[%s3945] sm:$0xff]
        %v3947 = vld [vmem:[%s3945 + $0x8] sm:$0xff]
        %v3948 = vld [vmem:[%s3945 + $0x10] sm:$0xff]
        %v3949 = vld [vmem:[%s3945 + $0x18] sm:$0xff]
        %v3950 = vld [vmem:[%s3945 + $0x20] sm:$0xff]
        %v3951 = vld [vmem:[%s3945 + $0x28] sm:$0xff]
        %v3952 = vld [vmem:[%s3945 + $0x30] sm:$0xff]
        %v3953 = vld [vmem:[%s3945 + $0x38] sm:$0xff]
        %v3954 = vld [vmem:[%s3945 + $0x40] sm:$0xff]
        %v3955 = vld [vmem:[%s3945 + $0x48] sm:$0xff]
        %v3956 = vld [vmem:[%s3945 + $0x50] sm:$0xff]
        %v3957 = vld [vmem:[%s3945 + $0x58] sm:$0xff]
        %v3958 = vld [vmem:[%s3945 + $0x60] sm:$0xff]
        %v3959 = vld [vmem:[%s3945 + $0x68] sm:$0xff]
        %v3960 = vld [vmem:[%s3945 + $0x70] sm:$0xff]
        %v3961 = vld [vmem:[%s3945 + $0x78] sm:$0xff]
        %v3962 = vrot.slane %v3429, 5
        %3964 = vmatpush.msra.mxu0 %v3961
        %3965 = vmatpush.msra.mxu0 %v3960
        %3966 = vmatpush.msra.mxu0 %v3959
        %3967 = vmatpush.msra.mxu0 %v3958
        %3968 = vmatpush.msra.mxu0 %v3957
        %3969 = vmatpush.msra.mxu0 %v3956
        %3970 = vmatpush.msra.mxu0 %v3955
        %3971 = vmatpush.msra.mxu0 %v3954
        %3972 = vmatpush.msra.mxu0 %v3953
        %3973 = vmatpush.msra.mxu0 %v3952
        %3974 = vmatpush.msra.mxu0 %v3951
        %3975 = vmatpush.msra.mxu0 %v3950
        %3976 = vmatpush.msra.mxu0 %v3949
        %3977 = vmatpush.msra.mxu0 %v3948
        %3978 = vmatpush.msra.mxu0 %v3947
        %3979 = vmatpush.msra.mxu0 %v3946
        %3980 = vmatmul.f32.gmra.mxu0 %v3962
        %v3981 = vpop.f32.mrf.mxu0
        %v3982 = vadd.f32 0.0, %v3981
        %3983 = vdwg.mxu0
        %v3984 = vadd.f32 %v3944, %v3982
        %s3985 = scalar_lea.vmem [#allocation10], 1792
        %v3986 = vld [vmem:[%s3985] sm:$0xff]
        %v3987 = vld [vmem:[%s3985 + $0x8] sm:$0xff]
        %v3988 = vld [vmem:[%s3985 + $0x10] sm:$0xff]
        %v3989 = vld [vmem:[%s3985 + $0x18] sm:$0xff]
        %v3990 = vld [vmem:[%s3985 + $0x20] sm:$0xff]
        %v3991 = vld [vmem:[%s3985 + $0x28] sm:$0xff]
        %v3992 = vld [vmem:[%s3985 + $0x30] sm:$0xff]
        %v3993 = vld [vmem:[%s3985 + $0x38] sm:$0xff]
        %v3994 = vld [vmem:[%s3985 + $0x40] sm:$0xff]
        %v3995 = vld [vmem:[%s3985 + $0x48] sm:$0xff]
        %v3996 = vld [vmem:[%s3985 + $0x50] sm:$0xff]
        %v3997 = vld [vmem:[%s3985 + $0x58] sm:$0xff]
        %v3998 = vld [vmem:[%s3985 + $0x60] sm:$0xff]
        %v3999 = vld [vmem:[%s3985 + $0x68] sm:$0xff]
        %v4000 = vld [vmem:[%s3985 + $0x70] sm:$0xff]
        %v4001 = vld [vmem:[%s3985 + $0x78] sm:$0xff]
        %v4002 = vrot.slane %v3429, 6
        %4004 = vmatpush.msra.mxu0 %v4001
        %4005 = vmatpush.msra.mxu0 %v4000
        %4006 = vmatpush.msra.mxu0 %v3999
        %4007 = vmatpush.msra.mxu0 %v3998
        %4008 = vmatpush.msra.mxu0 %v3997
        %4009 = vmatpush.msra.mxu0 %v3996
        %4010 = vmatpush.msra.mxu0 %v3995
        %4011 = vmatpush.msra.mxu0 %v3994
        %4012 = vmatpush.msra.mxu0 %v3993
        %4013 = vmatpush.msra.mxu0 %v3992
        %4014 = vmatpush.msra.mxu0 %v3991
        %4015 = vmatpush.msra.mxu0 %v3990
        %4016 = vmatpush.msra.mxu0 %v3989
        %4017 = vmatpush.msra.mxu0 %v3988
        %4018 = vmatpush.msra.mxu0 %v3987
        %4019 = vmatpush.msra.mxu0 %v3986
        %4020 = vmatmul.f32.gmra.mxu0 %v4002
        %v4021 = vpop.f32.mrf.mxu0
        %v4022 = vadd.f32 0.0, %v4021
        %4023 = vdwg.mxu0
        %v4024 = vadd.f32 %v3984, %v4022
        %s4025 = scalar_lea.vmem [#allocation10], 1920
        %v4026 = vld [vmem:[%s4025] sm:$0xff]
        %v4027 = vld [vmem:[%s4025 + $0x8] sm:$0xff]
        %v4028 = vld [vmem:[%s4025 + $0x10] sm:$0xff]
        %v4029 = vld [vmem:[%s4025 + $0x18] sm:$0xff]
        %v4030 = vld [vmem:[%s4025 + $0x20] sm:$0xff]
        %v4031 = vld [vmem:[%s4025 + $0x28] sm:$0xff]
        %v4032 = vld [vmem:[%s4025 + $0x30] sm:$0xff]
        %v4033 = vld [vmem:[%s4025 + $0x38] sm:$0xff]
        %v4034 = vld [vmem:[%s4025 + $0x40] sm:$0xff]
        %v4035 = vld [vmem:[%s4025 + $0x48] sm:$0xff]
        %v4036 = vld [vmem:[%s4025 + $0x50] sm:$0xff]
        %v4037 = vld [vmem:[%s4025 + $0x58] sm:$0xff]
        %v4038 = vld [vmem:[%s4025 + $0x60] sm:$0xff]
        %v4039 = vld [vmem:[%s4025 + $0x68] sm:$0xff]
        %v4040 = vld [vmem:[%s4025 + $0x70] sm:$0xff]
        %v4041 = vld [vmem:[%s4025 + $0x78] sm:$0xff]
        %v4042 = vrot.slane %v3429, 7
        %4044 = vmatpush.msra.mxu0 %v4041
        %4045 = vmatpush.msra.mxu0 %v4040
        %4046 = vmatpush.msra.mxu0 %v4039
        %4047 = vmatpush.msra.mxu0 %v4038
        %4048 = vmatpush.msra.mxu0 %v4037
        %4049 = vmatpush.msra.mxu0 %v4036
        %4050 = vmatpush.msra.mxu0 %v4035
        %4051 = vmatpush.msra.mxu0 %v4034
        %4052 = vmatpush.msra.mxu0 %v4033
        %4053 = vmatpush.msra.mxu0 %v4032
        %4054 = vmatpush.msra.mxu0 %v4031
        %4055 = vmatpush.msra.mxu0 %v4030
        %4056 = vmatpush.msra.mxu0 %v4029
        %4057 = vmatpush.msra.mxu0 %v4028
        %4058 = vmatpush.msra.mxu0 %v4027
        %4059 = vmatpush.msra.mxu0 %v4026
        %4060 = vmatmul.f32.gmra.mxu0 %v4042
        %v4061 = vpop.f32.mrf.mxu0
        %v4062 = vadd.f32 0.0, %v4061
        %4063 = vdwg.mxu0
        %v4064 = vadd.f32 %v4024, %v4062
        %v4065 = vld [vmem:[%s8] sm:$0x1]
        %v4066 = vadd.f32 %v4064, %v4065
        %4067 = vst [vmem:[%s431] sm:$0x1] %v4066
        %p4068 = scmp.lt.s32.totalorder %s26, 1
        %s4069 = scalar_select %p4068, %s26, 1
        %s4070 = scalar_lea.vmem %s9, %s4069
        // Predicated region
        $region81: #{cnn_encoder_forward.1} parent=55 // pred_check
          %p4071 = pneg %p238
        $region82: #{cnn_encoder_forward.1} parent=55 // pred_check_branch
          %4073 = sbr.rel (%p4071) target = $region84
        $region83: #{cnn_encoder_forward.1} parent=55 // pred_region
          _
        $region84: #{cnn_encoder_forward.1} parent=55 // pred_fallthru
          _
      $region56: #{cnn_encoder_forward.1} parent=5 // pred_fallthru
        _
      %p4074 = scmp.le.s32.totalorder 2, %s21
      // Predicated region
      $region85: #{cnn_encoder_forward.1} parent=5 // pred_check
        %p4075 = pneg %p4074
      $region86: #{cnn_encoder_forward.1} parent=5 // pred_check_branch
        %4077 = sbr.rel (%p4075) target = $region88
      $region87: #{cnn_encoder_forward.1} parent=5 // pred_region
        %s4078 = ssub.s32 %s21, 2
        // Predicated region
        $region89: #{cnn_encoder_forward.1} parent=87 // pred_check
          %p4079 = pneg %p244
        $region90: #{cnn_encoder_forward.1} parent=87 // pred_check_branch
          %4081 = sbr.rel (%p4079) target = $region92
        $region91: #{cnn_encoder_forward.1} parent=87 // pred_region
          %p4082 = scmp.lt.s32.totalorder %s27, 1
          %s4083 = scalar_select %p4082, %s27, 1
          %s4084 = scalar_lea.vmem %s9, %s4083
        $region92: #{cnn_encoder_forward.1} parent=87 // pred_fallthru
          _
      $region88: #{cnn_encoder_forward.1} parent=5 // pred_fallthru
        _
    $region6: #{cnn_encoder_forward.1} parent=1 // loop_footer
      %s25 = sadd.s32 1, %s21
    $region7: #{cnn_encoder_forward.1} parent=1 // loop_footer_branch
      %20 = sbr.rel target = $region3
    $region8: #{cnn_encoder_forward.1} parent=1 // loop_exit
      _
    %4085 = vsyncpa [#allocation3], 1
    %s4086 = scalar_lea.sflag [#allocation3], 1
    %4087 = vsyncpa %s4086, 1
    %4088 = vsyncpa [#allocation5], 1
    %4089 = vsyncpa [#allocation8], 1
    %4090 = vsyncpa [#allocation11], 1

</llo_original>
